<compile_context>
chip_gen: v7x
topology: tpu7x:2x2x1
jax: 0.10.0
libtpu: 0.0.40
codegen_flags: <defaults>
</compile_context>

<pallas_src>
import jax
import jax.numpy as jnp
from jax.experimental import pallas as pl
from jax.experimental.pallas import tpu as pltpu


def seq_encoder_kernel(len_ref, xemb_ref, w0_ref, b0_ref, wih_ref, bih_ref,
                       whh_ref, bhhn_ref, rw_ref, rb_ref,
                       out_ref,
                       gi_buf, yf_buf, yb_buf):
    BP = len_ref.shape[0]                       # batch padded to a sublane tile
    T = xemb_ref.shape[0] // BP
    L = whh_ref.shape[0]
    H = whh_ref.shape[1] // 2
    GW = whh_ref.shape[2]                       # fused gate width (fwd + bwd)
    BOFF = GW - 3 * H                           # lane offset of the bwd gates
    B = out_ref.shape[0]

    lengths = len_ref[...]                      # (BP, 1) int32, padding rows = 0
    len_b = jnp.broadcast_to(lengths, (BP, H))  # broadcast ONCE (not per where)
    # per-timestep validity masks, hoisted out of the layer loop
    valid = [len_b > t for t in range(T)]       # (BP, H) bool

    f_last = None
    b_last = None

    for l in range(L):
        # ---- gi precompute for all timesteps: one fused fwd+bwd output ----
        if l == 0:
            # lin1 is pre-composed into w0/b0: emb -> gi directly.
            gi_buf[...] = (jnp.dot(xemb_ref[...], w0_ref[...],
                                   preferred_element_type=jnp.float32)
                           + b0_ref[...])
        else:
            # split dot over the fwd/bwd halves -> no in-kernel lane concat
            gi_buf[...] = (jnp.dot(yf_buf[...], wih_ref[l - 1, 0],
                                   preferred_element_type=jnp.float32)
                           + jnp.dot(yb_buf[...], wih_ref[l - 1, 1],
                                     preferred_element_type=jnp.float32)
                           + bih_ref[l - 1])

        whh_l = whh_ref[l]                      # (2H, GW) block-diagonal, dense
        bnf = bhhn_ref[l, 0]                    # (1, H) n-gate hidden bias, fwd
        bnb = bhhn_ref[l, 1]                    # (1, H) n-gate hidden bias, bwd

        hf = jnp.zeros((BP, H), jnp.float32)
        hb = jnp.zeros((BP, H), jnp.float32)
        last_layer = (l == L - 1)
        if last_layer:
            b_last = jnp.zeros((BP, H), jnp.float32)

        # ---- merged fwd/bwd recurrence, fully unrolled (T small & static) ----
        for i in range(T):
            tf = i
            tb = (T - 1) - i

            # row-block starts are static multiples of BP -> tile-aligned loads
            gi_f = gi_buf[pl.ds(tf * BP, BP), :]             # (BP, GW)
            gi_b = gi_buf[pl.ds(tb * BP, BP), :]

            # ONE hidden matmul per step for both directions (block-diag w_hh)
            h_cat = jnp.concatenate([hf, hb], axis=1)        # (BP, 2H)
            gh = jnp.dot(h_cat, whh_l,
                         preferred_element_type=jnp.float32)  # (BP, GW)

            # forward direction: gates in lanes [0, 3H)
            rz_f = jax.nn.sigmoid(gi_f[:, 0:2 * H] + gh[:, 0:2 * H])
            r_f = rz_f[:, 0:H]
            z_f = rz_f[:, H:2 * H]
            n_f = jnp.tanh(gi_f[:, 2 * H:3 * H]
                           + r_f * (gh[:, 2 * H:3 * H] + bnf))
            hf_new = n_f + z_f * (hf - n_f)

            # backward direction: gates in lanes [BOFF, BOFF + 3H)
            rz_b = jax.nn.sigmoid(gi_b[:, BOFF:BOFF + 2 * H]
                                  + gh[:, BOFF:BOFF + 2 * H])
            r_b = rz_b[:, 0:H]
            z_b = rz_b[:, H:2 * H]
            n_b = jnp.tanh(gi_b[:, BOFF + 2 * H:BOFF + 3 * H]
                           + r_b * (gh[:, BOFF + 2 * H:BOFF + 3 * H] + bnb))
            hb_new = n_b + z_b * (hb - n_b)

            hf = jnp.where(valid[tf], hf_new, hf)
            hb = jnp.where(valid[tb], hb_new, hb)

            if last_layer:
                # backward output at t = len-1, captured on the fly (no gather)
                b_last = jnp.where(len_b == (tb + 1), hb_new, b_last)
            else:
                # pad_packed_sequence semantics: padded steps emit 0
                yf_buf[pl.ds(tf * BP, BP), :] = jnp.where(valid[tf], hf_new, 0.0)
                yb_buf[pl.ds(tb * BP, BP), :] = jnp.where(valid[tb], hb_new, 0.0)

        if last_layer:
            # masked updates freeze hf at t = len-1 -> it already IS y_fwd[len-1]
            f_last = hf

    out = (jnp.dot(f_last, rw_ref[0], preferred_element_type=jnp.float32)
           + jnp.dot(b_last, rw_ref[1], preferred_element_type=jnp.float32)
           + rb_ref[...])
    out_ref[...] = out[0:B, :]


def seq_encoder_forward(seq_tok, seq_len, params):
    B, T = seq_tok.shape
    E, H = params["lin1_w"].shape
    L = params["w_hh"].shape[0]
    hp = jax.lax.Precision.HIGHEST

    BP = ((B + 7) // 8) * 8                        # sublane-tile padded batch
    BOFF = ((3 * H + 127) // 128) * 128            # bwd gates on their own tile
    GW = BOFF + 3 * H

    w_ih, w_hh = params["w_ih"], params["w_hh"]
    b_ih, b_hh = params["b_ih"], params["b_hh"]

    def col(d, g):                                  # lane offset of (dir, gate)
        return (BOFF if d == 1 else 0) + g * H

    # ---- layer 0: compose lin1 into the input projection, fuse directions,
    #      fold r/z hidden biases into the precompute bias ----
    w0 = jnp.zeros((E, GW), jnp.float32)
    b0 = jnp.zeros((1, GW), jnp.float32)
    for d in range(2):
        for g in range(3):
            c = col(d, g)
            wg = w_ih[0, d, g, 0]                                    # (H, H)
            w0 = w0.at[:, c:c + H].set(jnp.dot(params["lin1_w"], wg,
                                               precision=hp))
            bias = jnp.dot(params["lin1_b"], wg, precision=hp) + b_ih[0, d, g]
            if g < 2:
                bias = bias + b_hh[0, d, g]
            b0 = b0.at[:, c:c + H].set(bias)

    # ---- layers >= 1: fused input projections, split by fwd/bwd input half ----
    n_hi = max(L - 1, 1)
    wih_hi = jnp.zeros((n_hi, 2, H, GW), jnp.float32)   # never read when L == 1
    bih_hi = jnp.zeros((n_hi, 1, GW), jnp.float32)
    for l in range(1, L):
        for d in range(2):
            for g in range(3):
                c = col(d, g)
                for half in range(2):
                    wih_hi = wih_hi.at[l - 1, half, :, c:c + H].set(
                        w_ih[l, d, g, half])
                bias = b_ih[l, d, g]
                if g < 2:
                    bias = bias + b_hh[l, d, g]
                bih_hi = bih_hi.at[l - 1, :, c:c + H].set(bias)

    # ---- recurrent weights: dense block-diagonal over directions ----
    whh_blk = jnp.zeros((L, 2 * H, GW), jnp.float32)
    bhh_n = jnp.zeros((L, 2, 1, H), jnp.float32)
    for l in range(L):
        for d in range(2):
            for g in range(3):
                whh_blk = whh_blk.at[l, d * H:(d + 1) * H,
                                     col(d, g):col(d, g) + H].set(w_hh[l, d, g])
            bhh_n = bhh_n.at[l, d].set(b_hh[l, d, 2])

    # embedding lookup (host glue), time-major, batch padded to BP rows
    x_emb = params["emb"][seq_tok].astype(jnp.float32)               # (B, T, E)
    x_tm = jnp.transpose(x_emb, (1, 0, 2))                           # (T, B, E)
    x_pad = jnp.zeros((T, BP, E), jnp.float32).at[:, :B, :].set(x_tm)
    x_pad = x_pad.reshape(T * BP, E)

    # lengths must be >= 1; padding rows get length 0 so they never update h
    len_pad = jnp.zeros((BP, 1), jnp.int32).at[:B, 0].set(
        seq_len.astype(jnp.int32))

    vspec = pl.BlockSpec(memory_space=pltpu.MemorySpace.VMEM)
    return pl.pallas_call(
        seq_encoder_kernel,
        out_shape=jax.ShapeDtypeStruct((B, H), jnp.float32),
        in_specs=[vspec] * 10,
        out_specs=vspec,
        scratch_shapes=[
            pltpu.VMEM((T * BP, GW), jnp.float32),   # fused fwd+bwd gi
            pltpu.VMEM((T * BP, H), jnp.float32),    # fwd outputs (next layer)
            pltpu.VMEM((T * BP, H), jnp.float32),    # bwd outputs (next layer)
        ],
    )(len_pad, x_pad, w0, b0, wih_hi, bih_hi, whh_blk, bhh_n,
      params["ret_w"], params["ret_b"])


def seq_encoder_reference(seq_tok, seq_len, params):
    """Pure-JAX reference mirroring the PyTorch forward (return_node=False)."""
    hp = jax.lax.Precision.HIGHEST
    B, T = seq_tok.shape
    H = params["lin1_w"].shape[1]
    L = params["w_ih"].shape[0]
    x = params["emb"][seq_tok].astype(jnp.float32)
    x = jnp.einsum("bte,eh->bth", x, params["lin1_w"], precision=hp) + params["lin1_b"]
    x0, x1 = x, jnp.zeros_like(x)
    mask = jnp.arange(T)[None, :] < seq_len[:, None]
    for l in range(L):
        outs = []
        for d in range(2):
            gi = [jnp.einsum("bth,hk->btk", x0, params["w_ih"][l, d, g, 0], precision=hp)
                  + jnp.einsum("bth,hk->btk", x1, params["w_ih"][l, d, g, 1], precision=hp)
                  + params["b_ih"][l, d, g] for g in range(3)]
            h = jnp.zeros((B, H), jnp.float32)
            y = jnp.zeros((B, T, H), jnp.float32)
            order = range(T) if d == 0 else range(T - 1, -1, -1)
            for t in order:
                gh = [jnp.dot(h, params["w_hh"][l, d, g], precision=hp)
                      + params["b_hh"][l, d, g] for g in range(3)]
                r = jax.nn.sigmoid(gi[0][:, t] + gh[0])
                z = jax.nn.sigmoid(gi[1][:, t] + gh[1])
                n = jnp.tanh(gi[2][:, t] + r * gh[2])
                h_new = (1.0 - z) * n + z * h
                m = mask[:, t:t + 1]
                h = jnp.where(m, h_new, h)
                y = y.at[:, t].set(jnp.where(m, h_new, 0.0))
            outs.append(y)
        x0, x1 = outs
    idx = seq_len - 1
    f_last = x0[jnp.arange(B), idx]
    b_last = x1[jnp.arange(B), idx]
    return (jnp.dot(f_last, params["ret_w"][0], precision=hp)
            + jnp.dot(b_last, params["ret_w"][1], precision=hp)
            + params["ret_b"])


if __name__ == "__main__":
    # config: gru_emb=16, gru_hid=32, num_layers=2, max_len=8, drop_ratio unused
    B, T, E, H, L = 2, 8, 16, 32, 2
    key = jax.random.PRNGKey(0)
    keys = jax.random.split(key, 12)

    def u(k, shape, fan_in):
        b = 1.0 / (fan_in ** 0.5)
        return jax.random.uniform(k, shape, jnp.float32, -b, b)

    params = {
        "emb": jax.random.normal(keys[0], (200, E), jnp.float32),
        "lin1_w": u(keys[1], (E, H), E),
        "lin1_b": u(keys[2], (1, H), E),
        # GRU weights: [layer, direction, gate(r/z/n), input-half, in, out].
        # Layer 0's second input half is structurally ignored (layer-0 input is
        # only H wide), both in the kernel and in the reference.
        "w_ih": u(keys[3], (L, 2, 3, 2, H, H), H),
        "w_hh": u(keys[4], (L, 2, 3, H, H), H),
        "b_ih": u(keys[5], (L, 2, 3, 1, H), H),
        "b_hh": u(keys[6], (L, 2, 3, 1, H), H),
        # return_mlp weight split into the fwd-half / bwd-half of the 2H input
        "ret_w": u(keys[7], (2, H, H), 2 * H),
        "ret_b": u(keys[8], (1, H), 2 * H),
    }

    seq_tok = jax.random.randint(keys[9], (B, T), 0, 200)     # batch.seq_feat
    seq_len = jnp.array([T, 5], dtype=jnp.int32)              # batch.seq_len (>= 1)

    out = seq_encoder_forward(seq_tok, seq_len, params)
    out = jax.block_until_ready(out)
    ref = seq_encoder_reference(seq_tok, seq_len, params)
    assert out.shape == (B, H)
    if not jnp.allclose(out, ref, atol=2e-3, rtol=2e-3):
        raise AssertionError("kernel mismatch vs reference: max abs diff "
                             f"{float(jnp.max(jnp.abs(out - ref)))}")
    print("KERNEL_OK")
</pallas_src>

<mosaic_0001>
module attributes {stable_mosaic.version = 11 : i64} {
  func.func @seq_encoder_kernel(%arg0: memref<8x1xi32, #tpu.memory_space<vmem>>, %arg1: memref<64x16xf32, #tpu.memory_space<vmem>>, %arg2: memref<16x224xf32, #tpu.memory_space<vmem>>, %arg3: memref<1x224xf32, #tpu.memory_space<vmem>>, %arg4: memref<1x2x32x224xf32, #tpu.memory_space<vmem>>, %arg5: memref<1x1x224xf32, #tpu.memory_space<vmem>>, %arg6: memref<2x64x224xf32, #tpu.memory_space<vmem>>, %arg7: memref<2x2x1x32xf32, #tpu.memory_space<vmem>>, %arg8: memref<2x32x32xf32, #tpu.memory_space<vmem>>, %arg9: memref<1x32xf32, #tpu.memory_space<vmem>>, %arg10: memref<2x32xf32, #tpu.memory_space<vmem>>, %arg11: memref<64x224xf32, #tpu.memory_space<vmem>>, %arg12: memref<64x32xf32, #tpu.memory_space<vmem>>, %arg13: memref<64x32xf32, #tpu.memory_space<vmem>>) attributes {dimension_semantics = [], scalar_prefetch = 0 : i64, scratch_operands = 3 : i64, tpu.core_type = #tpu.core_type<tc>} {
    %c0 = arith.constant 0 : index
    %c0_0 = arith.constant 0 : index
    %0 = vector.load %arg0[%c0, %c0_0] : memref<8x1xi32, #tpu.memory_space<vmem>>, vector<8x1xi32>
    %1 = vector.shape_cast %0 : vector<8x1xi32> to vector<8x1xi32>
    %2 = vector.broadcast %1 : vector<8x1xi32> to vector<8x32xi32>
    %c0_i32 = arith.constant 0 : i32
    %3 = vector.broadcast %c0_i32 : i32 to vector<8x32xi32>
    %4 = arith.cmpi sgt, %2, %3 : vector<8x32xi32>
    %c1_i32 = arith.constant 1 : i32
    %5 = vector.broadcast %c1_i32 : i32 to vector<8x32xi32>
    %6 = arith.cmpi sgt, %2, %5 : vector<8x32xi32>
    %c2_i32 = arith.constant 2 : i32
    %7 = vector.broadcast %c2_i32 : i32 to vector<8x32xi32>
    %8 = arith.cmpi sgt, %2, %7 : vector<8x32xi32>
    %c3_i32 = arith.constant 3 : i32
    %9 = vector.broadcast %c3_i32 : i32 to vector<8x32xi32>
    %10 = arith.cmpi sgt, %2, %9 : vector<8x32xi32>
    %c4_i32 = arith.constant 4 : i32
    %11 = vector.broadcast %c4_i32 : i32 to vector<8x32xi32>
    %12 = arith.cmpi sgt, %2, %11 : vector<8x32xi32>
    %c5_i32 = arith.constant 5 : i32
    %13 = vector.broadcast %c5_i32 : i32 to vector<8x32xi32>
    %14 = arith.cmpi sgt, %2, %13 : vector<8x32xi32>
    %c6_i32 = arith.constant 6 : i32
    %15 = vector.broadcast %c6_i32 : i32 to vector<8x32xi32>
    %16 = arith.cmpi sgt, %2, %15 : vector<8x32xi32>
    %c7_i32 = arith.constant 7 : i32
    %17 = vector.broadcast %c7_i32 : i32 to vector<8x32xi32>
    %18 = arith.cmpi sgt, %2, %17 : vector<8x32xi32>
    %c0_1 = arith.constant 0 : index
    %c0_2 = arith.constant 0 : index
    %19 = vector.load %arg1[%c0_1, %c0_2] : memref<64x16xf32, #tpu.memory_space<vmem>>, vector<64x16xf32>
    %c0_3 = arith.constant 0 : index
    %c0_4 = arith.constant 0 : index
    %20 = vector.load %arg2[%c0_3, %c0_4] : memref<16x224xf32, #tpu.memory_space<vmem>>, vector<16x224xf32>
    %cst = arith.constant dense<0.000000e+00> : vector<64x224xf32>
    %21 = tpu.matmul %19, %20, %cst {dimension_numbers = #tpu.dot_dimension_numbers<[1], [0], [0], [1], [0, 0, 1, 1], [], []>} : vector<64x16xf32>, vector<16x224xf32>, vector<64x224xf32> -> vector<64x224xf32>
    %c0_5 = arith.constant 0 : index
    %c0_6 = arith.constant 0 : index
    %22 = vector.load %arg3[%c0_5, %c0_6] : memref<1x224xf32, #tpu.memory_space<vmem>>, vector<1x224xf32>
    %23 = vector.broadcast %22 : vector<1x224xf32> to vector<64x224xf32>
    %24 = arith.addf %21, %23 : vector<64x224xf32>
    %c0_7 = arith.constant 0 : index
    %c0_8 = arith.constant 0 : index
    %25 = vector.load %arg11[%c0_7, %c0_8] : memref<64x224xf32, #tpu.memory_space<vmem>>, vector<64x224xf32>
    tpu.vector_store %arg11[%c0_7, %c0_8], %24 {strides = array<i32>} : memref<64x224xf32, #tpu.memory_space<vmem>>, vector<64x224xf32>,
    %c0_9 = arith.constant 0 : index
    %c0_10 = arith.constant 0 : index
    %c0_11 = arith.constant 0 : index
    %26 = vector.load %arg6[%c0_9, %c0_10, %c0_11] : memref<2x64x224xf32, #tpu.memory_space<vmem>>, vector<1x64x224xf32>
    %27 = vector.shape_cast %26 : vector<1x64x224xf32> to vector<64x224xf32>
    %c0_12 = arith.constant 0 : index
    %c0_13 = arith.constant 0 : index
    %c0_14 = arith.constant 0 : index
    %c0_15 = arith.constant 0 : index
    %28 = vector.load %arg7[%c0_12, %c0_13, %c0_14, %c0_15] : memref<2x2x1x32xf32, #tpu.memory_space<vmem>>, vector<1x1x1x32xf32>
    %29 = vector.shape_cast %28 : vector<1x1x1x32xf32> to vector<1x32xf32>
    %c0_16 = arith.constant 0 : index
    %c1 = arith.constant 1 : index
    %c0_17 = arith.constant 0 : index
    %c0_18 = arith.constant 0 : index
    %30 = vector.load %arg7[%c0_16, %c1, %c0_17, %c0_18] : memref<2x2x1x32xf32, #tpu.memory_space<vmem>>, vector<1x1x1x32xf32>
    %31 = vector.shape_cast %30 : vector<1x1x1x32xf32> to vector<1x32xf32>
    %cst_19 = arith.constant 0.000000e+00 : f32
    %32 = vector.broadcast %cst_19 : f32 to vector<8x32xf32>
    %cst_20 = arith.constant 0.000000e+00 : f32
    %33 = vector.broadcast %cst_20 : f32 to vector<8x32xf32>
    %c0_21 = arith.constant 0 : index
    %c0_22 = arith.constant 0 : index
    %34 = vector.load %arg11[%c0_21, %c0_22] : memref<64x224xf32, #tpu.memory_space<vmem>>, vector<8x224xf32>
    %c56 = arith.constant 56 : index
    %c0_23 = arith.constant 0 : index
    %35 = vector.load %arg11[%c56, %c0_23] : memref<64x224xf32, #tpu.memory_space<vmem>>, vector<8x224xf32>
    %36 = tpu.concatenate %32, %33 in 1 : vector<8x32xf32>, vector<8x32xf32> -> vector<8x64xf32>
    %cst_24 = arith.constant dense<0.000000e+00> : vector<8x224xf32>
    %37 = tpu.matmul %36, %27, %cst_24 {dimension_numbers = #tpu.dot_dimension_numbers<[1], [0], [0], [1], [0, 0, 1, 1], [], []>} : vector<8x64xf32>, vector<64x224xf32>, vector<8x224xf32> -> vector<8x224xf32>
    %38 = vector.extract_strided_slice %34 {offsets = [0, 0], sizes = [8, 64], strides = [1, 1]} : vector<8x224xf32> to vector<8x64xf32>
    %39 = vector.extract_strided_slice %37 {offsets = [0, 0], sizes = [8, 64], strides = [1, 1]} : vector<8x224xf32> to vector<8x64xf32>
    %40 = arith.addf %38, %39 : vector<8x64xf32>
    %41 = arith.negf %40 : vector<8x64xf32>
    %42 = math.exp %41 : vector<8x64xf32>
    %cst_25 = arith.constant 1.000000e+00 : f32
    %43 = vector.broadcast %cst_25 : f32 to vector<8x64xf32>
    %44 = arith.addf %43, %42 : vector<8x64xf32>
    %45 = arith.divf %43, %44 : vector<8x64xf32>
    %46 = vector.extract_strided_slice %45 {offsets = [0, 0], sizes = [8, 32], strides = [1, 1]} : vector<8x64xf32> to vector<8x32xf32>
    %47 = vector.extract_strided_slice %45 {offsets = [0, 32], sizes = [8, 32], strides = [1, 1]} : vector<8x64xf32> to vector<8x32xf32>
    %48 = vector.extract_strided_slice %34 {offsets = [0, 64], sizes = [8, 32], strides = [1, 1]} : vector<8x224xf32> to vector<8x32xf32>
    %49 = vector.extract_strided_slice %37 {offsets = [0, 64], sizes = [8, 32], strides = [1, 1]} : vector<8x224xf32> to vector<8x32xf32>
    %50 = vector.broadcast %29 : vector<1x32xf32> to vector<8x32xf32>
    %51 = arith.addf %49, %50 : vector<8x32xf32>
    %52 = arith.mulf %46, %51 : vector<8x32xf32>
    %53 = arith.addf %48, %52 : vector<8x32xf32>
    %54 = math.tanh %53 : vector<8x32xf32>
    %55 = arith.subf %32, %54 : vector<8x32xf32>
    %56 = arith.mulf %47, %55 : vector<8x32xf32>
    %57 = arith.addf %54, %56 : vector<8x32xf32>
    %58 = vector.extract_strided_slice %35 {offsets = [0, 128], sizes = [8, 64], strides = [1, 1]} : vector<8x224xf32> to vector<8x64xf32>
    %59 = vector.extract_strided_slice %37 {offsets = [0, 128], sizes = [8, 64], strides = [1, 1]} : vector<8x224xf32> to vector<8x64xf32>
    %60 = arith.addf %58, %59 : vector<8x64xf32>
    %61 = arith.negf %60 : vector<8x64xf32>
    %62 = math.exp %61 : vector<8x64xf32>
    %cst_26 = arith.constant 1.000000e+00 : f32
    %63 = vector.broadcast %cst_26 : f32 to vector<8x64xf32>
    %64 = arith.addf %63, %62 : vector<8x64xf32>
    %65 = arith.divf %63, %64 : vector<8x64xf32>
    %66 = vector.extract_strided_slice %65 {offsets = [0, 0], sizes = [8, 32], strides = [1, 1]} : vector<8x64xf32> to vector<8x32xf32>
    %67 = vector.extract_strided_slice %65 {offsets = [0, 32], sizes = [8, 32], strides = [1, 1]} : vector<8x64xf32> to vector<8x32xf32>
    %68 = vector.extract_strided_slice %35 {offsets = [0, 192], sizes = [8, 32], strides = [1, 1]} : vector<8x224xf32> to vector<8x32xf32>
    %69 = vector.extract_strided_slice %37 {offsets = [0, 192], sizes = [8, 32], strides = [1, 1]} : vector<8x224xf32> to vector<8x32xf32>
    %70 = vector.broadcast %31 : vector<1x32xf32> to vector<8x32xf32>
    %71 = arith.addf %69, %70 : vector<8x32xf32>
    %72 = arith.mulf %66, %71 : vector<8x32xf32>
    %73 = arith.addf %68, %72 : vector<8x32xf32>
    %74 = math.tanh %73 : vector<8x32xf32>
    %75 = arith.subf %33, %74 : vector<8x32xf32>
    %76 = arith.mulf %67, %75 : vector<8x32xf32>
    %77 = arith.addf %74, %76 : vector<8x32xf32>
    %78 = arith.select %4, %57, %32 : vector<8x32xi1>, vector<8x32xf32>
    %79 = arith.select %18, %77, %33 : vector<8x32xi1>, vector<8x32xf32>
    %cst_27 = arith.constant 0.000000e+00 : f32
    %80 = vector.broadcast %cst_27 : f32 to vector<8x32xf32>
    %81 = arith.select %4, %57, %80 : vector<8x32xi1>, vector<8x32xf32>
    %c0_28 = arith.constant 0 : index
    %c0_29 = arith.constant 0 : index
    %82 = vector.load %arg12[%c0_28, %c0_29] : memref<64x32xf32, #tpu.memory_space<vmem>>, vector<8x32xf32>
    tpu.vector_store %arg12[%c0_28, %c0_29], %81 {strides = array<i32>} : memref<64x32xf32, #tpu.memory_space<vmem>>, vector<8x32xf32>,
    %cst_30 = arith.constant 0.000000e+00 : f32
    %83 = vector.broadcast %cst_30 : f32 to vector<8x32xf32>
    %84 = arith.select %18, %77, %83 : vector<8x32xi1>, vector<8x32xf32>
    %c56_31 = arith.constant 56 : index
    %c0_32 = arith.constant 0 : index
    %85 = vector.load %arg13[%c56_31, %c0_32] : memref<64x32xf32, #tpu.memory_space<vmem>>, vector<8x32xf32>
    tpu.vector_store %arg13[%c56_31, %c0_32], %84 {strides = array<i32>} : memref<64x32xf32, #tpu.memory_space<vmem>>, vector<8x32xf32>,
    %c8 = arith.constant 8 : index
    %c0_33 = arith.constant 0 : index
    %86 = vector.load %arg11[%c8, %c0_33] : memref<64x224xf32, #tpu.memory_space<vmem>>, vector<8x224xf32>
    %c48 = arith.constant 48 : index
    %c0_34 = arith.constant 0 : index
    %87 = vector.load %arg11[%c48, %c0_34] : memref<64x224xf32, #tpu.memory_space<vmem>>, vector<8x224xf32>
    %88 = tpu.concatenate %78, %79 in 1 : vector<8x32xf32>, vector<8x32xf32> -> vector<8x64xf32>
    %cst_35 = arith.constant dense<0.000000e+00> : vector<8x224xf32>
    %89 = tpu.matmul %88, %27, %cst_35 {dimension_numbers = #tpu.dot_dimension_numbers<[1], [0], [0], [1], [0, 0, 1, 1], [], []>} : vector<8x64xf32>, vector<64x224xf32>, vector<8x224xf32> -> vector<8x224xf32>
    %90 = vector.extract_strided_slice %86 {offsets = [0, 0], sizes = [8, 64], strides = [1, 1]} : vector<8x224xf32> to vector<8x64xf32>
    %91 = vector.extract_strided_slice %89 {offsets = [0, 0], sizes = [8, 64], strides = [1, 1]} : vector<8x224xf32> to vector<8x64xf32>
    %92 = arith.addf %90, %91 : vector<8x64xf32>
    %93 = arith.negf %92 : vector<8x64xf32>
    %94 = math.exp %93 : vector<8x64xf32>
    %cst_36 = arith.constant 1.000000e+00 : f32
    %95 = vector.broadcast %cst_36 : f32 to vector<8x64xf32>
    %96 = arith.addf %95, %94 : vector<8x64xf32>
    %97 = arith.divf %95, %96 : vector<8x64xf32>
    %98 = vector.extract_strided_slice %97 {offsets = [0, 0], sizes = [8, 32], strides = [1, 1]} : vector<8x64xf32> to vector<8x32xf32>
    %99 = vector.extract_strided_slice %97 {offsets = [0, 32], sizes = [8, 32], strides = [1, 1]} : vector<8x64xf32> to vector<8x32xf32>
    %100 = vector.extract_strided_slice %86 {offsets = [0, 64], sizes = [8, 32], strides = [1, 1]} : vector<8x224xf32> to vector<8x32xf32>
    %101 = vector.extract_strided_slice %89 {offsets = [0, 64], sizes = [8, 32], strides = [1, 1]} : vector<8x224xf32> to vector<8x32xf32>
    %102 = vector.broadcast %29 : vector<1x32xf32> to vector<8x32xf32>
    %103 = arith.addf %101, %102 : vector<8x32xf32>
    %104 = arith.mulf %98, %103 : vector<8x32xf32>
    %105 = arith.addf %100, %104 : vector<8x32xf32>
    %106 = math.tanh %105 : vector<8x32xf32>
    %107 = arith.subf %78, %106 : vector<8x32xf32>
    %108 = arith.mulf %99, %107 : vector<8x32xf32>
    %109 = arith.addf %106, %108 : vector<8x32xf32>
    %110 = vector.extract_strided_slice %87 {offsets = [0, 128], sizes = [8, 64], strides = [1, 1]} : vector<8x224xf32> to vector<8x64xf32>
    %111 = vector.extract_strided_slice %89 {offsets = [0, 128], sizes = [8, 64], strides = [1, 1]} : vector<8x224xf32> to vector<8x64xf32>
    %112 = arith.addf %110, %111 : vector<8x64xf32>
    %113 = arith.negf %112 : vector<8x64xf32>
    %114 = math.exp %113 : vector<8x64xf32>
    %cst_37 = arith.constant 1.000000e+00 : f32
    %115 = vector.broadcast %cst_37 : f32 to vector<8x64xf32>
    %116 = arith.addf %115, %114 : vector<8x64xf32>
    %117 = arith.divf %115, %116 : vector<8x64xf32>
    %118 = vector.extract_strided_slice %117 {offsets = [0, 0], sizes = [8, 32], strides = [1, 1]} : vector<8x64xf32> to vector<8x32xf32>
    %119 = vector.extract_strided_slice %117 {offsets = [0, 32], sizes = [8, 32], strides = [1, 1]} : vector<8x64xf32> to vector<8x32xf32>
    %120 = vector.extract_strided_slice %87 {offsets = [0, 192], sizes = [8, 32], strides = [1, 1]} : vector<8x224xf32> to vector<8x32xf32>
    %121 = vector.extract_strided_slice %89 {offsets = [0, 192], sizes = [8, 32], strides = [1, 1]} : vector<8x224xf32> to vector<8x32xf32>
    %122 = vector.broadcast %31 : vector<1x32xf32> to vector<8x32xf32>
    %123 = arith.addf %121, %122 : vector<8x32xf32>
    %124 = arith.mulf %118, %123 : vector<8x32xf32>
    %125 = arith.addf %120, %124 : vector<8x32xf32>
    %126 = math.tanh %125 : vector<8x32xf32>
    %127 = arith.subf %79, %126 : vector<8x32xf32>
    %128 = arith.mulf %119, %127 : vector<8x32xf32>
    %129 = arith.addf %126, %128 : vector<8x32xf32>
    %130 = arith.select %6, %109, %78 : vector<8x32xi1>, vector<8x32xf32>
    %131 = arith.select %16, %129, %79 : vector<8x32xi1>, vector<8x32xf32>
    %cst_38 = arith.constant 0.000000e+00 : f32
    %132 = vector.broadcast %cst_38 : f32 to vector<8x32xf32>
    %133 = arith.select %6, %109, %132 : vector<8x32xi1>, vector<8x32xf32>
    %c8_39 = arith.constant 8 : index
    %c0_40 = arith.constant 0 : index
    %134 = vector.load %arg12[%c8_39, %c0_40] : memref<64x32xf32, #tpu.memory_space<vmem>>, vector<8x32xf32>
    tpu.vector_store %arg12[%c8_39, %c0_40], %133 {strides = array<i32>} : memref<64x32xf32, #tpu.memory_space<vmem>>, vector<8x32xf32>,
    %cst_41 = arith.constant 0.000000e+00 : f32
    %135 = vector.broadcast %cst_41 : f32 to vector<8x32xf32>
    %136 = arith.select %16, %129, %135 : vector<8x32xi1>, vector<8x32xf32>
    %c48_42 = arith.constant 48 : index
    %c0_43 = arith.constant 0 : index
    %137 = vector.load %arg13[%c48_42, %c0_43] : memref<64x32xf32, #tpu.memory_space<vmem>>, vector<8x32xf32>
    tpu.vector_store %arg13[%c48_42, %c0_43], %136 {strides = array<i32>} : memref<64x32xf32, #tpu.memory_space<vmem>>, vector<8x32xf32>,
    %c16 = arith.constant 16 : index
    %c0_44 = arith.constant 0 : index
    %138 = vector.load %arg11[%c16, %c0_44] : memref<64x224xf32, #tpu.memory_space<vmem>>, vector<8x224xf32>
    %c40 = arith.constant 40 : index
    %c0_45 = arith.constant 0 : index
    %139 = vector.load %arg11[%c40, %c0_45] : memref<64x224xf32, #tpu.memory_space<vmem>>, vector<8x224xf32>
    %140 = tpu.concatenate %130, %131 in 1 : vector<8x32xf32>, vector<8x32xf32> -> vector<8x64xf32>
    %cst_46 = arith.constant dense<0.000000e+00> : vector<8x224xf32>
    %141 = tpu.matmul %140, %27, %cst_46 {dimension_numbers = #tpu.dot_dimension_numbers<[1], [0], [0], [1], [0, 0, 1, 1], [], []>} : vector<8x64xf32>, vector<64x224xf32>, vector<8x224xf32> -> vector<8x224xf32>
    %142 = vector.extract_strided_slice %138 {offsets = [0, 0], sizes = [8, 64], strides = [1, 1]} : vector<8x224xf32> to vector<8x64xf32>
    %143 = vector.extract_strided_slice %141 {offsets = [0, 0], sizes = [8, 64], strides = [1, 1]} : vector<8x224xf32> to vector<8x64xf32>
    %144 = arith.addf %142, %143 : vector<8x64xf32>
    %145 = arith.negf %144 : vector<8x64xf32>
    %146 = math.exp %145 : vector<8x64xf32>
    %cst_47 = arith.constant 1.000000e+00 : f32
    %147 = vector.broadcast %cst_47 : f32 to vector<8x64xf32>
    %148 = arith.addf %147, %146 : vector<8x64xf32>
    %149 = arith.divf %147, %148 : vector<8x64xf32>
    %150 = vector.extract_strided_slice %149 {offsets = [0, 0], sizes = [8, 32], strides = [1, 1]} : vector<8x64xf32> to vector<8x32xf32>
    %151 = vector.extract_strided_slice %149 {offsets = [0, 32], sizes = [8, 32], strides = [1, 1]} : vector<8x64xf32> to vector<8x32xf32>
    %152 = vector.extract_strided_slice %138 {offsets = [0, 64], sizes = [8, 32], strides = [1, 1]} : vector<8x224xf32> to vector<8x32xf32>
    %153 = vector.extract_strided_slice %141 {offsets = [0, 64], sizes = [8, 32], strides = [1, 1]} : vector<8x224xf32> to vector<8x32xf32>
    %154 = vector.broadcast %29 : vector<1x32xf32> to vector<8x32xf32>
    %155 = arith.addf %153, %154 : vector<8x32xf32>
    %156 = arith.mulf %150, %155 : vector<8x32xf32>
    %157 = arith.addf %152, %156 : vector<8x32xf32>
    %158 = math.tanh %157 : vector<8x32xf32>
    %159 = arith.subf %130, %158 : vector<8x32xf32>
    %160 = arith.mulf %151, %159 : vector<8x32xf32>
    %161 = arith.addf %158, %160 : vector<8x32xf32>
    %162 = vector.extract_strided_slice %139 {offsets = [0, 128], sizes = [8, 64], strides = [1, 1]} : vector<8x224xf32> to vector<8x64xf32>
    %163 = vector.extract_strided_slice %141 {offsets = [0, 128], sizes = [8, 64], strides = [1, 1]} : vector<8x224xf32> to vector<8x64xf32>
    %164 = arith.addf %162, %163 : vector<8x64xf32>
    %165 = arith.negf %164 : vector<8x64xf32>
    %166 = math.exp %165 : vector<8x64xf32>
    %cst_48 = arith.constant 1.000000e+00 : f32
    %167 = vector.broadcast %cst_48 : f32 to vector<8x64xf32>
    %168 = arith.addf %167, %166 : vector<8x64xf32>
    %169 = arith.divf %167, %168 : vector<8x64xf32>
    %170 = vector.extract_strided_slice %169 {offsets = [0, 0], sizes = [8, 32], strides = [1, 1]} : vector<8x64xf32> to vector<8x32xf32>
    %171 = vector.extract_strided_slice %169 {offsets = [0, 32], sizes = [8, 32], strides = [1, 1]} : vector<8x64xf32> to vector<8x32xf32>
    %172 = vector.extract_strided_slice %139 {offsets = [0, 192], sizes = [8, 32], strides = [1, 1]} : vector<8x224xf32> to vector<8x32xf32>
    %173 = vector.extract_strided_slice %141 {offsets = [0, 192], sizes = [8, 32], strides = [1, 1]} : vector<8x224xf32> to vector<8x32xf32>
    %174 = vector.broadcast %31 : vector<1x32xf32> to vector<8x32xf32>
    %175 = arith.addf %173, %174 : vector<8x32xf32>
    %176 = arith.mulf %170, %175 : vector<8x32xf32>
    %177 = arith.addf %172, %176 : vector<8x32xf32>
    %178 = math.tanh %177 : vector<8x32xf32>
    %179 = arith.subf %131, %178 : vector<8x32xf32>
    %180 = arith.mulf %171, %179 : vector<8x32xf32>
    %181 = arith.addf %178, %180 : vector<8x32xf32>
    %182 = arith.select %8, %161, %130 : vector<8x32xi1>, vector<8x32xf32>
    %183 = arith.select %14, %181, %131 : vector<8x32xi1>, vector<8x32xf32>
    %cst_49 = arith.constant 0.000000e+00 : f32
    %184 = vector.broadcast %cst_49 : f32 to vector<8x32xf32>
    %185 = arith.select %8, %161, %184 : vector<8x32xi1>, vector<8x32xf32>
    %c16_50 = arith.constant 16 : index
    %c0_51 = arith.constant 0 : index
    %186 = vector.load %arg12[%c16_50, %c0_51] : memref<64x32xf32, #tpu.memory_space<vmem>>, vector<8x32xf32>
    tpu.vector_store %arg12[%c16_50, %c0_51], %185 {strides = array<i32>} : memref<64x32xf32, #tpu.memory_space<vmem>>, vector<8x32xf32>,
    %cst_52 = arith.constant 0.000000e+00 : f32
    %187 = vector.broadcast %cst_52 : f32 to vector<8x32xf32>
    %188 = arith.select %14, %181, %187 : vector<8x32xi1>, vector<8x32xf32>
    %c40_53 = arith.constant 40 : index
    %c0_54 = arith.constant 0 : index
    %189 = vector.load %arg13[%c40_53, %c0_54] : memref<64x32xf32, #tpu.memory_space<vmem>>, vector<8x32xf32>
    tpu.vector_store %arg13[%c40_53, %c0_54], %188 {strides = array<i32>} : memref<64x32xf32, #tpu.memory_space<vmem>>, vector<8x32xf32>,
    %c24 = arith.constant 24 : index
    %c0_55 = arith.constant 0 : index
    %190 = vector.load %arg11[%c24, %c0_55] : memref<64x224xf32, #tpu.memory_space<vmem>>, vector<8x224xf32>
    %c32 = arith.constant 32 : index
    %c0_56 = arith.constant 0 : index
    %191 = vector.load %arg11[%c32, %c0_56] : memref<64x224xf32, #tpu.memory_space<vmem>>, vector<8x224xf32>
    %192 = tpu.concatenate %182, %183 in 1 : vector<8x32xf32>, vector<8x32xf32> -> vector<8x64xf32>
    %cst_57 = arith.constant dense<0.000000e+00> : vector<8x224xf32>
    %193 = tpu.matmul %192, %27, %cst_57 {dimension_numbers = #tpu.dot_dimension_numbers<[1], [0], [0], [1], [0, 0, 1, 1], [], []>} : vector<8x64xf32>, vector<64x224xf32>, vector<8x224xf32> -> vector<8x224xf32>
    %194 = vector.extract_strided_slice %190 {offsets = [0, 0], sizes = [8, 64], strides = [1, 1]} : vector<8x224xf32> to vector<8x64xf32>
    %195 = vector.extract_strided_slice %193 {offsets = [0, 0], sizes = [8, 64], strides = [1, 1]} : vector<8x224xf32> to vector<8x64xf32>
    %196 = arith.addf %194, %195 : vector<8x64xf32>
    %197 = arith.negf %196 : vector<8x64xf32>
    %198 = math.exp %197 : vector<8x64xf32>
    %cst_58 = arith.constant 1.000000e+00 : f32
    %199 = vector.broadcast %cst_58 : f32 to vector<8x64xf32>
    %200 = arith.addf %199, %198 : vector<8x64xf32>
    %201 = arith.divf %199, %200 : vector<8x64xf32>
    %202 = vector.extract_strided_slice %201 {offsets = [0, 0], sizes = [8, 32], strides = [1, 1]} : vector<8x64xf32> to vector<8x32xf32>
    %203 = vector.extract_strided_slice %201 {offsets = [0, 32], sizes = [8, 32], strides = [1, 1]} : vector<8x64xf32> to vector<8x32xf32>
    %204 = vector.extract_strided_slice %190 {offsets = [0, 64], sizes = [8, 32], strides = [1, 1]} : vector<8x224xf32> to vector<8x32xf32>
    %205 = vector.extract_strided_slice %193 {offsets = [0, 64], sizes = [8, 32], strides = [1, 1]} : vector<8x224xf32> to vector<8x32xf32>
    %206 = vector.broadcast %29 : vector<1x32xf32> to vector<8x32xf32>
    %207 = arith.addf %205, %206 : vector<8x32xf32>
    %208 = arith.mulf %202, %207 : vector<8x32xf32>
    %209 = arith.addf %204, %208 : vector<8x32xf32>
    %210 = math.tanh %209 : vector<8x32xf32>
    %211 = arith.subf %182, %210 : vector<8x32xf32>
    %212 = arith.mulf %203, %211 : vector<8x32xf32>
    %213 = arith.addf %210, %212 : vector<8x32xf32>
    %214 = vector.extract_strided_slice %191 {offsets = [0, 128], sizes = [8, 64], strides = [1, 1]} : vector<8x224xf32> to vector<8x64xf32>
    %215 = vector.extract_strided_slice %193 {offsets = [0, 128], sizes = [8, 64], strides = [1, 1]} : vector<8x224xf32> to vector<8x64xf32>
    %216 = arith.addf %214, %215 : vector<8x64xf32>
    %217 = arith.negf %216 : vector<8x64xf32>
    %218 = math.exp %217 : vector<8x64xf32>
    %cst_59 = arith.constant 1.000000e+00 : f32
    %219 = vector.broadcast %cst_59 : f32 to vector<8x64xf32>
    %220 = arith.addf %219, %218 : vector<8x64xf32>
    %221 = arith.divf %219, %220 : vector<8x64xf32>
    %222 = vector.extract_strided_slice %221 {offsets = [0, 0], sizes = [8, 32], strides = [1, 1]} : vector<8x64xf32> to vector<8x32xf32>
    %223 = vector.extract_strided_slice %221 {offsets = [0, 32], sizes = [8, 32], strides = [1, 1]} : vector<8x64xf32> to vector<8x32xf32>
    %224 = vector.extract_strided_slice %191 {offsets = [0, 192], sizes = [8, 32], strides = [1, 1]} : vector<8x224xf32> to vector<8x32xf32>
    %225 = vector.extract_strided_slice %193 {offsets = [0, 192], sizes = [8, 32], strides = [1, 1]} : vector<8x224xf32> to vector<8x32xf32>
    %226 = vector.broadcast %31 : vector<1x32xf32> to vector<8x32xf32>
    %227 = arith.addf %225, %226 : vector<8x32xf32>
    %228 = arith.mulf %222, %227 : vector<8x32xf32>
    %229 = arith.addf %224, %228 : vector<8x32xf32>
    %230 = math.tanh %229 : vector<8x32xf32>
    %231 = arith.subf %183, %230 : vector<8x32xf32>
    %232 = arith.mulf %223, %231 : vector<8x32xf32>
    %233 = arith.addf %230, %232 : vector<8x32xf32>
    %234 = arith.select %10, %213, %182 : vector<8x32xi1>, vector<8x32xf32>
    %235 = arith.select %12, %233, %183 : vector<8x32xi1>, vector<8x32xf32>
    %cst_60 = arith.constant 0.000000e+00 : f32
    %236 = vector.broadcast %cst_60 : f32 to vector<8x32xf32>
    %237 = arith.select %10, %213, %236 : vector<8x32xi1>, vector<8x32xf32>
    %c24_61 = arith.constant 24 : index
    %c0_62 = arith.constant 0 : index
    %238 = vector.load %arg12[%c24_61, %c0_62] : memref<64x32xf32, #tpu.memory_space<vmem>>, vector<8x32xf32>
    tpu.vector_store %arg12[%c24_61, %c0_62], %237 {strides = array<i32>} : memref<64x32xf32, #tpu.memory_space<vmem>>, vector<8x32xf32>,
    %cst_63 = arith.constant 0.000000e+00 : f32
    %239 = vector.broadcast %cst_63 : f32 to vector<8x32xf32>
    %240 = arith.select %12, %233, %239 : vector<8x32xi1>, vector<8x32xf32>
    %c32_64 = arith.constant 32 : index
    %c0_65 = arith.constant 0 : index
    %241 = vector.load %arg13[%c32_64, %c0_65] : memref<64x32xf32, #tpu.memory_space<vmem>>, vector<8x32xf32>
    tpu.vector_store %arg13[%c32_64, %c0_65], %240 {strides = array<i32>} : memref<64x32xf32, #tpu.memory_space<vmem>>, vector<8x32xf32>,
    %c32_66 = arith.constant 32 : index
    %c0_67 = arith.constant 0 : index
    %242 = vector.load %arg11[%c32_66, %c0_67] : memref<64x224xf32, #tpu.memory_space<vmem>>, vector<8x224xf32>
    %c24_68 = arith.constant 24 : index
    %c0_69 = arith.constant 0 : index
    %243 = vector.load %arg11[%c24_68, %c0_69] : memref<64x224xf32, #tpu.memory_space<vmem>>, vector<8x224xf32>
    %244 = tpu.concatenate %234, %235 in 1 : vector<8x32xf32>, vector<8x32xf32> -> vector<8x64xf32>
    %cst_70 = arith.constant dense<0.000000e+00> : vector<8x224xf32>
    %245 = tpu.matmul %244, %27, %cst_70 {dimension_numbers = #tpu.dot_dimension_numbers<[1], [0], [0], [1], [0, 0, 1, 1], [], []>} : vector<8x64xf32>, vector<64x224xf32>, vector<8x224xf32> -> vector<8x224xf32>
    %246 = vector.extract_strided_slice %242 {offsets = [0, 0], sizes = [8, 64], strides = [1, 1]} : vector<8x224xf32> to vector<8x64xf32>
    %247 = vector.extract_strided_slice %245 {offsets = [0, 0], sizes = [8, 64], strides = [1, 1]} : vector<8x224xf32> to vector<8x64xf32>
    %248 = arith.addf %246, %247 : vector<8x64xf32>
    %249 = arith.negf %248 : vector<8x64xf32>
    %250 = math.exp %249 : vector<8x64xf32>
    %cst_71 = arith.constant 1.000000e+00 : f32
    %251 = vector.broadcast %cst_71 : f32 to vector<8x64xf32>
    %252 = arith.addf %251, %250 : vector<8x64xf32>
    %253 = arith.divf %251, %252 : vector<8x64xf32>
    %254 = vector.extract_strided_slice %253 {offsets = [0, 0], sizes = [8, 32], strides = [1, 1]} : vector<8x64xf32> to vector<8x32xf32>
    %255 = vector.extract_strided_slice %253 {offsets = [0, 32], sizes = [8, 32], strides = [1, 1]} : vector<8x64xf32> to vector<8x32xf32>
    %256 = vector.extract_strided_slice %242 {offsets = [0, 64], sizes = [8, 32], strides = [1, 1]} : vector<8x224xf32> to vector<8x32xf32>
    %257 = vector.extract_strided_slice %245 {offsets = [0, 64], sizes = [8, 32], strides = [1, 1]} : vector<8x224xf32> to vector<8x32xf32>
    %258 = vector.broadcast %29 : vector<1x32xf32> to vector<8x32xf32>
    %259 = arith.addf %257, %258 : vector<8x32xf32>
    %260 = arith.mulf %254, %259 : vector<8x32xf32>
    %261 = arith.addf %256, %260 : vector<8x32xf32>
    %262 = math.tanh %261 : vector<8x32xf32>
    %263 = arith.subf %234, %262 : vector<8x32xf32>
    %264 = arith.mulf %255, %263 : vector<8x32xf32>
    %265 = arith.addf %262, %264 : vector<8x32xf32>
    %266 = vector.extract_strided_slice %243 {offsets = [0, 128], sizes = [8, 64], strides = [1, 1]} : vector<8x224xf32> to vector<8x64xf32>
    %267 = vector.extract_strided_slice %245 {offsets = [0, 128], sizes = [8, 64], strides = [1, 1]} : vector<8x224xf32> to vector<8x64xf32>
    %268 = arith.addf %266, %267 : vector<8x64xf32>
    %269 = arith.negf %268 : vector<8x64xf32>
    %270 = math.exp %269 : vector<8x64xf32>
    %cst_72 = arith.constant 1.000000e+00 : f32
    %271 = vector.broadcast %cst_72 : f32 to vector<8x64xf32>
    %272 = arith.addf %271, %270 : vector<8x64xf32>
    %273 = arith.divf %271, %272 : vector<8x64xf32>
    %274 = vector.extract_strided_slice %273 {offsets = [0, 0], sizes = [8, 32], strides = [1, 1]} : vector<8x64xf32> to vector<8x32xf32>
    %275 = vector.extract_strided_slice %273 {offsets = [0, 32], sizes = [8, 32], strides = [1, 1]} : vector<8x64xf32> to vector<8x32xf32>
    %276 = vector.extract_strided_slice %243 {offsets = [0, 192], sizes = [8, 32], strides = [1, 1]} : vector<8x224xf32> to vector<8x32xf32>
    %277 = vector.extract_strided_slice %245 {offsets = [0, 192], sizes = [8, 32], strides = [1, 1]} : vector<8x224xf32> to vector<8x32xf32>
    %278 = vector.broadcast %31 : vector<1x32xf32> to vector<8x32xf32>
    %279 = arith.addf %277, %278 : vector<8x32xf32>
    %280 = arith.mulf %274, %279 : vector<8x32xf32>
    %281 = arith.addf %276, %280 : vector<8x32xf32>
    %282 = math.tanh %281 : vector<8x32xf32>
    %283 = arith.subf %235, %282 : vector<8x32xf32>
    %284 = arith.mulf %275, %283 : vector<8x32xf32>
    %285 = arith.addf %282, %284 : vector<8x32xf32>
    %286 = arith.select %12, %265, %234 : vector<8x32xi1>, vector<8x32xf32>
    %287 = arith.select %10, %285, %235 : vector<8x32xi1>, vector<8x32xf32>
    %cst_73 = arith.constant 0.000000e+00 : f32
    %288 = vector.broadcast %cst_73 : f32 to vector<8x32xf32>
    %289 = arith.select %12, %265, %288 : vector<8x32xi1>, vector<8x32xf32>
    %c32_74 = arith.constant 32 : index
    %c0_75 = arith.constant 0 : index
    %290 = vector.load %arg12[%c32_74, %c0_75] : memref<64x32xf32, #tpu.memory_space<vmem>>, vector<8x32xf32>
    tpu.vector_store %arg12[%c32_74, %c0_75], %289 {strides = array<i32>} : memref<64x32xf32, #tpu.memory_space<vmem>>, vector<8x32xf32>,
    %cst_76 = arith.constant 0.000000e+00 : f32
    %291 = vector.broadcast %cst_76 : f32 to vector<8x32xf32>
    %292 = arith.select %10, %285, %291 : vector<8x32xi1>, vector<8x32xf32>
    %c24_77 = arith.constant 24 : index
    %c0_78 = arith.constant 0 : index
    %293 = vector.load %arg13[%c24_77, %c0_78] : memref<64x32xf32, #tpu.memory_space<vmem>>, vector<8x32xf32>
    tpu.vector_store %arg13[%c24_77, %c0_78], %292 {strides = array<i32>} : memref<64x32xf32, #tpu.memory_space<vmem>>, vector<8x32xf32>,
    %c40_79 = arith.constant 40 : index
    %c0_80 = arith.constant 0 : index
    %294 = vector.load %arg11[%c40_79, %c0_80] : memref<64x224xf32, #tpu.memory_space<vmem>>, vector<8x224xf32>
    %c16_81 = arith.constant 16 : index
    %c0_82 = arith.constant 0 : index
    %295 = vector.load %arg11[%c16_81, %c0_82] : memref<64x224xf32, #tpu.memory_space<vmem>>, vector<8x224xf32>
    %296 = tpu.concatenate %286, %287 in 1 : vector<8x32xf32>, vector<8x32xf32> -> vector<8x64xf32>
    %cst_83 = arith.constant dense<0.000000e+00> : vector<8x224xf32>
    %297 = tpu.matmul %296, %27, %cst_83 {dimension_numbers = #tpu.dot_dimension_numbers<[1], [0], [0], [1], [0, 0, 1, 1], [], []>} : vector<8x64xf32>, vector<64x224xf32>, vector<8x224xf32> -> vector<8x224xf32>
    %298 = vector.extract_strided_slice %294 {offsets = [0, 0], sizes = [8, 64], strides = [1, 1]} : vector<8x224xf32> to vector<8x64xf32>
    %299 = vector.extract_strided_slice %297 {offsets = [0, 0], sizes = [8, 64], strides = [1, 1]} : vector<8x224xf32> to vector<8x64xf32>
    %300 = arith.addf %298, %299 : vector<8x64xf32>
    %301 = arith.negf %300 : vector<8x64xf32>
    %302 = math.exp %301 : vector<8x64xf32>
    %cst_84 = arith.constant 1.000000e+00 : f32
    %303 = vector.broadcast %cst_84 : f32 to vector<8x64xf32>
    %304 = arith.addf %303, %302 : vector<8x64xf32>
    %305 = arith.divf %303, %304 : vector<8x64xf32>
    %306 = vector.extract_strided_slice %305 {offsets = [0, 0], sizes = [8, 32], strides = [1, 1]} : vector<8x64xf32> to vector<8x32xf32>
    %307 = vector.extract_strided_slice %305 {offsets = [0, 32], sizes = [8, 32], strides = [1, 1]} : vector<8x64xf32> to vector<8x32xf32>
    %308 = vector.extract_strided_slice %294 {offsets = [0, 64], sizes = [8, 32], strides = [1, 1]} : vector<8x224xf32> to vector<8x32xf32>
    %309 = vector.extract_strided_slice %297 {offsets = [0, 64], sizes = [8, 32], strides = [1, 1]} : vector<8x224xf32> to vector<8x32xf32>
    %310 = vector.broadcast %29 : vector<1x32xf32> to vector<8x32xf32>
    %311 = arith.addf %309, %310 : vector<8x32xf32>
    %312 = arith.mulf %306, %311 : vector<8x32xf32>
    %313 = arith.addf %308, %312 : vector<8x32xf32>
    %314 = math.tanh %313 : vector<8x32xf32>
    %315 = arith.subf %286, %314 : vector<8x32xf32>
    %316 = arith.mulf %307, %315 : vector<8x32xf32>
    %317 = arith.addf %314, %316 : vector<8x32xf32>
    %318 = vector.extract_strided_slice %295 {offsets = [0, 128], sizes = [8, 64], strides = [1, 1]} : vector<8x224xf32> to vector<8x64xf32>
    %319 = vector.extract_strided_slice %297 {offsets = [0, 128], sizes = [8, 64], strides = [1, 1]} : vector<8x224xf32> to vector<8x64xf32>
    %320 = arith.addf %318, %319 : vector<8x64xf32>
    %321 = arith.negf %320 : vector<8x64xf32>
    %322 = math.exp %321 : vector<8x64xf32>
    %cst_85 = arith.constant 1.000000e+00 : f32
    %323 = vector.broadcast %cst_85 : f32 to vector<8x64xf32>
    %324 = arith.addf %323, %322 : vector<8x64xf32>
    %325 = arith.divf %323, %324 : vector<8x64xf32>
    %326 = vector.extract_strided_slice %325 {offsets = [0, 0], sizes = [8, 32], strides = [1, 1]} : vector<8x64xf32> to vector<8x32xf32>
    %327 = vector.extract_strided_slice %325 {offsets = [0, 32], sizes = [8, 32], strides = [1, 1]} : vector<8x64xf32> to vector<8x32xf32>
    %328 = vector.extract_strided_slice %295 {offsets = [0, 192], sizes = [8, 32], strides = [1, 1]} : vector<8x224xf32> to vector<8x32xf32>
    %329 = vector.extract_strided_slice %297 {offsets = [0, 192], sizes = [8, 32], strides = [1, 1]} : vector<8x224xf32> to vector<8x32xf32>
    %330 = vector.broadcast %31 : vector<1x32xf32> to vector<8x32xf32>
    %331 = arith.addf %329, %330 : vector<8x32xf32>
    %332 = arith.mulf %326, %331 : vector<8x32xf32>
    %333 = arith.addf %328, %332 : vector<8x32xf32>
    %334 = math.tanh %333 : vector<8x32xf32>
    %335 = arith.subf %287, %334 : vector<8x32xf32>
    %336 = arith.mulf %327, %335 : vector<8x32xf32>
    %337 = arith.addf %334, %336 : vector<8x32xf32>
    %338 = arith.select %14, %317, %286 : vector<8x32xi1>, vector<8x32xf32>
    %339 = arith.select %8, %337, %287 : vector<8x32xi1>, vector<8x32xf32>
    %cst_86 = arith.constant 0.000000e+00 : f32
    %340 = vector.broadcast %cst_86 : f32 to vector<8x32xf32>
    %341 = arith.select %14, %317, %340 : vector<8x32xi1>, vector<8x32xf32>
    %c40_87 = arith.constant 40 : index
    %c0_88 = arith.constant 0 : index
    %342 = vector.load %arg12[%c40_87, %c0_88] : memref<64x32xf32, #tpu.memory_space<vmem>>, vector<8x32xf32>
    tpu.vector_store %arg12[%c40_87, %c0_88], %341 {strides = array<i32>} : memref<64x32xf32, #tpu.memory_space<vmem>>, vector<8x32xf32>,
    %cst_89 = arith.constant 0.000000e+00 : f32
    %343 = vector.broadcast %cst_89 : f32 to vector<8x32xf32>
    %344 = arith.select %8, %337, %343 : vector<8x32xi1>, vector<8x32xf32>
    %c16_90 = arith.constant 16 : index
    %c0_91 = arith.constant 0 : index
    %345 = vector.load %arg13[%c16_90, %c0_91] : memref<64x32xf32, #tpu.memory_space<vmem>>, vector<8x32xf32>
    tpu.vector_store %arg13[%c16_90, %c0_91], %344 {strides = array<i32>} : memref<64x32xf32, #tpu.memory_space<vmem>>, vector<8x32xf32>,
    %c48_92 = arith.constant 48 : index
    %c0_93 = arith.constant 0 : index
    %346 = vector.load %arg11[%c48_92, %c0_93] : memref<64x224xf32, #tpu.memory_space<vmem>>, vector<8x224xf32>
    %c8_94 = arith.constant 8 : index
    %c0_95 = arith.constant 0 : index
    %347 = vector.load %arg11[%c8_94, %c0_95] : memref<64x224xf32, #tpu.memory_space<vmem>>, vector<8x224xf32>
    %348 = tpu.concatenate %338, %339 in 1 : vector<8x32xf32>, vector<8x32xf32> -> vector<8x64xf32>
    %cst_96 = arith.constant dense<0.000000e+00> : vector<8x224xf32>
    %349 = tpu.matmul %348, %27, %cst_96 {dimension_numbers = #tpu.dot_dimension_numbers<[1], [0], [0], [1], [0, 0, 1, 1], [], []>} : vector<8x64xf32>, vector<64x224xf32>, vector<8x224xf32> -> vector<8x224xf32>
    %350 = vector.extract_strided_slice %346 {offsets = [0, 0], sizes = [8, 64], strides = [1, 1]} : vector<8x224xf32> to vector<8x64xf32>
    %351 = vector.extract_strided_slice %349 {offsets = [0, 0], sizes = [8, 64], strides = [1, 1]} : vector<8x224xf32> to vector<8x64xf32>
    %352 = arith.addf %350, %351 : vector<8x64xf32>
    %353 = arith.negf %352 : vector<8x64xf32>
    %354 = math.exp %353 : vector<8x64xf32>
    %cst_97 = arith.constant 1.000000e+00 : f32
    %355 = vector.broadcast %cst_97 : f32 to vector<8x64xf32>
    %356 = arith.addf %355, %354 : vector<8x64xf32>
    %357 = arith.divf %355, %356 : vector<8x64xf32>
    %358 = vector.extract_strided_slice %357 {offsets = [0, 0], sizes = [8, 32], strides = [1, 1]} : vector<8x64xf32> to vector<8x32xf32>
    %359 = vector.extract_strided_slice %357 {offsets = [0, 32], sizes = [8, 32], strides = [1, 1]} : vector<8x64xf32> to vector<8x32xf32>
    %360 = vector.extract_strided_slice %346 {offsets = [0, 64], sizes = [8, 32], strides = [1, 1]} : vector<8x224xf32> to vector<8x32xf32>
    %361 = vector.extract_strided_slice %349 {offsets = [0, 64], sizes = [8, 32], strides = [1, 1]} : vector<8x224xf32> to vector<8x32xf32>
    %362 = vector.broadcast %29 : vector<1x32xf32> to vector<8x32xf32>
    %363 = arith.addf %361, %362 : vector<8x32xf32>
    %364 = arith.mulf %358, %363 : vector<8x32xf32>
    %365 = arith.addf %360, %364 : vector<8x32xf32>
    %366 = math.tanh %365 : vector<8x32xf32>
    %367 = arith.subf %338, %366 : vector<8x32xf32>
    %368 = arith.mulf %359, %367 : vector<8x32xf32>
    %369 = arith.addf %366, %368 : vector<8x32xf32>
    %370 = vector.extract_strided_slice %347 {offsets = [0, 128], sizes = [8, 64], strides = [1, 1]} : vector<8x224xf32> to vector<8x64xf32>
    %371 = vector.extract_strided_slice %349 {offsets = [0, 128], sizes = [8, 64], strides = [1, 1]} : vector<8x224xf32> to vector<8x64xf32>
    %372 = arith.addf %370, %371 : vector<8x64xf32>
    %373 = arith.negf %372 : vector<8x64xf32>
    %374 = math.exp %373 : vector<8x64xf32>
    %cst_98 = arith.constant 1.000000e+00 : f32
    %375 = vector.broadcast %cst_98 : f32 to vector<8x64xf32>
    %376 = arith.addf %375, %374 : vector<8x64xf32>
    %377 = arith.divf %375, %376 : vector<8x64xf32>
    %378 = vector.extract_strided_slice %377 {offsets = [0, 0], sizes = [8, 32], strides = [1, 1]} : vector<8x64xf32> to vector<8x32xf32>
    %379 = vector.extract_strided_slice %377 {offsets = [0, 32], sizes = [8, 32], strides = [1, 1]} : vector<8x64xf32> to vector<8x32xf32>
    %380 = vector.extract_strided_slice %347 {offsets = [0, 192], sizes = [8, 32], strides = [1, 1]} : vector<8x224xf32> to vector<8x32xf32>
    %381 = vector.extract_strided_slice %349 {offsets = [0, 192], sizes = [8, 32], strides = [1, 1]} : vector<8x224xf32> to vector<8x32xf32>
    %382 = vector.broadcast %31 : vector<1x32xf32> to vector<8x32xf32>
    %383 = arith.addf %381, %382 : vector<8x32xf32>
    %384 = arith.mulf %378, %383 : vector<8x32xf32>
    %385 = arith.addf %380, %384 : vector<8x32xf32>
    %386 = math.tanh %385 : vector<8x32xf32>
    %387 = arith.subf %339, %386 : vector<8x32xf32>
    %388 = arith.mulf %379, %387 : vector<8x32xf32>
    %389 = arith.addf %386, %388 : vector<8x32xf32>
    %390 = arith.select %16, %369, %338 : vector<8x32xi1>, vector<8x32xf32>
    %391 = arith.select %6, %389, %339 : vector<8x32xi1>, vector<8x32xf32>
    %cst_99 = arith.constant 0.000000e+00 : f32
    %392 = vector.broadcast %cst_99 : f32 to vector<8x32xf32>
    %393 = arith.select %16, %369, %392 : vector<8x32xi1>, vector<8x32xf32>
    %c48_100 = arith.constant 48 : index
    %c0_101 = arith.constant 0 : index
    %394 = vector.load %arg12[%c48_100, %c0_101] : memref<64x32xf32, #tpu.memory_space<vmem>>, vector<8x32xf32>
    tpu.vector_store %arg12[%c48_100, %c0_101], %393 {strides = array<i32>} : memref<64x32xf32, #tpu.memory_space<vmem>>, vector<8x32xf32>,
    %cst_102 = arith.constant 0.000000e+00 : f32
    %395 = vector.broadcast %cst_102 : f32 to vector<8x32xf32>
    %396 = arith.select %6, %389, %395 : vector<8x32xi1>, vector<8x32xf32>
    %c8_103 = arith.constant 8 : index
    %c0_104 = arith.constant 0 : index
    %397 = vector.load %arg13[%c8_103, %c0_104] : memref<64x32xf32, #tpu.memory_space<vmem>>, vector<8x32xf32>
    tpu.vector_store %arg13[%c8_103, %c0_104], %396 {strides = array<i32>} : memref<64x32xf32, #tpu.memory_space<vmem>>, vector<8x32xf32>,
    %c56_105 = arith.constant 56 : index
    %c0_106 = arith.constant 0 : index
    %398 = vector.load %arg11[%c56_105, %c0_106] : memref<64x224xf32, #tpu.memory_space<vmem>>, vector<8x224xf32>
    %c0_107 = arith.constant 0 : index
    %c0_108 = arith.constant 0 : index
    %399 = vector.load %arg11[%c0_107, %c0_108] : memref<64x224xf32, #tpu.memory_space<vmem>>, vector<8x224xf32>
    %400 = tpu.concatenate %390, %391 in 1 : vector<8x32xf32>, vector<8x32xf32> -> vector<8x64xf32>
    %cst_109 = arith.constant dense<0.000000e+00> : vector<8x224xf32>
    %401 = tpu.matmul %400, %27, %cst_109 {dimension_numbers = #tpu.dot_dimension_numbers<[1], [0], [0], [1], [0, 0, 1, 1], [], []>} : vector<8x64xf32>, vector<64x224xf32>, vector<8x224xf32> -> vector<8x224xf32>
    %402 = vector.extract_strided_slice %398 {offsets = [0, 0], sizes = [8, 64], strides = [1, 1]} : vector<8x224xf32> to vector<8x64xf32>
    %403 = vector.extract_strided_slice %401 {offsets = [0, 0], sizes = [8, 64], strides = [1, 1]} : vector<8x224xf32> to vector<8x64xf32>
    %404 = arith.addf %402, %403 : vector<8x64xf32>
    %405 = arith.negf %404 : vector<8x64xf32>
    %406 = math.exp %405 : vector<8x64xf32>
    %cst_110 = arith.constant 1.000000e+00 : f32
    %407 = vector.broadcast %cst_110 : f32 to vector<8x64xf32>
    %408 = arith.addf %407, %406 : vector<8x64xf32>
    %409 = arith.divf %407, %408 : vector<8x64xf32>
    %410 = vector.extract_strided_slice %409 {offsets = [0, 0], sizes = [8, 32], strides = [1, 1]} : vector<8x64xf32> to vector<8x32xf32>
    %411 = vector.extract_strided_slice %409 {offsets = [0, 32], sizes = [8, 32], strides = [1, 1]} : vector<8x64xf32> to vector<8x32xf32>
    %412 = vector.extract_strided_slice %398 {offsets = [0, 64], sizes = [8, 32], strides = [1, 1]} : vector<8x224xf32> to vector<8x32xf32>
    %413 = vector.extract_strided_slice %401 {offsets = [0, 64], sizes = [8, 32], strides = [1, 1]} : vector<8x224xf32> to vector<8x32xf32>
    %414 = vector.broadcast %29 : vector<1x32xf32> to vector<8x32xf32>
    %415 = arith.addf %413, %414 : vector<8x32xf32>
    %416 = arith.mulf %410, %415 : vector<8x32xf32>
    %417 = arith.addf %412, %416 : vector<8x32xf32>
    %418 = math.tanh %417 : vector<8x32xf32>
    %419 = arith.subf %390, %418 : vector<8x32xf32>
    %420 = arith.mulf %411, %419 : vector<8x32xf32>
    %421 = arith.addf %418, %420 : vector<8x32xf32>
    %422 = vector.extract_strided_slice %399 {offsets = [0, 128], sizes = [8, 64], strides = [1, 1]} : vector<8x224xf32> to vector<8x64xf32>
    %423 = vector.extract_strided_slice %401 {offsets = [0, 128], sizes = [8, 64], strides = [1, 1]} : vector<8x224xf32> to vector<8x64xf32>
    %424 = arith.addf %422, %423 : vector<8x64xf32>
    %425 = arith.negf %424 : vector<8x64xf32>
    %426 = math.exp %425 : vector<8x64xf32>
    %cst_111 = arith.constant 1.000000e+00 : f32
    %427 = vector.broadcast %cst_111 : f32 to vector<8x64xf32>
    %428 = arith.addf %427, %426 : vector<8x64xf32>
    %429 = arith.divf %427, %428 : vector<8x64xf32>
    %430 = vector.extract_strided_slice %429 {offsets = [0, 0], sizes = [8, 32], strides = [1, 1]} : vector<8x64xf32> to vector<8x32xf32>
    %431 = vector.extract_strided_slice %429 {offsets = [0, 32], sizes = [8, 32], strides = [1, 1]} : vector<8x64xf32> to vector<8x32xf32>
    %432 = vector.extract_strided_slice %399 {offsets = [0, 192], sizes = [8, 32], strides = [1, 1]} : vector<8x224xf32> to vector<8x32xf32>
    %433 = vector.extract_strided_slice %401 {offsets = [0, 192], sizes = [8, 32], strides = [1, 1]} : vector<8x224xf32> to vector<8x32xf32>
    %434 = vector.broadcast %31 : vector<1x32xf32> to vector<8x32xf32>
    %435 = arith.addf %433, %434 : vector<8x32xf32>
    %436 = arith.mulf %430, %435 : vector<8x32xf32>
    %437 = arith.addf %432, %436 : vector<8x32xf32>
    %438 = math.tanh %437 : vector<8x32xf32>
    %439 = arith.subf %391, %438 : vector<8x32xf32>
    %440 = arith.mulf %431, %439 : vector<8x32xf32>
    %441 = arith.addf %438, %440 : vector<8x32xf32>
    %cst_112 = arith.constant 0.000000e+00 : f32
    %442 = vector.broadcast %cst_112 : f32 to vector<8x32xf32>
    %443 = arith.select %18, %421, %442 : vector<8x32xi1>, vector<8x32xf32>
    %c56_113 = arith.constant 56 : index
    %c0_114 = arith.constant 0 : index
    %444 = vector.load %arg12[%c56_113, %c0_114] : memref<64x32xf32, #tpu.memory_space<vmem>>, vector<8x32xf32>
    tpu.vector_store %arg12[%c56_113, %c0_114], %443 {strides = array<i32>} : memref<64x32xf32, #tpu.memory_space<vmem>>, vector<8x32xf32>,
    %cst_115 = arith.constant 0.000000e+00 : f32
    %445 = vector.broadcast %cst_115 : f32 to vector<8x32xf32>
    %446 = arith.select %4, %441, %445 : vector<8x32xi1>, vector<8x32xf32>
    %c0_116 = arith.constant 0 : index
    %c0_117 = arith.constant 0 : index
    %447 = vector.load %arg13[%c0_116, %c0_117] : memref<64x32xf32, #tpu.memory_space<vmem>>, vector<8x32xf32>
    tpu.vector_store %arg13[%c0_116, %c0_117], %446 {strides = array<i32>} : memref<64x32xf32, #tpu.memory_space<vmem>>, vector<8x32xf32>,
    %c0_118 = arith.constant 0 : index
    %c0_119 = arith.constant 0 : index
    %448 = vector.load %arg12[%c0_118, %c0_119] : memref<64x32xf32, #tpu.memory_space<vmem>>, vector<64x32xf32>
    %c0_120 = arith.constant 0 : index
    %c0_121 = arith.constant 0 : index
    %c0_122 = arith.constant 0 : index
    %c0_123 = arith.constant 0 : index
    %449 = vector.load %arg4[%c0_120, %c0_121, %c0_122, %c0_123] : memref<1x2x32x224xf32, #tpu.memory_space<vmem>>, vector<1x1x32x224xf32>
    %450 = vector.shape_cast %449 : vector<1x1x32x224xf32> to vector<32x224xf32>
    %cst_124 = arith.constant dense<0.000000e+00> : vector<64x224xf32>
    %451 = tpu.matmul %448, %450, %cst_124 {dimension_numbers = #tpu.dot_dimension_numbers<[1], [0], [0], [1], [0, 0, 1, 1], [], []>} : vector<64x32xf32>, vector<32x224xf32>, vector<64x224xf32> -> vector<64x224xf32>
    %c0_125 = arith.constant 0 : index
    %c0_126 = arith.constant 0 : index
    %452 = vector.load %arg13[%c0_125, %c0_126] : memref<64x32xf32, #tpu.memory_space<vmem>>, vector<64x32xf32>
    %c0_127 = arith.constant 0 : index
    %c1_128 = arith.constant 1 : index
    %c0_129 = arith.constant 0 : index
    %c0_130 = arith.constant 0 : index
    %453 = vector.load %arg4[%c0_127, %c1_128, %c0_129, %c0_130] : memref<1x2x32x224xf32, #tpu.memory_space<vmem>>, vector<1x1x32x224xf32>
    %454 = vector.shape_cast %453 : vector<1x1x32x224xf32> to vector<32x224xf32>
    %cst_131 = arith.constant dense<0.000000e+00> : vector<64x224xf32>
    %455 = tpu.matmul %452, %454, %cst_131 {dimension_numbers = #tpu.dot_dimension_numbers<[1], [0], [0], [1], [0, 0, 1, 1], [], []>} : vector<64x32xf32>, vector<32x224xf32>, vector<64x224xf32> -> vector<64x224xf32>
    %456 = arith.addf %451, %455 : vector<64x224xf32>
    %c0_132 = arith.constant 0 : index
    %c0_133 = arith.constant 0 : index
    %c0_134 = arith.constant 0 : index
    %457 = vector.load %arg5[%c0_132, %c0_133, %c0_134] : memref<1x1x224xf32, #tpu.memory_space<vmem>>, vector<1x1x224xf32>
    %458 = vector.shape_cast %457 : vector<1x1x224xf32> to vector<1x224xf32>
    %459 = vector.broadcast %458 : vector<1x224xf32> to vector<64x224xf32>
    %460 = arith.addf %456, %459 : vector<64x224xf32>
    %c0_135 = arith.constant 0 : index
    %c0_136 = arith.constant 0 : index
    %461 = vector.load %arg11[%c0_135, %c0_136] : memref<64x224xf32, #tpu.memory_space<vmem>>, vector<64x224xf32>
    tpu.vector_store %arg11[%c0_135, %c0_136], %460 {strides = array<i32>} : memref<64x224xf32, #tpu.memory_space<vmem>>, vector<64x224xf32>,
    %c1_137 = arith.constant 1 : index
    %c0_138 = arith.constant 0 : index
    %c0_139 = arith.constant 0 : index
    %462 = vector.load %arg6[%c1_137, %c0_138, %c0_139] : memref<2x64x224xf32, #tpu.memory_space<vmem>>, vector<1x64x224xf32>
    %463 = vector.shape_cast %462 : vector<1x64x224xf32> to vector<64x224xf32>
    %c1_140 = arith.constant 1 : index
    %c0_141 = arith.constant 0 : index
    %c0_142 = arith.constant 0 : index
    %c0_143 = arith.constant 0 : index
    %464 = vector.load %arg7[%c1_140, %c0_141, %c0_142, %c0_143] : memref<2x2x1x32xf32, #tpu.memory_space<vmem>>, vector<1x1x1x32xf32>
    %465 = vector.shape_cast %464 : vector<1x1x1x32xf32> to vector<1x32xf32>
    %c1_144 = arith.constant 1 : index
    %c1_145 = arith.constant 1 : index
    %c0_146 = arith.constant 0 : index
    %c0_147 = arith.constant 0 : index
    %466 = vector.load %arg7[%c1_144, %c1_145, %c0_146, %c0_147] : memref<2x2x1x32xf32, #tpu.memory_space<vmem>>, vector<1x1x1x32xf32>
    %467 = vector.shape_cast %466 : vector<1x1x1x32xf32> to vector<1x32xf32>
    %cst_148 = arith.constant 0.000000e+00 : f32
    %468 = vector.broadcast %cst_148 : f32 to vector<8x32xf32>
    %cst_149 = arith.constant 0.000000e+00 : f32
    %469 = vector.broadcast %cst_149 : f32 to vector<8x32xf32>
    %cst_150 = arith.constant 0.000000e+00 : f32
    %470 = vector.broadcast %cst_150 : f32 to vector<8x32xf32>
    %c0_151 = arith.constant 0 : index
    %c0_152 = arith.constant 0 : index
    %471 = vector.load %arg11[%c0_151, %c0_152] : memref<64x224xf32, #tpu.memory_space<vmem>>, vector<8x224xf32>
    %c56_153 = arith.constant 56 : index
    %c0_154 = arith.constant 0 : index
    %472 = vector.load %arg11[%c56_153, %c0_154] : memref<64x224xf32, #tpu.memory_space<vmem>>, vector<8x224xf32>
    %473 = tpu.concatenate %468, %469 in 1 : vector<8x32xf32>, vector<8x32xf32> -> vector<8x64xf32>
    %cst_155 = arith.constant dense<0.000000e+00> : vector<8x224xf32>
    %474 = tpu.matmul %473, %463, %cst_155 {dimension_numbers = #tpu.dot_dimension_numbers<[1], [0], [0], [1], [0, 0, 1, 1], [], []>} : vector<8x64xf32>, vector<64x224xf32>, vector<8x224xf32> -> vector<8x224xf32>
    %475 = vector.extract_strided_slice %471 {offsets = [0, 0], sizes = [8, 64], strides = [1, 1]} : vector<8x224xf32> to vector<8x64xf32>
    %476 = vector.extract_strided_slice %474 {offsets = [0, 0], sizes = [8, 64], strides = [1, 1]} : vector<8x224xf32> to vector<8x64xf32>
    %477 = arith.addf %475, %476 : vector<8x64xf32>
    %478 = arith.negf %477 : vector<8x64xf32>
    %479 = math.exp %478 : vector<8x64xf32>
    %cst_156 = arith.constant 1.000000e+00 : f32
    %480 = vector.broadcast %cst_156 : f32 to vector<8x64xf32>
    %481 = arith.addf %480, %479 : vector<8x64xf32>
    %482 = arith.divf %480, %481 : vector<8x64xf32>
    %483 = vector.extract_strided_slice %482 {offsets = [0, 0], sizes = [8, 32], strides = [1, 1]} : vector<8x64xf32> to vector<8x32xf32>
    %484 = vector.extract_strided_slice %482 {offsets = [0, 32], sizes = [8, 32], strides = [1, 1]} : vector<8x64xf32> to vector<8x32xf32>
    %485 = vector.extract_strided_slice %471 {offsets = [0, 64], sizes = [8, 32], strides = [1, 1]} : vector<8x224xf32> to vector<8x32xf32>
    %486 = vector.extract_strided_slice %474 {offsets = [0, 64], sizes = [8, 32], strides = [1, 1]} : vector<8x224xf32> to vector<8x32xf32>
    %487 = vector.broadcast %465 : vector<1x32xf32> to vector<8x32xf32>
    %488 = arith.addf %486, %487 : vector<8x32xf32>
    %489 = arith.mulf %483, %488 : vector<8x32xf32>
    %490 = arith.addf %485, %489 : vector<8x32xf32>
    %491 = math.tanh %490 : vector<8x32xf32>
    %492 = arith.subf %468, %491 : vector<8x32xf32>
    %493 = arith.mulf %484, %492 : vector<8x32xf32>
    %494 = arith.addf %491, %493 : vector<8x32xf32>
    %495 = vector.extract_strided_slice %472 {offsets = [0, 128], sizes = [8, 64], strides = [1, 1]} : vector<8x224xf32> to vector<8x64xf32>
    %496 = vector.extract_strided_slice %474 {offsets = [0, 128], sizes = [8, 64], strides = [1, 1]} : vector<8x224xf32> to vector<8x64xf32>
    %497 = arith.addf %495, %496 : vector<8x64xf32>
    %498 = arith.negf %497 : vector<8x64xf32>
    %499 = math.exp %498 : vector<8x64xf32>
    %cst_157 = arith.constant 1.000000e+00 : f32
    %500 = vector.broadcast %cst_157 : f32 to vector<8x64xf32>
    %501 = arith.addf %500, %499 : vector<8x64xf32>
    %502 = arith.divf %500, %501 : vector<8x64xf32>
    %503 = vector.extract_strided_slice %502 {offsets = [0, 0], sizes = [8, 32], strides = [1, 1]} : vector<8x64xf32> to vector<8x32xf32>
    %504 = vector.extract_strided_slice %502 {offsets = [0, 32], sizes = [8, 32], strides = [1, 1]} : vector<8x64xf32> to vector<8x32xf32>
    %505 = vector.extract_strided_slice %472 {offsets = [0, 192], sizes = [8, 32], strides = [1, 1]} : vector<8x224xf32> to vector<8x32xf32>
    %506 = vector.extract_strided_slice %474 {offsets = [0, 192], sizes = [8, 32], strides = [1, 1]} : vector<8x224xf32> to vector<8x32xf32>
    %507 = vector.broadcast %467 : vector<1x32xf32> to vector<8x32xf32>
    %508 = arith.addf %506, %507 : vector<8x32xf32>
    %509 = arith.mulf %503, %508 : vector<8x32xf32>
    %510 = arith.addf %505, %509 : vector<8x32xf32>
    %511 = math.tanh %510 : vector<8x32xf32>
    %512 = arith.subf %469, %511 : vector<8x32xf32>
    %513 = arith.mulf %504, %512 : vector<8x32xf32>
    %514 = arith.addf %511, %513 : vector<8x32xf32>
    %515 = arith.select %4, %494, %468 : vector<8x32xi1>, vector<8x32xf32>
    %516 = arith.select %18, %514, %469 : vector<8x32xi1>, vector<8x32xf32>
    %c8_i32 = arith.constant 8 : i32
    %517 = vector.broadcast %c8_i32 : i32 to vector<8x32xi32>
    %518 = arith.cmpi eq, %2, %517 : vector<8x32xi32>
    %519 = arith.select %518, %514, %470 : vector<8x32xi1>, vector<8x32xf32>
    %c8_158 = arith.constant 8 : index
    %c0_159 = arith.constant 0 : index
    %520 = vector.load %arg11[%c8_158, %c0_159] : memref<64x224xf32, #tpu.memory_space<vmem>>, vector<8x224xf32>
    %c48_160 = arith.constant 48 : index
    %c0_161 = arith.constant 0 : index
    %521 = vector.load %arg11[%c48_160, %c0_161] : memref<64x224xf32, #tpu.memory_space<vmem>>, vector<8x224xf32>
    %522 = tpu.concatenate %515, %516 in 1 : vector<8x32xf32>, vector<8x32xf32> -> vector<8x64xf32>
    %cst_162 = arith.constant dense<0.000000e+00> : vector<8x224xf32>
    %523 = tpu.matmul %522, %463, %cst_162 {dimension_numbers = #tpu.dot_dimension_numbers<[1], [0], [0], [1], [0, 0, 1, 1], [], []>} : vector<8x64xf32>, vector<64x224xf32>, vector<8x224xf32> -> vector<8x224xf32>
    %524 = vector.extract_strided_slice %520 {offsets = [0, 0], sizes = [8, 64], strides = [1, 1]} : vector<8x224xf32> to vector<8x64xf32>
    %525 = vector.extract_strided_slice %523 {offsets = [0, 0], sizes = [8, 64], strides = [1, 1]} : vector<8x224xf32> to vector<8x64xf32>
    %526 = arith.addf %524, %525 : vector<8x64xf32>
    %527 = arith.negf %526 : vector<8x64xf32>
    %528 = math.exp %527 : vector<8x64xf32>
    %cst_163 = arith.constant 1.000000e+00 : f32
    %529 = vector.broadcast %cst_163 : f32 to vector<8x64xf32>
    %530 = arith.addf %529, %528 : vector<8x64xf32>
    %531 = arith.divf %529, %530 : vector<8x64xf32>
    %532 = vector.extract_strided_slice %531 {offsets = [0, 0], sizes = [8, 32], strides = [1, 1]} : vector<8x64xf32> to vector<8x32xf32>
    %533 = vector.extract_strided_slice %531 {offsets = [0, 32], sizes = [8, 32], strides = [1, 1]} : vector<8x64xf32> to vector<8x32xf32>
    %534 = vector.extract_strided_slice %520 {offsets = [0, 64], sizes = [8, 32], strides = [1, 1]} : vector<8x224xf32> to vector<8x32xf32>
    %535 = vector.extract_strided_slice %523 {offsets = [0, 64], sizes = [8, 32], strides = [1, 1]} : vector<8x224xf32> to vector<8x32xf32>
    %536 = vector.broadcast %465 : vector<1x32xf32> to vector<8x32xf32>
    %537 = arith.addf %535, %536 : vector<8x32xf32>
    %538 = arith.mulf %532, %537 : vector<8x32xf32>
    %539 = arith.addf %534, %538 : vector<8x32xf32>
    %540 = math.tanh %539 : vector<8x32xf32>
    %541 = arith.subf %515, %540 : vector<8x32xf32>
    %542 = arith.mulf %533, %541 : vector<8x32xf32>
    %543 = arith.addf %540, %542 : vector<8x32xf32>
    %544 = vector.extract_strided_slice %521 {offsets = [0, 128], sizes = [8, 64], strides = [1, 1]} : vector<8x224xf32> to vector<8x64xf32>
    %545 = vector.extract_strided_slice %523 {offsets = [0, 128], sizes = [8, 64], strides = [1, 1]} : vector<8x224xf32> to vector<8x64xf32>
    %546 = arith.addf %544, %545 : vector<8x64xf32>
    %547 = arith.negf %546 : vector<8x64xf32>
    %548 = math.exp %547 : vector<8x64xf32>
    %cst_164 = arith.constant 1.000000e+00 : f32
    %549 = vector.broadcast %cst_164 : f32 to vector<8x64xf32>
    %550 = arith.addf %549, %548 : vector<8x64xf32>
    %551 = arith.divf %549, %550 : vector<8x64xf32>
    %552 = vector.extract_strided_slice %551 {offsets = [0, 0], sizes = [8, 32], strides = [1, 1]} : vector<8x64xf32> to vector<8x32xf32>
    %553 = vector.extract_strided_slice %551 {offsets = [0, 32], sizes = [8, 32], strides = [1, 1]} : vector<8x64xf32> to vector<8x32xf32>
    %554 = vector.extract_strided_slice %521 {offsets = [0, 192], sizes = [8, 32], strides = [1, 1]} : vector<8x224xf32> to vector<8x32xf32>
    %555 = vector.extract_strided_slice %523 {offsets = [0, 192], sizes = [8, 32], strides = [1, 1]} : vector<8x224xf32> to vector<8x32xf32>
    %556 = vector.broadcast %467 : vector<1x32xf32> to vector<8x32xf32>
    %557 = arith.addf %555, %556 : vector<8x32xf32>
    %558 = arith.mulf %552, %557 : vector<8x32xf32>
    %559 = arith.addf %554, %558 : vector<8x32xf32>
    %560 = math.tanh %559 : vector<8x32xf32>
    %561 = arith.subf %516, %560 : vector<8x32xf32>
    %562 = arith.mulf %553, %561 : vector<8x32xf32>
    %563 = arith.addf %560, %562 : vector<8x32xf32>
    %564 = arith.select %6, %543, %515 : vector<8x32xi1>, vector<8x32xf32>
    %565 = arith.select %16, %563, %516 : vector<8x32xi1>, vector<8x32xf32>
    %c7_i32_165 = arith.constant 7 : i32
    %566 = vector.broadcast %c7_i32_165 : i32 to vector<8x32xi32>
    %567 = arith.cmpi eq, %2, %566 : vector<8x32xi32>
    %568 = arith.select %567, %563, %519 : vector<8x32xi1>, vector<8x32xf32>
    %c16_166 = arith.constant 16 : index
    %c0_167 = arith.constant 0 : index
    %569 = vector.load %arg11[%c16_166, %c0_167] : memref<64x224xf32, #tpu.memory_space<vmem>>, vector<8x224xf32>
    %c40_168 = arith.constant 40 : index
    %c0_169 = arith.constant 0 : index
    %570 = vector.load %arg11[%c40_168, %c0_169] : memref<64x224xf32, #tpu.memory_space<vmem>>, vector<8x224xf32>
    %571 = tpu.concatenate %564, %565 in 1 : vector<8x32xf32>, vector<8x32xf32> -> vector<8x64xf32>
    %cst_170 = arith.constant dense<0.000000e+00> : vector<8x224xf32>
    %572 = tpu.matmul %571, %463, %cst_170 {dimension_numbers = #tpu.dot_dimension_numbers<[1], [0], [0], [1], [0, 0, 1, 1], [], []>} : vector<8x64xf32>, vector<64x224xf32>, vector<8x224xf32> -> vector<8x224xf32>
    %573 = vector.extract_strided_slice %569 {offsets = [0, 0], sizes = [8, 64], strides = [1, 1]} : vector<8x224xf32> to vector<8x64xf32>
    %574 = vector.extract_strided_slice %572 {offsets = [0, 0], sizes = [8, 64], strides = [1, 1]} : vector<8x224xf32> to vector<8x64xf32>
    %575 = arith.addf %573, %574 : vector<8x64xf32>
    %576 = arith.negf %575 : vector<8x64xf32>
    %577 = math.exp %576 : vector<8x64xf32>
    %cst_171 = arith.constant 1.000000e+00 : f32
    %578 = vector.broadcast %cst_171 : f32 to vector<8x64xf32>
    %579 = arith.addf %578, %577 : vector<8x64xf32>
    %580 = arith.divf %578, %579 : vector<8x64xf32>
    %581 = vector.extract_strided_slice %580 {offsets = [0, 0], sizes = [8, 32], strides = [1, 1]} : vector<8x64xf32> to vector<8x32xf32>
    %582 = vector.extract_strided_slice %580 {offsets = [0, 32], sizes = [8, 32], strides = [1, 1]} : vector<8x64xf32> to vector<8x32xf32>
    %583 = vector.extract_strided_slice %569 {offsets = [0, 64], sizes = [8, 32], strides = [1, 1]} : vector<8x224xf32> to vector<8x32xf32>
    %584 = vector.extract_strided_slice %572 {offsets = [0, 64], sizes = [8, 32], strides = [1, 1]} : vector<8x224xf32> to vector<8x32xf32>
    %585 = vector.broadcast %465 : vector<1x32xf32> to vector<8x32xf32>
    %586 = arith.addf %584, %585 : vector<8x32xf32>
    %587 = arith.mulf %581, %586 : vector<8x32xf32>
    %588 = arith.addf %583, %587 : vector<8x32xf32>
    %589 = math.tanh %588 : vector<8x32xf32>
    %590 = arith.subf %564, %589 : vector<8x32xf32>
    %591 = arith.mulf %582, %590 : vector<8x32xf32>
    %592 = arith.addf %589, %591 : vector<8x32xf32>
    %593 = vector.extract_strided_slice %570 {offsets = [0, 128], sizes = [8, 64], strides = [1, 1]} : vector<8x224xf32> to vector<8x64xf32>
    %594 = vector.extract_strided_slice %572 {offsets = [0, 128], sizes = [8, 64], strides = [1, 1]} : vector<8x224xf32> to vector<8x64xf32>
    %595 = arith.addf %593, %594 : vector<8x64xf32>
    %596 = arith.negf %595 : vector<8x64xf32>
    %597 = math.exp %596 : vector<8x64xf32>
    %cst_172 = arith.constant 1.000000e+00 : f32
    %598 = vector.broadcast %cst_172 : f32 to vector<8x64xf32>
    %599 = arith.addf %598, %597 : vector<8x64xf32>
    %600 = arith.divf %598, %599 : vector<8x64xf32>
    %601 = vector.extract_strided_slice %600 {offsets = [0, 0], sizes = [8, 32], strides = [1, 1]} : vector<8x64xf32> to vector<8x32xf32>
    %602 = vector.extract_strided_slice %600 {offsets = [0, 32], sizes = [8, 32], strides = [1, 1]} : vector<8x64xf32> to vector<8x32xf32>
    %603 = vector.extract_strided_slice %570 {offsets = [0, 192], sizes = [8, 32], strides = [1, 1]} : vector<8x224xf32> to vector<8x32xf32>
    %604 = vector.extract_strided_slice %572 {offsets = [0, 192], sizes = [8, 32], strides = [1, 1]} : vector<8x224xf32> to vector<8x32xf32>
    %605 = vector.broadcast %467 : vector<1x32xf32> to vector<8x32xf32>
    %606 = arith.addf %604, %605 : vector<8x32xf32>
    %607 = arith.mulf %601, %606 : vector<8x32xf32>
    %608 = arith.addf %603, %607 : vector<8x32xf32>
    %609 = math.tanh %608 : vector<8x32xf32>
    %610 = arith.subf %565, %609 : vector<8x32xf32>
    %611 = arith.mulf %602, %610 : vector<8x32xf32>
    %612 = arith.addf %609, %611 : vector<8x32xf32>
    %613 = arith.select %8, %592, %564 : vector<8x32xi1>, vector<8x32xf32>
    %614 = arith.select %14, %612, %565 : vector<8x32xi1>, vector<8x32xf32>
    %c6_i32_173 = arith.constant 6 : i32
    %615 = vector.broadcast %c6_i32_173 : i32 to vector<8x32xi32>
    %616 = arith.cmpi eq, %2, %615 : vector<8x32xi32>
    %617 = arith.select %616, %612, %568 : vector<8x32xi1>, vector<8x32xf32>
    %c24_174 = arith.constant 24 : index
    %c0_175 = arith.constant 0 : index
    %618 = vector.load %arg11[%c24_174, %c0_175] : memref<64x224xf32, #tpu.memory_space<vmem>>, vector<8x224xf32>
    %c32_176 = arith.constant 32 : index
    %c0_177 = arith.constant 0 : index
    %619 = vector.load %arg11[%c32_176, %c0_177] : memref<64x224xf32, #tpu.memory_space<vmem>>, vector<8x224xf32>
    %620 = tpu.concatenate %613, %614 in 1 : vector<8x32xf32>, vector<8x32xf32> -> vector<8x64xf32>
    %cst_178 = arith.constant dense<0.000000e+00> : vector<8x224xf32>
    %621 = tpu.matmul %620, %463, %cst_178 {dimension_numbers = #tpu.dot_dimension_numbers<[1], [0], [0], [1], [0, 0, 1, 1], [], []>} : vector<8x64xf32>, vector<64x224xf32>, vector<8x224xf32> -> vector<8x224xf32>
    %622 = vector.extract_strided_slice %618 {offsets = [0, 0], sizes = [8, 64], strides = [1, 1]} : vector<8x224xf32> to vector<8x64xf32>
    %623 = vector.extract_strided_slice %621 {offsets = [0, 0], sizes = [8, 64], strides = [1, 1]} : vector<8x224xf32> to vector<8x64xf32>
    %624 = arith.addf %622, %623 : vector<8x64xf32>
    %625 = arith.negf %624 : vector<8x64xf32>
    %626 = math.exp %625 : vector<8x64xf32>
    %cst_179 = arith.constant 1.000000e+00 : f32
    %627 = vector.broadcast %cst_179 : f32 to vector<8x64xf32>
    %628 = arith.addf %627, %626 : vector<8x64xf32>
    %629 = arith.divf %627, %628 : vector<8x64xf32>
    %630 = vector.extract_strided_slice %629 {offsets = [0, 0], sizes = [8, 32], strides = [1, 1]} : vector<8x64xf32> to vector<8x32xf32>
    %631 = vector.extract_strided_slice %629 {offsets = [0, 32], sizes = [8, 32], strides = [1, 1]} : vector<8x64xf32> to vector<8x32xf32>
    %632 = vector.extract_strided_slice %618 {offsets = [0, 64], sizes = [8, 32], strides = [1, 1]} : vector<8x224xf32> to vector<8x32xf32>
    %633 = vector.extract_strided_slice %621 {offsets = [0, 64], sizes = [8, 32], strides = [1, 1]} : vector<8x224xf32> to vector<8x32xf32>
    %634 = vector.broadcast %465 : vector<1x32xf32> to vector<8x32xf32>
    %635 = arith.addf %633, %634 : vector<8x32xf32>
    %636 = arith.mulf %630, %635 : vector<8x32xf32>
    %637 = arith.addf %632, %636 : vector<8x32xf32>
    %638 = math.tanh %637 : vector<8x32xf32>
    %639 = arith.subf %613, %638 : vector<8x32xf32>
    %640 = arith.mulf %631, %639 : vector<8x32xf32>
    %641 = arith.addf %638, %640 : vector<8x32xf32>
    %642 = vector.extract_strided_slice %619 {offsets = [0, 128], sizes = [8, 64], strides = [1, 1]} : vector<8x224xf32> to vector<8x64xf32>
    %643 = vector.extract_strided_slice %621 {offsets = [0, 128], sizes = [8, 64], strides = [1, 1]} : vector<8x224xf32> to vector<8x64xf32>
    %644 = arith.addf %642, %643 : vector<8x64xf32>
    %645 = arith.negf %644 : vector<8x64xf32>
    %646 = math.exp %645 : vector<8x64xf32>
    %cst_180 = arith.constant 1.000000e+00 : f32
    %647 = vector.broadcast %cst_180 : f32 to vector<8x64xf32>
    %648 = arith.addf %647, %646 : vector<8x64xf32>
    %649 = arith.divf %647, %648 : vector<8x64xf32>
    %650 = vector.extract_strided_slice %649 {offsets = [0, 0], sizes = [8, 32], strides = [1, 1]} : vector<8x64xf32> to vector<8x32xf32>
    %651 = vector.extract_strided_slice %649 {offsets = [0, 32], sizes = [8, 32], strides = [1, 1]} : vector<8x64xf32> to vector<8x32xf32>
    %652 = vector.extract_strided_slice %619 {offsets = [0, 192], sizes = [8, 32], strides = [1, 1]} : vector<8x224xf32> to vector<8x32xf32>
    %653 = vector.extract_strided_slice %621 {offsets = [0, 192], sizes = [8, 32], strides = [1, 1]} : vector<8x224xf32> to vector<8x32xf32>
    %654 = vector.broadcast %467 : vector<1x32xf32> to vector<8x32xf32>
    %655 = arith.addf %653, %654 : vector<8x32xf32>
    %656 = arith.mulf %650, %655 : vector<8x32xf32>
    %657 = arith.addf %652, %656 : vector<8x32xf32>
    %658 = math.tanh %657 : vector<8x32xf32>
    %659 = arith.subf %614, %658 : vector<8x32xf32>
    %660 = arith.mulf %651, %659 : vector<8x32xf32>
    %661 = arith.addf %658, %660 : vector<8x32xf32>
    %662 = arith.select %10, %641, %613 : vector<8x32xi1>, vector<8x32xf32>
    %663 = arith.select %12, %661, %614 : vector<8x32xi1>, vector<8x32xf32>
    %c5_i32_181 = arith.constant 5 : i32
    %664 = vector.broadcast %c5_i32_181 : i32 to vector<8x32xi32>
    %665 = arith.cmpi eq, %2, %664 : vector<8x32xi32>
    %666 = arith.select %665, %661, %617 : vector<8x32xi1>, vector<8x32xf32>
    %c32_182 = arith.constant 32 : index
    %c0_183 = arith.constant 0 : index
    %667 = vector.load %arg11[%c32_182, %c0_183] : memref<64x224xf32, #tpu.memory_space<vmem>>, vector<8x224xf32>
    %c24_184 = arith.constant 24 : index
    %c0_185 = arith.constant 0 : index
    %668 = vector.load %arg11[%c24_184, %c0_185] : memref<64x224xf32, #tpu.memory_space<vmem>>, vector<8x224xf32>
    %669 = tpu.concatenate %662, %663 in 1 : vector<8x32xf32>, vector<8x32xf32> -> vector<8x64xf32>
    %cst_186 = arith.constant dense<0.000000e+00> : vector<8x224xf32>
    %670 = tpu.matmul %669, %463, %cst_186 {dimension_numbers = #tpu.dot_dimension_numbers<[1], [0], [0], [1], [0, 0, 1, 1], [], []>} : vector<8x64xf32>, vector<64x224xf32>, vector<8x224xf32> -> vector<8x224xf32>
    %671 = vector.extract_strided_slice %667 {offsets = [0, 0], sizes = [8, 64], strides = [1, 1]} : vector<8x224xf32> to vector<8x64xf32>
    %672 = vector.extract_strided_slice %670 {offsets = [0, 0], sizes = [8, 64], strides = [1, 1]} : vector<8x224xf32> to vector<8x64xf32>
    %673 = arith.addf %671, %672 : vector<8x64xf32>
    %674 = arith.negf %673 : vector<8x64xf32>
    %675 = math.exp %674 : vector<8x64xf32>
    %cst_187 = arith.constant 1.000000e+00 : f32
    %676 = vector.broadcast %cst_187 : f32 to vector<8x64xf32>
    %677 = arith.addf %676, %675 : vector<8x64xf32>
    %678 = arith.divf %676, %677 : vector<8x64xf32>
    %679 = vector.extract_strided_slice %678 {offsets = [0, 0], sizes = [8, 32], strides = [1, 1]} : vector<8x64xf32> to vector<8x32xf32>
    %680 = vector.extract_strided_slice %678 {offsets = [0, 32], sizes = [8, 32], strides = [1, 1]} : vector<8x64xf32> to vector<8x32xf32>
    %681 = vector.extract_strided_slice %667 {offsets = [0, 64], sizes = [8, 32], strides = [1, 1]} : vector<8x224xf32> to vector<8x32xf32>
    %682 = vector.extract_strided_slice %670 {offsets = [0, 64], sizes = [8, 32], strides = [1, 1]} : vector<8x224xf32> to vector<8x32xf32>
    %683 = vector.broadcast %465 : vector<1x32xf32> to vector<8x32xf32>
    %684 = arith.addf %682, %683 : vector<8x32xf32>
    %685 = arith.mulf %679, %684 : vector<8x32xf32>
    %686 = arith.addf %681, %685 : vector<8x32xf32>
    %687 = math.tanh %686 : vector<8x32xf32>
    %688 = arith.subf %662, %687 : vector<8x32xf32>
    %689 = arith.mulf %680, %688 : vector<8x32xf32>
    %690 = arith.addf %687, %689 : vector<8x32xf32>
    %691 = vector.extract_strided_slice %668 {offsets = [0, 128], sizes = [8, 64], strides = [1, 1]} : vector<8x224xf32> to vector<8x64xf32>
    %692 = vector.extract_strided_slice %670 {offsets = [0, 128], sizes = [8, 64], strides = [1, 1]} : vector<8x224xf32> to vector<8x64xf32>
    %693 = arith.addf %691, %692 : vector<8x64xf32>
    %694 = arith.negf %693 : vector<8x64xf32>
    %695 = math.exp %694 : vector<8x64xf32>
    %cst_188 = arith.constant 1.000000e+00 : f32
    %696 = vector.broadcast %cst_188 : f32 to vector<8x64xf32>
    %697 = arith.addf %696, %695 : vector<8x64xf32>
    %698 = arith.divf %696, %697 : vector<8x64xf32>
    %699 = vector.extract_strided_slice %698 {offsets = [0, 0], sizes = [8, 32], strides = [1, 1]} : vector<8x64xf32> to vector<8x32xf32>
    %700 = vector.extract_strided_slice %698 {offsets = [0, 32], sizes = [8, 32], strides = [1, 1]} : vector<8x64xf32> to vector<8x32xf32>
    %701 = vector.extract_strided_slice %668 {offsets = [0, 192], sizes = [8, 32], strides = [1, 1]} : vector<8x224xf32> to vector<8x32xf32>
    %702 = vector.extract_strided_slice %670 {offsets = [0, 192], sizes = [8, 32], strides = [1, 1]} : vector<8x224xf32> to vector<8x32xf32>
    %703 = vector.broadcast %467 : vector<1x32xf32> to vector<8x32xf32>
    %704 = arith.addf %702, %703 : vector<8x32xf32>
    %705 = arith.mulf %699, %704 : vector<8x32xf32>
    %706 = arith.addf %701, %705 : vector<8x32xf32>
    %707 = math.tanh %706 : vector<8x32xf32>
    %708 = arith.subf %663, %707 : vector<8x32xf32>
    %709 = arith.mulf %700, %708 : vector<8x32xf32>
    %710 = arith.addf %707, %709 : vector<8x32xf32>
    %711 = arith.select %12, %690, %662 : vector<8x32xi1>, vector<8x32xf32>
    %712 = arith.select %10, %710, %663 : vector<8x32xi1>, vector<8x32xf32>
    %c4_i32_189 = arith.constant 4 : i32
    %713 = vector.broadcast %c4_i32_189 : i32 to vector<8x32xi32>
    %714 = arith.cmpi eq, %2, %713 : vector<8x32xi32>
    %715 = arith.select %714, %710, %666 : vector<8x32xi1>, vector<8x32xf32>
    %c40_190 = arith.constant 40 : index
    %c0_191 = arith.constant 0 : index
    %716 = vector.load %arg11[%c40_190, %c0_191] : memref<64x224xf32, #tpu.memory_space<vmem>>, vector<8x224xf32>
    %c16_192 = arith.constant 16 : index
    %c0_193 = arith.constant 0 : index
    %717 = vector.load %arg11[%c16_192, %c0_193] : memref<64x224xf32, #tpu.memory_space<vmem>>, vector<8x224xf32>
    %718 = tpu.concatenate %711, %712 in 1 : vector<8x32xf32>, vector<8x32xf32> -> vector<8x64xf32>
    %cst_194 = arith.constant dense<0.000000e+00> : vector<8x224xf32>
    %719 = tpu.matmul %718, %463, %cst_194 {dimension_numbers = #tpu.dot_dimension_numbers<[1], [0], [0], [1], [0, 0, 1, 1], [], []>} : vector<8x64xf32>, vector<64x224xf32>, vector<8x224xf32> -> vector<8x224xf32>
    %720 = vector.extract_strided_slice %716 {offsets = [0, 0], sizes = [8, 64], strides = [1, 1]} : vector<8x224xf32> to vector<8x64xf32>
    %721 = vector.extract_strided_slice %719 {offsets = [0, 0], sizes = [8, 64], strides = [1, 1]} : vector<8x224xf32> to vector<8x64xf32>
    %722 = arith.addf %720, %721 : vector<8x64xf32>
    %723 = arith.negf %722 : vector<8x64xf32>
    %724 = math.exp %723 : vector<8x64xf32>
    %cst_195 = arith.constant 1.000000e+00 : f32
    %725 = vector.broadcast %cst_195 : f32 to vector<8x64xf32>
    %726 = arith.addf %725, %724 : vector<8x64xf32>
    %727 = arith.divf %725, %726 : vector<8x64xf32>
    %728 = vector.extract_strided_slice %727 {offsets = [0, 0], sizes = [8, 32], strides = [1, 1]} : vector<8x64xf32> to vector<8x32xf32>
    %729 = vector.extract_strided_slice %727 {offsets = [0, 32], sizes = [8, 32], strides = [1, 1]} : vector<8x64xf32> to vector<8x32xf32>
    %730 = vector.extract_strided_slice %716 {offsets = [0, 64], sizes = [8, 32], strides = [1, 1]} : vector<8x224xf32> to vector<8x32xf32>
    %731 = vector.extract_strided_slice %719 {offsets = [0, 64], sizes = [8, 32], strides = [1, 1]} : vector<8x224xf32> to vector<8x32xf32>
    %732 = vector.broadcast %465 : vector<1x32xf32> to vector<8x32xf32>
    %733 = arith.addf %731, %732 : vector<8x32xf32>
    %734 = arith.mulf %728, %733 : vector<8x32xf32>
    %735 = arith.addf %730, %734 : vector<8x32xf32>
    %736 = math.tanh %735 : vector<8x32xf32>
    %737 = arith.subf %711, %736 : vector<8x32xf32>
    %738 = arith.mulf %729, %737 : vector<8x32xf32>
    %739 = arith.addf %736, %738 : vector<8x32xf32>
    %740 = vector.extract_strided_slice %717 {offsets = [0, 128], sizes = [8, 64], strides = [1, 1]} : vector<8x224xf32> to vector<8x64xf32>
    %741 = vector.extract_strided_slice %719 {offsets = [0, 128], sizes = [8, 64], strides = [1, 1]} : vector<8x224xf32> to vector<8x64xf32>
    %742 = arith.addf %740, %741 : vector<8x64xf32>
    %743 = arith.negf %742 : vector<8x64xf32>
    %744 = math.exp %743 : vector<8x64xf32>
    %cst_196 = arith.constant 1.000000e+00 : f32
    %745 = vector.broadcast %cst_196 : f32 to vector<8x64xf32>
    %746 = arith.addf %745, %744 : vector<8x64xf32>
    %747 = arith.divf %745, %746 : vector<8x64xf32>
    %748 = vector.extract_strided_slice %747 {offsets = [0, 0], sizes = [8, 32], strides = [1, 1]} : vector<8x64xf32> to vector<8x32xf32>
    %749 = vector.extract_strided_slice %747 {offsets = [0, 32], sizes = [8, 32], strides = [1, 1]} : vector<8x64xf32> to vector<8x32xf32>
    %750 = vector.extract_strided_slice %717 {offsets = [0, 192], sizes = [8, 32], strides = [1, 1]} : vector<8x224xf32> to vector<8x32xf32>
    %751 = vector.extract_strided_slice %719 {offsets = [0, 192], sizes = [8, 32], strides = [1, 1]} : vector<8x224xf32> to vector<8x32xf32>
    %752 = vector.broadcast %467 : vector<1x32xf32> to vector<8x32xf32>
    %753 = arith.addf %751, %752 : vector<8x32xf32>
    %754 = arith.mulf %748, %753 : vector<8x32xf32>
    %755 = arith.addf %750, %754 : vector<8x32xf32>
    %756 = math.tanh %755 : vector<8x32xf32>
    %757 = arith.subf %712, %756 : vector<8x32xf32>
    %758 = arith.mulf %749, %757 : vector<8x32xf32>
    %759 = arith.addf %756, %758 : vector<8x32xf32>
    %760 = arith.select %14, %739, %711 : vector<8x32xi1>, vector<8x32xf32>
    %761 = arith.select %8, %759, %712 : vector<8x32xi1>, vector<8x32xf32>
    %c3_i32_197 = arith.constant 3 : i32
    %762 = vector.broadcast %c3_i32_197 : i32 to vector<8x32xi32>
    %763 = arith.cmpi eq, %2, %762 : vector<8x32xi32>
    %764 = arith.select %763, %759, %715 : vector<8x32xi1>, vector<8x32xf32>
    %c48_198 = arith.constant 48 : index
    %c0_199 = arith.constant 0 : index
    %765 = vector.load %arg11[%c48_198, %c0_199] : memref<64x224xf32, #tpu.memory_space<vmem>>, vector<8x224xf32>
    %c8_200 = arith.constant 8 : index
    %c0_201 = arith.constant 0 : index
    %766 = vector.load %arg11[%c8_200, %c0_201] : memref<64x224xf32, #tpu.memory_space<vmem>>, vector<8x224xf32>
    %767 = tpu.concatenate %760, %761 in 1 : vector<8x32xf32>, vector<8x32xf32> -> vector<8x64xf32>
    %cst_202 = arith.constant dense<0.000000e+00> : vector<8x224xf32>
    %768 = tpu.matmul %767, %463, %cst_202 {dimension_numbers = #tpu.dot_dimension_numbers<[1], [0], [0], [1], [0, 0, 1, 1], [], []>} : vector<8x64xf32>, vector<64x224xf32>, vector<8x224xf32> -> vector<8x224xf32>
    %769 = vector.extract_strided_slice %765 {offsets = [0, 0], sizes = [8, 64], strides = [1, 1]} : vector<8x224xf32> to vector<8x64xf32>
    %770 = vector.extract_strided_slice %768 {offsets = [0, 0], sizes = [8, 64], strides = [1, 1]} : vector<8x224xf32> to vector<8x64xf32>
    %771 = arith.addf %769, %770 : vector<8x64xf32>
    %772 = arith.negf %771 : vector<8x64xf32>
    %773 = math.exp %772 : vector<8x64xf32>
    %cst_203 = arith.constant 1.000000e+00 : f32
    %774 = vector.broadcast %cst_203 : f32 to vector<8x64xf32>
    %775 = arith.addf %774, %773 : vector<8x64xf32>
    %776 = arith.divf %774, %775 : vector<8x64xf32>
    %777 = vector.extract_strided_slice %776 {offsets = [0, 0], sizes = [8, 32], strides = [1, 1]} : vector<8x64xf32> to vector<8x32xf32>
    %778 = vector.extract_strided_slice %776 {offsets = [0, 32], sizes = [8, 32], strides = [1, 1]} : vector<8x64xf32> to vector<8x32xf32>
    %779 = vector.extract_strided_slice %765 {offsets = [0, 64], sizes = [8, 32], strides = [1, 1]} : vector<8x224xf32> to vector<8x32xf32>
    %780 = vector.extract_strided_slice %768 {offsets = [0, 64], sizes = [8, 32], strides = [1, 1]} : vector<8x224xf32> to vector<8x32xf32>
    %781 = vector.broadcast %465 : vector<1x32xf32> to vector<8x32xf32>
    %782 = arith.addf %780, %781 : vector<8x32xf32>
    %783 = arith.mulf %777, %782 : vector<8x32xf32>
    %784 = arith.addf %779, %783 : vector<8x32xf32>
    %785 = math.tanh %784 : vector<8x32xf32>
    %786 = arith.subf %760, %785 : vector<8x32xf32>
    %787 = arith.mulf %778, %786 : vector<8x32xf32>
    %788 = arith.addf %785, %787 : vector<8x32xf32>
    %789 = vector.extract_strided_slice %766 {offsets = [0, 128], sizes = [8, 64], strides = [1, 1]} : vector<8x224xf32> to vector<8x64xf32>
    %790 = vector.extract_strided_slice %768 {offsets = [0, 128], sizes = [8, 64], strides = [1, 1]} : vector<8x224xf32> to vector<8x64xf32>
    %791 = arith.addf %789, %790 : vector<8x64xf32>
    %792 = arith.negf %791 : vector<8x64xf32>
    %793 = math.exp %792 : vector<8x64xf32>
    %cst_204 = arith.constant 1.000000e+00 : f32
    %794 = vector.broadcast %cst_204 : f32 to vector<8x64xf32>
    %795 = arith.addf %794, %793 : vector<8x64xf32>
    %796 = arith.divf %794, %795 : vector<8x64xf32>
    %797 = vector.extract_strided_slice %796 {offsets = [0, 0], sizes = [8, 32], strides = [1, 1]} : vector<8x64xf32> to vector<8x32xf32>
    %798 = vector.extract_strided_slice %796 {offsets = [0, 32], sizes = [8, 32], strides = [1, 1]} : vector<8x64xf32> to vector<8x32xf32>
    %799 = vector.extract_strided_slice %766 {offsets = [0, 192], sizes = [8, 32], strides = [1, 1]} : vector<8x224xf32> to vector<8x32xf32>
    %800 = vector.extract_strided_slice %768 {offsets = [0, 192], sizes = [8, 32], strides = [1, 1]} : vector<8x224xf32> to vector<8x32xf32>
    %801 = vector.broadcast %467 : vector<1x32xf32> to vector<8x32xf32>
    %802 = arith.addf %800, %801 : vector<8x32xf32>
    %803 = arith.mulf %797, %802 : vector<8x32xf32>
    %804 = arith.addf %799, %803 : vector<8x32xf32>
    %805 = math.tanh %804 : vector<8x32xf32>
    %806 = arith.subf %761, %805 : vector<8x32xf32>
    %807 = arith.mulf %798, %806 : vector<8x32xf32>
    %808 = arith.addf %805, %807 : vector<8x32xf32>
    %809 = arith.select %16, %788, %760 : vector<8x32xi1>, vector<8x32xf32>
    %810 = arith.select %6, %808, %761 : vector<8x32xi1>, vector<8x32xf32>
    %c2_i32_205 = arith.constant 2 : i32
    %811 = vector.broadcast %c2_i32_205 : i32 to vector<8x32xi32>
    %812 = arith.cmpi eq, %2, %811 : vector<8x32xi32>
    %813 = arith.select %812, %808, %764 : vector<8x32xi1>, vector<8x32xf32>
    %c56_206 = arith.constant 56 : index
    %c0_207 = arith.constant 0 : index
    %814 = vector.load %arg11[%c56_206, %c0_207] : memref<64x224xf32, #tpu.memory_space<vmem>>, vector<8x224xf32>
    %c0_208 = arith.constant 0 : index
    %c0_209 = arith.constant 0 : index
    %815 = vector.load %arg11[%c0_208, %c0_209] : memref<64x224xf32, #tpu.memory_space<vmem>>, vector<8x224xf32>
    %816 = tpu.concatenate %809, %810 in 1 : vector<8x32xf32>, vector<8x32xf32> -> vector<8x64xf32>
    %cst_210 = arith.constant dense<0.000000e+00> : vector<8x224xf32>
    %817 = tpu.matmul %816, %463, %cst_210 {dimension_numbers = #tpu.dot_dimension_numbers<[1], [0], [0], [1], [0, 0, 1, 1], [], []>} : vector<8x64xf32>, vector<64x224xf32>, vector<8x224xf32> -> vector<8x224xf32>
    %818 = vector.extract_strided_slice %814 {offsets = [0, 0], sizes = [8, 64], strides = [1, 1]} : vector<8x224xf32> to vector<8x64xf32>
    %819 = vector.extract_strided_slice %817 {offsets = [0, 0], sizes = [8, 64], strides = [1, 1]} : vector<8x224xf32> to vector<8x64xf32>
    %820 = arith.addf %818, %819 : vector<8x64xf32>
    %821 = arith.negf %820 : vector<8x64xf32>
    %822 = math.exp %821 : vector<8x64xf32>
    %cst_211 = arith.constant 1.000000e+00 : f32
    %823 = vector.broadcast %cst_211 : f32 to vector<8x64xf32>
    %824 = arith.addf %823, %822 : vector<8x64xf32>
    %825 = arith.divf %823, %824 : vector<8x64xf32>
    %826 = vector.extract_strided_slice %825 {offsets = [0, 0], sizes = [8, 32], strides = [1, 1]} : vector<8x64xf32> to vector<8x32xf32>
    %827 = vector.extract_strided_slice %825 {offsets = [0, 32], sizes = [8, 32], strides = [1, 1]} : vector<8x64xf32> to vector<8x32xf32>
    %828 = vector.extract_strided_slice %814 {offsets = [0, 64], sizes = [8, 32], strides = [1, 1]} : vector<8x224xf32> to vector<8x32xf32>
    %829 = vector.extract_strided_slice %817 {offsets = [0, 64], sizes = [8, 32], strides = [1, 1]} : vector<8x224xf32> to vector<8x32xf32>
    %830 = vector.broadcast %465 : vector<1x32xf32> to vector<8x32xf32>
    %831 = arith.addf %829, %830 : vector<8x32xf32>
    %832 = arith.mulf %826, %831 : vector<8x32xf32>
    %833 = arith.addf %828, %832 : vector<8x32xf32>
    %834 = math.tanh %833 : vector<8x32xf32>
    %835 = arith.subf %809, %834 : vector<8x32xf32>
    %836 = arith.mulf %827, %835 : vector<8x32xf32>
    %837 = arith.addf %834, %836 : vector<8x32xf32>
    %838 = vector.extract_strided_slice %815 {offsets = [0, 128], sizes = [8, 64], strides = [1, 1]} : vector<8x224xf32> to vector<8x64xf32>
    %839 = vector.extract_strided_slice %817 {offsets = [0, 128], sizes = [8, 64], strides = [1, 1]} : vector<8x224xf32> to vector<8x64xf32>
    %840 = arith.addf %838, %839 : vector<8x64xf32>
    %841 = arith.negf %840 : vector<8x64xf32>
    %842 = math.exp %841 : vector<8x64xf32>
    %cst_212 = arith.constant 1.000000e+00 : f32
    %843 = vector.broadcast %cst_212 : f32 to vector<8x64xf32>
    %844 = arith.addf %843, %842 : vector<8x64xf32>
    %845 = arith.divf %843, %844 : vector<8x64xf32>
    %846 = vector.extract_strided_slice %845 {offsets = [0, 0], sizes = [8, 32], strides = [1, 1]} : vector<8x64xf32> to vector<8x32xf32>
    %847 = vector.extract_strided_slice %845 {offsets = [0, 32], sizes = [8, 32], strides = [1, 1]} : vector<8x64xf32> to vector<8x32xf32>
    %848 = vector.extract_strided_slice %815 {offsets = [0, 192], sizes = [8, 32], strides = [1, 1]} : vector<8x224xf32> to vector<8x32xf32>
    %849 = vector.extract_strided_slice %817 {offsets = [0, 192], sizes = [8, 32], strides = [1, 1]} : vector<8x224xf32> to vector<8x32xf32>
    %850 = vector.broadcast %467 : vector<1x32xf32> to vector<8x32xf32>
    %851 = arith.addf %849, %850 : vector<8x32xf32>
    %852 = arith.mulf %846, %851 : vector<8x32xf32>
    %853 = arith.addf %848, %852 : vector<8x32xf32>
    %854 = math.tanh %853 : vector<8x32xf32>
    %855 = arith.subf %810, %854 : vector<8x32xf32>
    %856 = arith.mulf %847, %855 : vector<8x32xf32>
    %857 = arith.addf %854, %856 : vector<8x32xf32>
    %858 = arith.select %18, %837, %809 : vector<8x32xi1>, vector<8x32xf32>
    %c1_i32_213 = arith.constant 1 : i32
    %859 = vector.broadcast %c1_i32_213 : i32 to vector<8x32xi32>
    %860 = arith.cmpi eq, %2, %859 : vector<8x32xi32>
    %861 = arith.select %860, %857, %813 : vector<8x32xi1>, vector<8x32xf32>
    %c0_214 = arith.constant 0 : index
    %c0_215 = arith.constant 0 : index
    %c0_216 = arith.constant 0 : index
    %862 = vector.load %arg8[%c0_214, %c0_215, %c0_216] : memref<2x32x32xf32, #tpu.memory_space<vmem>>, vector<1x32x32xf32>
    %863 = vector.shape_cast %862 : vector<1x32x32xf32> to vector<32x32xf32>
    %cst_217 = arith.constant dense<0.000000e+00> : vector<8x32xf32>
    %864 = tpu.matmul %858, %863, %cst_217 {dimension_numbers = #tpu.dot_dimension_numbers<[1], [0], [0], [1], [0, 0, 1, 1], [], []>} : vector<8x32xf32>, vector<32x32xf32>, vector<8x32xf32> -> vector<8x32xf32>
    %c1_218 = arith.constant 1 : index
    %c0_219 = arith.constant 0 : index
    %c0_220 = arith.constant 0 : index
    %865 = vector.load %arg8[%c1_218, %c0_219, %c0_220] : memref<2x32x32xf32, #tpu.memory_space<vmem>>, vector<1x32x32xf32>
    %866 = vector.shape_cast %865 : vector<1x32x32xf32> to vector<32x32xf32>
    %cst_221 = arith.constant dense<0.000000e+00> : vector<8x32xf32>
    %867 = tpu.matmul %861, %866, %cst_221 {dimension_numbers = #tpu.dot_dimension_numbers<[1], [0], [0], [1], [0, 0, 1, 1], [], []>} : vector<8x32xf32>, vector<32x32xf32>, vector<8x32xf32> -> vector<8x32xf32>
    %868 = arith.addf %864, %867 : vector<8x32xf32>
    %c0_222 = arith.constant 0 : index
    %c0_223 = arith.constant 0 : index
    %869 = vector.load %arg9[%c0_222, %c0_223] : memref<1x32xf32, #tpu.memory_space<vmem>>, vector<1x32xf32>
    %870 = vector.broadcast %869 : vector<1x32xf32> to vector<8x32xf32>
    %871 = arith.addf %868, %870 : vector<8x32xf32>
    %872 = vector.extract_strided_slice %871 {offsets = [0, 0], sizes = [2, 32], strides = [1, 1]} : vector<8x32xf32> to vector<2x32xf32>
    %c0_224 = arith.constant 0 : index
    %c0_225 = arith.constant 0 : index
    %873 = vector.load %arg10[%c0_224, %c0_225] : memref<2x32xf32, #tpu.memory_space<vmem>>, vector<2x32xf32>
    tpu.vector_store %arg10[%c0_224, %c0_225], %872 {strides = array<i32>} : memref<2x32xf32, #tpu.memory_space<vmem>>, vector<2x32xf32>,
    return
  }
}

</mosaic_0001>

<llo_original>
// kernel: tpu_custom_call.1
$region0: #{tpu_custom_call.1}
  #allocation0 [shape = 'u32[]', space=smem, size = 0x4, offset = 0x4, fixed_abs, tag = 'smem constant byte address 0x4 - core index']
  #allocation1 [shape = 'u32[144,128]{1,0:T(1,128)}', space=vmem, size = 0x12000, scoped, tag = 'internal scratch']
  #allocation2 [shape = 'f32[64,224]{1,0:T(8,128)}', space=vmem, size = 0x10000, scoped, tag = 'scratch operand']
  #allocation3 [shape = 'f32[64,32]{1,0:T(8,128)}', space=vmem, size = 0x8000, scoped, tag = 'scratch operand']
  #allocation4 [shape = 'f32[64,32]{1,0:T(8,128)}', space=vmem, size = 0x8000, scoped, tag = 'scratch operand']
  %s0 = inlined_call_operand.vmem [shape: s32[8,1], index: 0, kind: input, shape index: {}]
  %s1 = inlined_call_operand.vmem [shape: f32[64,16], index: 1, kind: input, shape index: {}]
  %s2 = inlined_call_operand.vmem [shape: f32[16,224], index: 2, kind: input, shape index: {}]
  %s3 = inlined_call_operand.vmem [shape: f32[1,224], index: 3, kind: input, shape index: {}]
  %s4 = inlined_call_operand.hbm [shape: f32[1,2,32,224], index: 4, kind: input, shape index: {}]
  %s5 = inlined_call_operand.vmem [shape: f32[1,1,224], index: 5, kind: input, shape index: {}]
  %s6 = inlined_call_operand.hbm [shape: f32[2,64,224], index: 6, kind: input, shape index: {}]
  %s7 = inlined_call_operand.vmem [shape: f32[2,2,1,32], index: 7, kind: input, shape index: {}]
  %s8 = inlined_call_operand.vmem [shape: f32[2,32,32], index: 8, kind: input, shape index: {}]
  %s9 = inlined_call_operand.vmem [shape: f32[1,32], index: 9, kind: input, shape index: {}]
  %s10 = inlined_call_operand.hbm [shape: f32[2,32], index: 10, kind: output, shape index: {}]
  %s11 = sld [smem:[#allocation0]]
  $region58: #{tpu_custom_call.1} parent=0
    _
  %s13 = ssub.s32 1, %s11
  %s14 = scalar_select 0, %s13, %s11
  $region1: #{tpu_custom_call.1} parent=0
    #allocation5 [shape = 'u8[65536]{0}', space=vmem, size = 0x10000, scoped, tag = 'input window, operand 4, single buffered']
    #allocation6 [shape = 's32[1]{0}', space=sflag, size = 0x4, scoped, tag = 'scoped memory for tpu_custom_call.1']
    #allocation7 [shape = 's32[1]{0}', space=sflag, size = 0x4, scoped, tag = 'scoped memory for tpu_custom_call.1']
    #allocation8 [shape = 'u8[131072]{0}', space=vmem, size = 0x20000, scoped, tag = 'input window, operand 6, single buffered']
    #allocation9 [shape = 's32[1]{0}', space=sflag, size = 0x4, scoped, tag = 'scoped memory for tpu_custom_call.1']
    #allocation10 [shape = 'u8[1024]{0}', space=vmem, size = 0x400, scoped, tag = 'output window, operand 0, single buffered']
    %15 = vsyncpa [#allocation6], 0
    %16 = vsyncpa [#allocation9], 0
    %17 = vsyncpa [#allocation7], 0
    // Predicated region
    $region2: #{tpu_custom_call.1} parent=1 // pred_check
      _
    $region3: #{tpu_custom_call.1} parent=1 // pred_check_branch
      %19 = sbr.rel (0) target = $region5
    $region4: #{tpu_custom_call.1} parent=1 // pred_region
      _
    $region5: #{tpu_custom_call.1} parent=1 // pred_fallthru
      _
    // Predicated region
    $region6: #{tpu_custom_call.1} parent=1 // pred_check
      _
    $region7: #{tpu_custom_call.1} parent=1 // pred_check_branch
      %21 = sbr.rel (0) target = $region9
    $region8: #{tpu_custom_call.1} parent=1 // pred_region
      _
    $region9: #{tpu_custom_call.1} parent=1 // pred_fallthru
      _
    // Predicated region
    $region10: #{tpu_custom_call.1} parent=1 // pred_check
      _
    $region11: #{tpu_custom_call.1} parent=1 // pred_check_branch
      %23 = sbr.rel (0) target = $region13
    $region12: #{tpu_custom_call.1} parent=1 // pred_region
      _
    $region13: #{tpu_custom_call.1} parent=1 // pred_fallthru
      _
    // Predicated region
    $region14: #{tpu_custom_call.1} parent=1 // pred_check
      _
    $region15: #{tpu_custom_call.1} parent=1 // pred_check_branch
      %25 = sbr.rel (0) target = $region17
    $region16: #{tpu_custom_call.1} parent=1 // pred_region
      _
    $region17: #{tpu_custom_call.1} parent=1 // pred_fallthru
      _
    // Predicated region
    $region18: #{tpu_custom_call.1} parent=1 // pred_check
      _
    $region19: #{tpu_custom_call.1} parent=1 // pred_check_branch
      %27 = sbr.rel (0) target = $region21
    $region20: #{tpu_custom_call.1} parent=1 // pred_region
      %s29 = ssub.s32 2048, 2048
      %30 = vsyncadd [#allocation6], %s29
      %s31 = sshll.u32 [#allocation5], 4
      %s32 = int_to_ptr.vmem [resolvable:$true] %s31
      %37 = dma.hbm_to_vmem [thread:$0]  %s4, 2048, %s32, [#allocation6], 256, 256, 16
    $region21: #{tpu_custom_call.1} parent=1 // pred_fallthru
      _
    // Predicated region
    $region22: #{tpu_custom_call.1} parent=1 // pred_check
      _
    $region23: #{tpu_custom_call.1} parent=1 // pred_check_branch
      %39 = sbr.rel (0) target = $region25
    $region24: #{tpu_custom_call.1} parent=1 // pred_region
      _
    $region25: #{tpu_custom_call.1} parent=1 // pred_fallthru
      _
    // Predicated region
    $region26: #{tpu_custom_call.1} parent=1 // pred_check
      _
    $region27: #{tpu_custom_call.1} parent=1 // pred_check_branch
      %41 = sbr.rel (0) target = $region29
    $region28: #{tpu_custom_call.1} parent=1 // pred_region
      %s43 = ssub.s32 4096, 4096
      %44 = vsyncadd [#allocation9], %s43
      %s45 = sshll.u32 [#allocation8], 4
      %s46 = int_to_ptr.vmem [resolvable:$true] %s45
      %51 = dma.hbm_to_vmem [thread:$0]  %s6, 4096, %s46, [#allocation9], 256, 256, 16
    $region29: #{tpu_custom_call.1} parent=1 // pred_fallthru
      _
    // Predicated region
    $region30: #{tpu_custom_call.1} parent=1 // pred_check
      _
    $region31: #{tpu_custom_call.1} parent=1 // pred_check_branch
      %53 = sbr.rel (0) target = $region33
    $region32: #{tpu_custom_call.1} parent=1 // pred_region
      _
    $region33: #{tpu_custom_call.1} parent=1 // pred_fallthru
      _
    // Predicated region
    $region34: #{tpu_custom_call.1} parent=1 // pred_check
      _
    $region35: #{tpu_custom_call.1} parent=1 // pred_check_branch
      %55 = sbr.rel (0) target = $region37
    $region36: #{tpu_custom_call.1} parent=1 // pred_region
      _
    $region37: #{tpu_custom_call.1} parent=1 // pred_fallthru
      _
    // Predicated region
    $region38: #{tpu_custom_call.1} parent=1 // pred_check
      _
    $region39: #{tpu_custom_call.1} parent=1 // pred_check_branch
      %57 = sbr.rel (0) target = $region41
    $region40: #{tpu_custom_call.1} parent=1 // pred_region
      _
    $region41: #{tpu_custom_call.1} parent=1 // pred_fallthru
      _
    // Predicated region
    $region42: #{tpu_custom_call.1} parent=1 // pred_check
      _
    $region43: #{tpu_custom_call.1} parent=1 // pred_check_branch
      %59 = sbr.rel (0) target = $region45
    $region44: #{tpu_custom_call.1} parent=1 // pred_region
      %60 = dma.done [#allocation6], 2048
    $region45: #{tpu_custom_call.1} parent=1 // pred_fallthru
      _
    // Predicated region
    $region46: #{tpu_custom_call.1} parent=1 // pred_check
      _
    $region47: #{tpu_custom_call.1} parent=1 // pred_check_branch
      %62 = sbr.rel (0) target = $region49
    $region48: #{tpu_custom_call.1} parent=1 // pred_region
      %63 = dma.done [#allocation9], 4096
    $region49: #{tpu_custom_call.1} parent=1 // pred_fallthru
      _
    %v64 = vld [vmem:[%s0] sm:$0xff]
    %65 = vset.pattern.permute.xlu0 0
    %66 = vperm.xlu0 %65, %v64
    %v67 = vpop.permute.xlu0 %66
    %vm68 = vcmp.gt.s32.totalorder %v67, 0
    %vm69 = vcmp.gt.s32.totalorder %v67, 1
    %vm70 = vcmp.gt.s32.totalorder %v67, 2
    %vm71 = vcmp.gt.s32.totalorder %v67, 3
    %vm72 = vcmp.gt.s32.totalorder %v67, 4
    %vm73 = vcmp.gt.s32.totalorder %v67, 5
    %vm74 = vcmp.gt.s32.totalorder %v67, 6
    %vm75 = vcmp.gt.s32.totalorder %v67, 7
    %v76 = vld [vmem:[%s1] sm:$0xff]
    %v77 = vld [vmem:[%s1 + $0x8] sm:$0xff]
    %v78 = vld [vmem:[%s1 + $0x10] sm:$0xff]
    %v79 = vld [vmem:[%s1 + $0x18] sm:$0xff]
    %v80 = vld [vmem:[%s1 + $0x20] sm:$0xff]
    %v81 = vld [vmem:[%s1 + $0x28] sm:$0xff]
    %v82 = vld [vmem:[%s1 + $0x30] sm:$0xff]
    %v83 = vld [vmem:[%s1 + $0x38] sm:$0xff]
    %v84 = vld [vmem:[%s2] sm:$0xff]
    %v85 = vld [vmem:[%s2 + $0x8] sm:$0xff]
    %v86 = vld [vmem:[%s2 + $0x10] sm:$0xff]
    %v87 = vld [vmem:[%s2 + $0x18] sm:$0xff]
    %v88 = vld [vmem:[%s3] sm:$0x3]
    %v90 = vlaneseq
    %v91 = vshrl.u32 %v90, 7
    %v92 = vsub.s32 0, %v91
    %v93 = vrot.slane %v88, %v92
    %v94 = vlaneseq
    %v95 = vshrl.u32 %v94, 7
    %v96 = vsub.s32 1, %v95
    %v97 = vrot.slane %v88, %v96
    %vm100 = vcmask 130048
    %v102 = vsel %vm100, %v76, 0
    %v105 = vsel %vm100, %v77, 0
    %v108 = vsel %vm100, %v78, 0
    %v111 = vsel %vm100, %v79, 0
    %v114 = vsel %vm100, %v80, 0
    %v117 = vsel %vm100, %v81, 0
    %v120 = vsel %vm100, %v82, 0
    %v123 = vsel %vm100, %v83, 0
    %125 = vmatprep.subr.mxu0 %v85
    %126 = vmatpush1.msra.mxu0 %v84
    %127 = vmatprep.subr.mxu0 %v87
    %128 = vmatpush1.msra.mxu0 %v86
    %129 = vmatprep.subr.mxu0 0.0
    %130 = vmatpush1.msra.mxu0 0.0
    %131 = vmatprep.subr.mxu0 0.0
    %132 = vmatpush1.msra.mxu0 0.0
    %133 = vmatprep.subr.mxu0 0.0
    %134 = vmatpush1.msra.mxu0 0.0
    %135 = vmatprep.subr.mxu0 0.0
    %136 = vmatpush1.msra.mxu0 0.0
    %137 = vmatprep.subr.mxu0 0.0
    %138 = vmatpush1.msra.mxu0 0.0
    %139 = vmatprep.subr.mxu0 0.0
    %140 = vmatpush1.msra.mxu0 0.0
    %141 = vmatprep.subr.mxu0 0.0
    %142 = vmatpush1.msra.mxu0 0.0
    %143 = vmatprep.subr.mxu0 0.0
    %144 = vmatpush1.msra.mxu0 0.0
    %145 = vmatprep.subr.mxu0 0.0
    %146 = vmatpush1.msra.mxu0 0.0
    %147 = vmatprep.subr.mxu0 0.0
    %148 = vmatpush1.msra.mxu0 0.0
    %149 = vmatprep.subr.mxu0 0.0
    %150 = vmatpush1.msra.mxu0 0.0
    %151 = vmatprep.subr.mxu0 0.0
    %152 = vmatpush1.msra.mxu0 0.0
    %153 = vmatprep.subr.mxu0 0.0
    %154 = vmatpush1.msra.mxu0 0.0
    %155 = vmatprep.subr.mxu0 0.0
    %156 = vmatpush1.msra.mxu0 0.0
    %157 = vmatprep.subr.mxu0 0.0
    %158 = vmatpush1.msra.mxu0 0.0
    %159 = vmatprep.subr.mxu0 0.0
    %160 = vmatpush1.msra.mxu0 0.0
    %161 = vmatprep.subr.mxu0 0.0
    %162 = vmatpush1.msra.mxu0 0.0
    %163 = vmatprep.subr.mxu0 0.0
    %164 = vmatpush1.msra.mxu0 0.0
    %165 = vmatprep.subr.mxu0 0.0
    %166 = vmatpush1.msra.mxu0 0.0
    %167 = vmatprep.subr.mxu0 0.0
    %168 = vmatpush1.msra.mxu0 0.0
    %169 = vmatprep.subr.mxu0 0.0
    %170 = vmatpush1.msra.mxu0 0.0
    %171 = vmatprep.subr.mxu0 0.0
    %172 = vmatpush1.msra.mxu0 0.0
    %173 = vmatprep.subr.mxu0 0.0
    %174 = vmatpush1.msra.mxu0 0.0
    %175 = vmatprep.subr.mxu0 0.0
    %176 = vmatpush1.msra.mxu0 0.0
    %177 = vmatprep.subr.mxu0 0.0
    %178 = vmatpush1.msra.mxu0 0.0
    %179 = vmatprep.subr.mxu0 0.0
    %180 = vmatpush1.msra.mxu0 0.0
    %181 = vmatprep.subr.mxu0 0.0
    %182 = vmatpush1.msra.mxu0 0.0
    %183 = vmatprep.subr.mxu0 0.0
    %184 = vmatpush1.msra.mxu0 0.0
    %185 = vmatprep.subr.mxu0 0.0
    %186 = vmatpush1.msra.mxu0 0.0
    %187 = vmatprep.subr.mxu0 0.0
    %188 = vmatpush1.msra.mxu0 0.0
    %189 = vmatprep.mubr.f32.mxu0 0.0
    %190 = vmatmul.mubr.f32.gmra.mrb[0].mxu0 %v102
    %v191 = vpop.f32.mrb[0].mxu0
    %v192 = vadd.f32 %v93, %v191
    %v193 = vpop.f32.mrb[0].mxu0
    %v194 = vadd.f32 %v97, %v193
    %195 = vmatprep.mubr.f32.mxu0 0.0
    %196 = vmatmul.mubr.f32.gmra.mrb[0].mxu0 %v105
    %v197 = vpop.f32.mrb[0].mxu0
    %v198 = vadd.f32 %v93, %v197
    %v199 = vpop.f32.mrb[0].mxu0
    %v200 = vadd.f32 %v97, %v199
    %201 = vmatprep.mubr.f32.mxu0 0.0
    %202 = vmatmul.mubr.f32.gmra.mrb[0].mxu0 %v108
    %v203 = vpop.f32.mrb[0].mxu0
    %v204 = vadd.f32 %v93, %v203
    %v205 = vpop.f32.mrb[0].mxu0
    %v206 = vadd.f32 %v97, %v205
    %207 = vmatprep.mubr.f32.mxu0 0.0
    %208 = vmatmul.mubr.f32.gmra.mrb[0].mxu0 %v111
    %v209 = vpop.f32.mrb[0].mxu0
    %v210 = vadd.f32 %v93, %v209
    %v211 = vpop.f32.mrb[0].mxu0
    %v212 = vadd.f32 %v97, %v211
    %213 = vmatprep.mubr.f32.mxu0 0.0
    %214 = vmatmul.mubr.f32.gmra.mrb[0].mxu0 %v114
    %v215 = vpop.f32.mrb[0].mxu0
    %v216 = vadd.f32 %v93, %v215
    %v217 = vpop.f32.mrb[0].mxu0
    %v218 = vadd.f32 %v97, %v217
    %219 = vmatprep.mubr.f32.mxu0 0.0
    %220 = vmatmul.mubr.f32.gmra.mrb[0].mxu0 %v117
    %v221 = vpop.f32.mrb[0].mxu0
    %v222 = vadd.f32 %v93, %v221
    %v223 = vpop.f32.mrb[0].mxu0
    %v224 = vadd.f32 %v97, %v223
    %225 = vmatprep.mubr.f32.mxu0 0.0
    %226 = vmatmul.mubr.f32.gmra.mrb[0].mxu0 %v120
    %v227 = vpop.f32.mrb[0].mxu0
    %v228 = vadd.f32 %v93, %v227
    %v229 = vpop.f32.mrb[0].mxu0
    %v230 = vadd.f32 %v97, %v229
    %231 = vmatprep.mubr.f32.mxu0 0.0
    %232 = vmatmul.mubr.f32.gmra.mrb[0].mxu0 %v123
    %v233 = vpop.f32.mrb[0].mxu0
    %v234 = vadd.f32 %v93, %v233
    %v235 = vpop.f32.mrb[0].mxu0
    %v236 = vadd.f32 %v97, %v235
    %237 = vdwg.mxu0
    %238 = vst [vmem:[#allocation2] sm:$0xff] %v192
    %vm239 = vcmask 785408
    %240 = vst.msk [vmem:[#allocation2 + $0x8] sm:$0xff] %vm239, %v194
    %241 = vst [vmem:[#allocation2 + $0x10] sm:$0xff] %v198
    %242 = vst.msk [vmem:[#allocation2 + $0x18] sm:$0xff] %vm239, %v200
    %243 = vst [vmem:[#allocation2 + $0x20] sm:$0xff] %v204
    %244 = vst.msk [vmem:[#allocation2 + $0x28] sm:$0xff] %vm239, %v206
    %245 = vst [vmem:[#allocation2 + $0x30] sm:$0xff] %v210
    %246 = vst.msk [vmem:[#allocation2 + $0x38] sm:$0xff] %vm239, %v212
    %247 = vst [vmem:[#allocation2 + $0x40] sm:$0xff] %v216
    %248 = vst.msk [vmem:[#allocation2 + $0x48] sm:$0xff] %vm239, %v218
    %249 = vst [vmem:[#allocation2 + $0x50] sm:$0xff] %v222
    %250 = vst.msk [vmem:[#allocation2 + $0x58] sm:$0xff] %vm239, %v224
    %251 = vst [vmem:[#allocation2 + $0x60] sm:$0xff] %v228
    %252 = vst.msk [vmem:[#allocation2 + $0x68] sm:$0xff] %vm239, %v230
    %253 = vst [vmem:[#allocation2 + $0x70] sm:$0xff] %v234
    %254 = vst.msk [vmem:[#allocation2 + $0x78] sm:$0xff] %vm239, %v236
    %v255 = vld [vmem:[#allocation8] sm:$0xff]
    %v256 = vld [vmem:[#allocation8 + $0x8] sm:$0xff]
    %v257 = vld [vmem:[#allocation8 + $0x10] sm:$0xff]
    %v258 = vld [vmem:[#allocation8 + $0x18] sm:$0xff]
    %v259 = vld [vmem:[#allocation8 + $0x20] sm:$0xff]
    %v260 = vld [vmem:[#allocation8 + $0x28] sm:$0xff]
    %v261 = vld [vmem:[#allocation8 + $0x30] sm:$0xff]
    %v262 = vld [vmem:[#allocation8 + $0x38] sm:$0xff]
    %v263 = vld [vmem:[#allocation8 + $0x40] sm:$0xff]
    %v264 = vld [vmem:[#allocation8 + $0x48] sm:$0xff]
    %v265 = vld [vmem:[#allocation8 + $0x50] sm:$0xff]
    %v266 = vld [vmem:[#allocation8 + $0x58] sm:$0xff]
    %v267 = vld [vmem:[#allocation8 + $0x60] sm:$0xff]
    %v268 = vld [vmem:[#allocation8 + $0x68] sm:$0xff]
    %v269 = vld [vmem:[#allocation8 + $0x70] sm:$0xff]
    %v270 = vld [vmem:[#allocation8 + $0x78] sm:$0xff]
    %v271 = vld [vmem:[%s7] sm:$0x1]
    %s272 = scalar_lea.vmem %s7, 1
    %v273 = vld [vmem:[%s272] sm:$0x1]
    %v274 = vld [vmem:[#allocation2] sm:$0xff]
    %v275 = vld [vmem:[#allocation2 + $0x78] sm:$0xff]
    %vm276 = vcmask 523264
    %v278 = vsel %vm276, 0.0, 0
    %280 = vmatprep.subr.mxu0 %v256
    %281 = vmatpush1.msra.mxu0 %v255
    %282 = vmatprep.subr.mxu0 %v258
    %283 = vmatpush1.msra.mxu0 %v257
    %284 = vmatprep.subr.mxu0 %v260
    %285 = vmatpush1.msra.mxu0 %v259
    %286 = vmatprep.subr.mxu0 %v262
    %287 = vmatpush1.msra.mxu0 %v261
    %288 = vmatprep.subr.mxu0 %v264
    %289 = vmatpush1.msra.mxu0 %v263
    %290 = vmatprep.subr.mxu0 %v266
    %291 = vmatpush1.msra.mxu0 %v265
    %292 = vmatprep.subr.mxu0 %v268
    %293 = vmatpush1.msra.mxu0 %v267
    %294 = vmatprep.subr.mxu0 %v270
    %295 = vmatpush1.msra.mxu0 %v269
    %296 = vmatprep.subr.mxu0 0.0
    %297 = vmatpush1.msra.mxu0 0.0
    %298 = vmatprep.subr.mxu0 0.0
    %299 = vmatpush1.msra.mxu0 0.0
    %300 = vmatprep.subr.mxu0 0.0
    %301 = vmatpush1.msra.mxu0 0.0
    %302 = vmatprep.subr.mxu0 0.0
    %303 = vmatpush1.msra.mxu0 0.0
    %304 = vmatprep.subr.mxu0 0.0
    %305 = vmatpush1.msra.mxu0 0.0
    %306 = vmatprep.subr.mxu0 0.0
    %307 = vmatpush1.msra.mxu0 0.0
    %308 = vmatprep.subr.mxu0 0.0
    %309 = vmatpush1.msra.mxu0 0.0
    %310 = vmatprep.subr.mxu0 0.0
    %311 = vmatpush1.msra.mxu0 0.0
    %312 = vmatprep.subr.mxu0 0.0
    %313 = vmatpush1.msra.mxu0 0.0
    %314 = vmatprep.subr.mxu0 0.0
    %315 = vmatpush1.msra.mxu0 0.0
    %316 = vmatprep.subr.mxu0 0.0
    %317 = vmatpush1.msra.mxu0 0.0
    %318 = vmatprep.subr.mxu0 0.0
    %319 = vmatpush1.msra.mxu0 0.0
    %320 = vmatprep.subr.mxu0 0.0
    %321 = vmatpush1.msra.mxu0 0.0
    %322 = vmatprep.subr.mxu0 0.0
    %323 = vmatpush1.msra.mxu0 0.0
    %324 = vmatprep.subr.mxu0 0.0
    %325 = vmatpush1.msra.mxu0 0.0
    %326 = vmatprep.subr.mxu0 0.0
    %327 = vmatpush1.msra.mxu0 0.0
    %328 = vmatprep.subr.mxu0 0.0
    %329 = vmatpush1.msra.mxu0 0.0
    %330 = vmatprep.subr.mxu0 0.0
    %331 = vmatpush1.msra.mxu0 0.0
    %332 = vmatprep.subr.mxu0 0.0
    %333 = vmatpush1.msra.mxu0 0.0
    %334 = vmatprep.subr.mxu0 0.0
    %335 = vmatpush1.msra.mxu0 0.0
    %336 = vmatprep.subr.mxu0 0.0
    %337 = vmatpush1.msra.mxu0 0.0
    %338 = vmatprep.subr.mxu0 0.0
    %339 = vmatpush1.msra.mxu0 0.0
    %340 = vmatprep.subr.mxu0 0.0
    %341 = vmatpush1.msra.mxu0 0.0
    %342 = vmatprep.subr.mxu0 0.0
    %343 = vmatpush1.msra.mxu0 0.0
    %344 = vmatprep.mubr.f32.mxu0 0.0
    %345 = vmatmul.mubr.f32.gmra.mrb[0].mxu0 %v278
    %v346 = vpop.f32.mrb[0].mxu0
    %v347 = vadd.f32 0.0, %v346
    %v348 = vpop.f32.mrb[0].mxu0
    %v349 = vadd.f32 0.0, %v348
    %350 = vdwg.mxu0
    %v351 = vadd.f32 %v274, %v347
    %v352 = vxor.u32 %v351, 2147483648
    %v353 = vmul.f32 %v352, 1.442695
    %v354 = vpow.pop %v353
    %v355 = vadd.f32 %v354, 1.0
    %v356 = vrcp.pop %v355
    %v357 = vmul.f32 1.0, %v356
    %v359 = vlaneseq
    %v360 = vshrl.u32 %v359, 7
    %v361 = vsub.s32 0, %v360
    %v362 = vrot.slane %v271, %v361
    %363 = vrot.lane.b32.xlu0 %v362, 64
    %v364 = vpop.permute.xlu0 %363
    %v366 = vadd.f32 %v347, %v364
    %368 = vrot.lane.b32.xlu0 %v366, 64
    %v369 = vpop.permute.xlu0 %368
    %v371 = vmul.f32 %v357, %v369
    %373 = vrot.lane.b32.xlu0 %v371, 64
    %v374 = vpop.permute.xlu0 %373
    %v376 = vadd.f32 %v274, %v374
    %v377 = vtanh.pop %v376
    %v378 = vsub.f32 0.0, %v377
    %380 = vrot.lane.b32.xlu0 %v378, 96
    %v381 = vpop.permute.xlu0 %380
    %v383 = vmul.f32 %v357, %v381
    %385 = vrot.lane.b32.xlu0 %v383, 32
    %v386 = vpop.permute.xlu0 %385
    %v388 = vadd.f32 %v377, %v386
    %v389 = vadd.f32 %v275, %v349
    %v390 = vxor.u32 %v389, 2147483648
    %v391 = vmul.f32 %v390, 1.442695
    %v392 = vpow.pop %v391
    %v393 = vadd.f32 %v392, 1.0
    %v394 = vrcp.pop %v393
    %v395 = vmul.f32 1.0, %v394
    %v397 = vlaneseq
    %v398 = vshrl.u32 %v397, 7
    %v399 = vsub.s32 0, %v398
    %v400 = vrot.slane %v273, %v399
    %401 = vrot.lane.b32.xlu0 %v400, 64
    %v402 = vpop.permute.xlu0 %401
    %v404 = vadd.f32 %v349, %v402
    %406 = vrot.lane.b32.xlu0 %v404, 64
    %v407 = vpop.permute.xlu0 %406
    %v409 = vmul.f32 %v395, %v407
    %411 = vrot.lane.b32.xlu0 %v409, 64
    %v412 = vpop.permute.xlu0 %411
    %v414 = vadd.f32 %v275, %v412
    %v415 = vtanh.pop %v414
    %v416 = vsub.f32 0.0, %v415
    %418 = vrot.lane.b32.xlu0 %v416, 96
    %v419 = vpop.permute.xlu0 %418
    %v421 = vmul.f32 %v395, %v419
    %423 = vrot.lane.b32.xlu0 %v421, 32
    %v424 = vpop.permute.xlu0 %423
    %v426 = vadd.f32 %v415, %v424
    %v427 = vsel %vm68, %v388, 0.0
    %v428 = vsel %vm75, %v426, 0.0
    %430 = vrot.lane.b32.xlu0 %v427, 64
    %v431 = vpop.permute.xlu0 %430
    %vm433 = vcmask 261120
    %434 = vst.msk [vmem:[#allocation3] sm:$0xff] %vm433, %v431
    %436 = vrot.lane.b32.xlu0 %v428, 64
    %v437 = vpop.permute.xlu0 %436
    %439 = vst.msk [vmem:[#allocation4 + $0x38] sm:$0xff] %vm433, %v437
    %v440 = vld [vmem:[#allocation2 + $0x10] sm:$0xff]
    %v441 = vld [vmem:[#allocation2 + $0x68] sm:$0xff]
    %442 = vrot.lane.b32.xlu0 %v428, 96
    %v443 = vpop.permute.xlu0 %442
    %v445 = vsel %vm433, %v431, %v443
    %v447 = vsel %vm276, %v445, 0
    %449 = vmatprep.subr.mxu0 %v256
    %450 = vmatpush1.msra.mxu0 %v255
    %451 = vmatprep.subr.mxu0 %v258
    %452 = vmatpush1.msra.mxu0 %v257
    %453 = vmatprep.subr.mxu0 %v260
    %454 = vmatpush1.msra.mxu0 %v259
    %455 = vmatprep.subr.mxu0 %v262
    %456 = vmatpush1.msra.mxu0 %v261
    %457 = vmatprep.subr.mxu0 %v264
    %458 = vmatpush1.msra.mxu0 %v263
    %459 = vmatprep.subr.mxu0 %v266
    %460 = vmatpush1.msra.mxu0 %v265
    %461 = vmatprep.subr.mxu0 %v268
    %462 = vmatpush1.msra.mxu0 %v267
    %463 = vmatprep.subr.mxu0 %v270
    %464 = vmatpush1.msra.mxu0 %v269
    %465 = vmatprep.subr.mxu0 0.0
    %466 = vmatpush1.msra.mxu0 0.0
    %467 = vmatprep.subr.mxu0 0.0
    %468 = vmatpush1.msra.mxu0 0.0
    %469 = vmatprep.subr.mxu0 0.0
    %470 = vmatpush1.msra.mxu0 0.0
    %471 = vmatprep.subr.mxu0 0.0
    %472 = vmatpush1.msra.mxu0 0.0
    %473 = vmatprep.subr.mxu0 0.0
    %474 = vmatpush1.msra.mxu0 0.0
    %475 = vmatprep.subr.mxu0 0.0
    %476 = vmatpush1.msra.mxu0 0.0
    %477 = vmatprep.subr.mxu0 0.0
    %478 = vmatpush1.msra.mxu0 0.0
    %479 = vmatprep.subr.mxu0 0.0
    %480 = vmatpush1.msra.mxu0 0.0
    %481 = vmatprep.subr.mxu0 0.0
    %482 = vmatpush1.msra.mxu0 0.0
    %483 = vmatprep.subr.mxu0 0.0
    %484 = vmatpush1.msra.mxu0 0.0
    %485 = vmatprep.subr.mxu0 0.0
    %486 = vmatpush1.msra.mxu0 0.0
    %487 = vmatprep.subr.mxu0 0.0
    %488 = vmatpush1.msra.mxu0 0.0
    %489 = vmatprep.subr.mxu0 0.0
    %490 = vmatpush1.msra.mxu0 0.0
    %491 = vmatprep.subr.mxu0 0.0
    %492 = vmatpush1.msra.mxu0 0.0
    %493 = vmatprep.subr.mxu0 0.0
    %494 = vmatpush1.msra.mxu0 0.0
    %495 = vmatprep.subr.mxu0 0.0
    %496 = vmatpush1.msra.mxu0 0.0
    %497 = vmatprep.subr.mxu0 0.0
    %498 = vmatpush1.msra.mxu0 0.0
    %499 = vmatprep.subr.mxu0 0.0
    %500 = vmatpush1.msra.mxu0 0.0
    %501 = vmatprep.subr.mxu0 0.0
    %502 = vmatpush1.msra.mxu0 0.0
    %503 = vmatprep.subr.mxu0 0.0
    %504 = vmatpush1.msra.mxu0 0.0
    %505 = vmatprep.subr.mxu0 0.0
    %506 = vmatpush1.msra.mxu0 0.0
    %507 = vmatprep.subr.mxu0 0.0
    %508 = vmatpush1.msra.mxu0 0.0
    %509 = vmatprep.subr.mxu0 0.0
    %510 = vmatpush1.msra.mxu0 0.0
    %511 = vmatprep.subr.mxu0 0.0
    %512 = vmatpush1.msra.mxu0 0.0
    %513 = vmatprep.mubr.f32.mxu0 0.0
    %514 = vmatmul.mubr.f32.gmra.mrb[0].mxu0 %v447
    %v515 = vpop.f32.mrb[0].mxu0
    %v516 = vadd.f32 0.0, %v515
    %v517 = vpop.f32.mrb[0].mxu0
    %v518 = vadd.f32 0.0, %v517
    %519 = vdwg.mxu0
    %v520 = vadd.f32 %v440, %v516
    %v521 = vxor.u32 %v520, 2147483648
    %v522 = vmul.f32 %v521, 1.442695
    %v523 = vpow.pop %v522
    %v524 = vadd.f32 %v523, 1.0
    %v525 = vrcp.pop %v524
    %v526 = vmul.f32 1.0, %v525
    %v527 = vadd.f32 %v516, %v364
    %529 = vrot.lane.b32.xlu0 %v527, 64
    %v530 = vpop.permute.xlu0 %529
    %v532 = vmul.f32 %v526, %v530
    %534 = vrot.lane.b32.xlu0 %v532, 64
    %v535 = vpop.permute.xlu0 %534
    %v537 = vadd.f32 %v440, %v535
    %v538 = vtanh.pop %v537
    %v539 = vsub.f32 %v427, %v538
    %541 = vrot.lane.b32.xlu0 %v539, 96
    %v542 = vpop.permute.xlu0 %541
    %v544 = vmul.f32 %v526, %v542
    %546 = vrot.lane.b32.xlu0 %v544, 32
    %v547 = vpop.permute.xlu0 %546
    %v549 = vadd.f32 %v538, %v547
    %v550 = vadd.f32 %v441, %v518
    %v551 = vxor.u32 %v550, 2147483648
    %v552 = vmul.f32 %v551, 1.442695
    %v553 = vpow.pop %v552
    %v554 = vadd.f32 %v553, 1.0
    %v555 = vrcp.pop %v554
    %v556 = vmul.f32 1.0, %v555
    %v557 = vadd.f32 %v518, %v402
    %559 = vrot.lane.b32.xlu0 %v557, 64
    %v560 = vpop.permute.xlu0 %559
    %v562 = vmul.f32 %v556, %v560
    %564 = vrot.lane.b32.xlu0 %v562, 64
    %v565 = vpop.permute.xlu0 %564
    %v567 = vadd.f32 %v441, %v565
    %v568 = vtanh.pop %v567
    %v569 = vsub.f32 %v428, %v568
    %571 = vrot.lane.b32.xlu0 %v569, 96
    %v572 = vpop.permute.xlu0 %571
    %v574 = vmul.f32 %v556, %v572
    %576 = vrot.lane.b32.xlu0 %v574, 32
    %v577 = vpop.permute.xlu0 %576
    %v579 = vadd.f32 %v568, %v577
    %v580 = vsel %vm69, %v549, %v427
    %v581 = vsel %vm74, %v579, %v428
    %v582 = vsel %vm69, %v549, 0.0
    %584 = vrot.lane.b32.xlu0 %v582, 64
    %v585 = vpop.permute.xlu0 %584
    %587 = vst.msk [vmem:[#allocation3 + $0x8] sm:$0xff] %vm433, %v585
    %v588 = vsel %vm74, %v579, 0.0
    %590 = vrot.lane.b32.xlu0 %v588, 64
    %v591 = vpop.permute.xlu0 %590
    %593 = vst.msk [vmem:[#allocation4 + $0x30] sm:$0xff] %vm433, %v591
    %v594 = vld [vmem:[#allocation2 + $0x20] sm:$0xff]
    %v595 = vld [vmem:[#allocation2 + $0x58] sm:$0xff]
    %597 = vrot.lane.b32.xlu0 %v580, 64
    %v598 = vpop.permute.xlu0 %597
    %601 = vrot.lane.b32.xlu0 %v581, 96
    %v602 = vpop.permute.xlu0 %601
    %v604 = vsel %vm433, %v598, %v602
    %v606 = vsel %vm276, %v604, 0
    %608 = vmatprep.subr.mxu0 %v256
    %609 = vmatpush1.msra.mxu0 %v255
    %610 = vmatprep.subr.mxu0 %v258
    %611 = vmatpush1.msra.mxu0 %v257
    %612 = vmatprep.subr.mxu0 %v260
    %613 = vmatpush1.msra.mxu0 %v259
    %614 = vmatprep.subr.mxu0 %v262
    %615 = vmatpush1.msra.mxu0 %v261
    %616 = vmatprep.subr.mxu0 %v264
    %617 = vmatpush1.msra.mxu0 %v263
    %618 = vmatprep.subr.mxu0 %v266
    %619 = vmatpush1.msra.mxu0 %v265
    %620 = vmatprep.subr.mxu0 %v268
    %621 = vmatpush1.msra.mxu0 %v267
    %622 = vmatprep.subr.mxu0 %v270
    %623 = vmatpush1.msra.mxu0 %v269
    %624 = vmatprep.subr.mxu0 0.0
    %625 = vmatpush1.msra.mxu0 0.0
    %626 = vmatprep.subr.mxu0 0.0
    %627 = vmatpush1.msra.mxu0 0.0
    %628 = vmatprep.subr.mxu0 0.0
    %629 = vmatpush1.msra.mxu0 0.0
    %630 = vmatprep.subr.mxu0 0.0
    %631 = vmatpush1.msra.mxu0 0.0
    %632 = vmatprep.subr.mxu0 0.0
    %633 = vmatpush1.msra.mxu0 0.0
    %634 = vmatprep.subr.mxu0 0.0
    %635 = vmatpush1.msra.mxu0 0.0
    %636 = vmatprep.subr.mxu0 0.0
    %637 = vmatpush1.msra.mxu0 0.0
    %638 = vmatprep.subr.mxu0 0.0
    %639 = vmatpush1.msra.mxu0 0.0
    %640 = vmatprep.subr.mxu0 0.0
    %641 = vmatpush1.msra.mxu0 0.0
    %642 = vmatprep.subr.mxu0 0.0
    %643 = vmatpush1.msra.mxu0 0.0
    %644 = vmatprep.subr.mxu0 0.0
    %645 = vmatpush1.msra.mxu0 0.0
    %646 = vmatprep.subr.mxu0 0.0
    %647 = vmatpush1.msra.mxu0 0.0
    %648 = vmatprep.subr.mxu0 0.0
    %649 = vmatpush1.msra.mxu0 0.0
    %650 = vmatprep.subr.mxu0 0.0
    %651 = vmatpush1.msra.mxu0 0.0
    %652 = vmatprep.subr.mxu0 0.0
    %653 = vmatpush1.msra.mxu0 0.0
    %654 = vmatprep.subr.mxu0 0.0
    %655 = vmatpush1.msra.mxu0 0.0
    %656 = vmatprep.subr.mxu0 0.0
    %657 = vmatpush1.msra.mxu0 0.0
    %658 = vmatprep.subr.mxu0 0.0
    %659 = vmatpush1.msra.mxu0 0.0
    %660 = vmatprep.subr.mxu0 0.0
    %661 = vmatpush1.msra.mxu0 0.0
    %662 = vmatprep.subr.mxu0 0.0
    %663 = vmatpush1.msra.mxu0 0.0
    %664 = vmatprep.subr.mxu0 0.0
    %665 = vmatpush1.msra.mxu0 0.0
    %666 = vmatprep.subr.mxu0 0.0
    %667 = vmatpush1.msra.mxu0 0.0
    %668 = vmatprep.subr.mxu0 0.0
    %669 = vmatpush1.msra.mxu0 0.0
    %670 = vmatprep.subr.mxu0 0.0
    %671 = vmatpush1.msra.mxu0 0.0
    %672 = vmatprep.mubr.f32.mxu0 0.0
    %673 = vmatmul.mubr.f32.gmra.mrb[0].mxu0 %v606
    %v674 = vpop.f32.mrb[0].mxu0
    %v675 = vadd.f32 0.0, %v674
    %v676 = vpop.f32.mrb[0].mxu0
    %v677 = vadd.f32 0.0, %v676
    %678 = vdwg.mxu0
    %v679 = vadd.f32 %v594, %v675
    %v680 = vxor.u32 %v679, 2147483648
    %v681 = vmul.f32 %v680, 1.442695
    %v682 = vpow.pop %v681
    %v683 = vadd.f32 %v682, 1.0
    %v684 = vrcp.pop %v683
    %v685 = vmul.f32 1.0, %v684
    %v686 = vadd.f32 %v675, %v364
    %688 = vrot.lane.b32.xlu0 %v686, 64
    %v689 = vpop.permute.xlu0 %688
    %v691 = vmul.f32 %v685, %v689
    %693 = vrot.lane.b32.xlu0 %v691, 64
    %v694 = vpop.permute.xlu0 %693
    %v696 = vadd.f32 %v594, %v694
    %v697 = vtanh.pop %v696
    %v698 = vsub.f32 %v580, %v697
    %700 = vrot.lane.b32.xlu0 %v698, 96
    %v701 = vpop.permute.xlu0 %700
    %v703 = vmul.f32 %v685, %v701
    %705 = vrot.lane.b32.xlu0 %v703, 32
    %v706 = vpop.permute.xlu0 %705
    %v708 = vadd.f32 %v697, %v706
    %v709 = vadd.f32 %v595, %v677
    %v710 = vxor.u32 %v709, 2147483648
    %v711 = vmul.f32 %v710, 1.442695
    %v712 = vpow.pop %v711
    %v713 = vadd.f32 %v712, 1.0
    %v714 = vrcp.pop %v713
    %v715 = vmul.f32 1.0, %v714
    %v716 = vadd.f32 %v677, %v402
    %718 = vrot.lane.b32.xlu0 %v716, 64
    %v719 = vpop.permute.xlu0 %718
    %v721 = vmul.f32 %v715, %v719
    %723 = vrot.lane.b32.xlu0 %v721, 64
    %v724 = vpop.permute.xlu0 %723
    %v726 = vadd.f32 %v595, %v724
    %v727 = vtanh.pop %v726
    %v728 = vsub.f32 %v581, %v727
    %730 = vrot.lane.b32.xlu0 %v728, 96
    %v731 = vpop.permute.xlu0 %730
    %v733 = vmul.f32 %v715, %v731
    %735 = vrot.lane.b32.xlu0 %v733, 32
    %v736 = vpop.permute.xlu0 %735
    %v738 = vadd.f32 %v727, %v736
    %v739 = vsel %vm70, %v708, %v580
    %v740 = vsel %vm73, %v738, %v581
    %v741 = vsel %vm70, %v708, 0.0
    %743 = vrot.lane.b32.xlu0 %v741, 64
    %v744 = vpop.permute.xlu0 %743
    %746 = vst.msk [vmem:[#allocation3 + $0x10] sm:$0xff] %vm433, %v744
    %v747 = vsel %vm73, %v738, 0.0
    %749 = vrot.lane.b32.xlu0 %v747, 64
    %v750 = vpop.permute.xlu0 %749
    %752 = vst.msk [vmem:[#allocation4 + $0x28] sm:$0xff] %vm433, %v750
    %v753 = vld [vmem:[#allocation2 + $0x30] sm:$0xff]
    %v754 = vld [vmem:[#allocation2 + $0x48] sm:$0xff]
    %756 = vrot.lane.b32.xlu0 %v739, 64
    %v757 = vpop.permute.xlu0 %756
    %760 = vrot.lane.b32.xlu0 %v740, 96
    %v761 = vpop.permute.xlu0 %760
    %v763 = vsel %vm433, %v757, %v761
    %v765 = vsel %vm276, %v763, 0
    %767 = vmatprep.subr.mxu0 %v256
    %768 = vmatpush1.msra.mxu0 %v255
    %769 = vmatprep.subr.mxu0 %v258
    %770 = vmatpush1.msra.mxu0 %v257
    %771 = vmatprep.subr.mxu0 %v260
    %772 = vmatpush1.msra.mxu0 %v259
    %773 = vmatprep.subr.mxu0 %v262
    %774 = vmatpush1.msra.mxu0 %v261
    %775 = vmatprep.subr.mxu0 %v264
    %776 = vmatpush1.msra.mxu0 %v263
    %777 = vmatprep.subr.mxu0 %v266
    %778 = vmatpush1.msra.mxu0 %v265
    %779 = vmatprep.subr.mxu0 %v268
    %780 = vmatpush1.msra.mxu0 %v267
    %781 = vmatprep.subr.mxu0 %v270
    %782 = vmatpush1.msra.mxu0 %v269
    %783 = vmatprep.subr.mxu0 0.0
    %784 = vmatpush1.msra.mxu0 0.0
    %785 = vmatprep.subr.mxu0 0.0
    %786 = vmatpush1.msra.mxu0 0.0
    %787 = vmatprep.subr.mxu0 0.0
    %788 = vmatpush1.msra.mxu0 0.0
    %789 = vmatprep.subr.mxu0 0.0
    %790 = vmatpush1.msra.mxu0 0.0
    %791 = vmatprep.subr.mxu0 0.0
    %792 = vmatpush1.msra.mxu0 0.0
    %793 = vmatprep.subr.mxu0 0.0
    %794 = vmatpush1.msra.mxu0 0.0
    %795 = vmatprep.subr.mxu0 0.0
    %796 = vmatpush1.msra.mxu0 0.0
    %797 = vmatprep.subr.mxu0 0.0
    %798 = vmatpush1.msra.mxu0 0.0
    %799 = vmatprep.subr.mxu0 0.0
    %800 = vmatpush1.msra.mxu0 0.0
    %801 = vmatprep.subr.mxu0 0.0
    %802 = vmatpush1.msra.mxu0 0.0
    %803 = vmatprep.subr.mxu0 0.0
    %804 = vmatpush1.msra.mxu0 0.0
    %805 = vmatprep.subr.mxu0 0.0
    %806 = vmatpush1.msra.mxu0 0.0
    %807 = vmatprep.subr.mxu0 0.0
    %808 = vmatpush1.msra.mxu0 0.0
    %809 = vmatprep.subr.mxu0 0.0
    %810 = vmatpush1.msra.mxu0 0.0
    %811 = vmatprep.subr.mxu0 0.0
    %812 = vmatpush1.msra.mxu0 0.0
    %813 = vmatprep.subr.mxu0 0.0
    %814 = vmatpush1.msra.mxu0 0.0
    %815 = vmatprep.subr.mxu0 0.0
    %816 = vmatpush1.msra.mxu0 0.0
    %817 = vmatprep.subr.mxu0 0.0
    %818 = vmatpush1.msra.mxu0 0.0
    %819 = vmatprep.subr.mxu0 0.0
    %820 = vmatpush1.msra.mxu0 0.0
    %821 = vmatprep.subr.mxu0 0.0
    %822 = vmatpush1.msra.mxu0 0.0
    %823 = vmatprep.subr.mxu0 0.0
    %824 = vmatpush1.msra.mxu0 0.0
    %825 = vmatprep.subr.mxu0 0.0
    %826 = vmatpush1.msra.mxu0 0.0
    %827 = vmatprep.subr.mxu0 0.0
    %828 = vmatpush1.msra.mxu0 0.0
    %829 = vmatprep.subr.mxu0 0.0
    %830 = vmatpush1.msra.mxu0 0.0
    %831 = vmatprep.mubr.f32.mxu0 0.0
    %832 = vmatmul.mubr.f32.gmra.mrb[0].mxu0 %v765
    %v833 = vpop.f32.mrb[0].mxu0
    %v834 = vadd.f32 0.0, %v833
    %v835 = vpop.f32.mrb[0].mxu0
    %v836 = vadd.f32 0.0, %v835
    %837 = vdwg.mxu0
    %v838 = vadd.f32 %v753, %v834
    %v839 = vxor.u32 %v838, 2147483648
    %v840 = vmul.f32 %v839, 1.442695
    %v841 = vpow.pop %v840
    %v842 = vadd.f32 %v841, 1.0
    %v843 = vrcp.pop %v842
    %v844 = vmul.f32 1.0, %v843
    %v845 = vadd.f32 %v834, %v364
    %847 = vrot.lane.b32.xlu0 %v845, 64
    %v848 = vpop.permute.xlu0 %847
    %v850 = vmul.f32 %v844, %v848
    %852 = vrot.lane.b32.xlu0 %v850, 64
    %v853 = vpop.permute.xlu0 %852
    %v855 = vadd.f32 %v753, %v853
    %v856 = vtanh.pop %v855
    %v857 = vsub.f32 %v739, %v856
    %859 = vrot.lane.b32.xlu0 %v857, 96
    %v860 = vpop.permute.xlu0 %859
    %v862 = vmul.f32 %v844, %v860
    %864 = vrot.lane.b32.xlu0 %v862, 32
    %v865 = vpop.permute.xlu0 %864
    %v867 = vadd.f32 %v856, %v865
    %v868 = vadd.f32 %v754, %v836
    %v869 = vxor.u32 %v868, 2147483648
    %v870 = vmul.f32 %v869, 1.442695
    %v871 = vpow.pop %v870
    %v872 = vadd.f32 %v871, 1.0
    %v873 = vrcp.pop %v872
    %v874 = vmul.f32 1.0, %v873
    %v875 = vadd.f32 %v836, %v402
    %877 = vrot.lane.b32.xlu0 %v875, 64
    %v878 = vpop.permute.xlu0 %877
    %v880 = vmul.f32 %v874, %v878
    %882 = vrot.lane.b32.xlu0 %v880, 64
    %v883 = vpop.permute.xlu0 %882
    %v885 = vadd.f32 %v754, %v883
    %v886 = vtanh.pop %v885
    %v887 = vsub.f32 %v740, %v886
    %889 = vrot.lane.b32.xlu0 %v887, 96
    %v890 = vpop.permute.xlu0 %889
    %v892 = vmul.f32 %v874, %v890
    %894 = vrot.lane.b32.xlu0 %v892, 32
    %v895 = vpop.permute.xlu0 %894
    %v897 = vadd.f32 %v886, %v895
    %v898 = vsel %vm71, %v867, %v739
    %v899 = vsel %vm72, %v897, %v740
    %v900 = vsel %vm71, %v867, 0.0
    %902 = vrot.lane.b32.xlu0 %v900, 64
    %v903 = vpop.permute.xlu0 %902
    %905 = vst.msk [vmem:[#allocation3 + $0x18] sm:$0xff] %vm433, %v903
    %v906 = vsel %vm72, %v897, 0.0
    %908 = vrot.lane.b32.xlu0 %v906, 64
    %v909 = vpop.permute.xlu0 %908
    %911 = vst.msk [vmem:[#allocation4 + $0x20] sm:$0xff] %vm433, %v909
    %v912 = vld [vmem:[#allocation2 + $0x40] sm:$0xff]
    %v913 = vld [vmem:[#allocation2 + $0x38] sm:$0xff]
    %915 = vrot.lane.b32.xlu0 %v898, 64
    %v916 = vpop.permute.xlu0 %915
    %919 = vrot.lane.b32.xlu0 %v899, 96
    %v920 = vpop.permute.xlu0 %919
    %v922 = vsel %vm433, %v916, %v920
    %v924 = vsel %vm276, %v922, 0
    %926 = vmatprep.subr.mxu0 %v256
    %927 = vmatpush1.msra.mxu0 %v255
    %928 = vmatprep.subr.mxu0 %v258
    %929 = vmatpush1.msra.mxu0 %v257
    %930 = vmatprep.subr.mxu0 %v260
    %931 = vmatpush1.msra.mxu0 %v259
    %932 = vmatprep.subr.mxu0 %v262
    %933 = vmatpush1.msra.mxu0 %v261
    %934 = vmatprep.subr.mxu0 %v264
    %935 = vmatpush1.msra.mxu0 %v263
    %936 = vmatprep.subr.mxu0 %v266
    %937 = vmatpush1.msra.mxu0 %v265
    %938 = vmatprep.subr.mxu0 %v268
    %939 = vmatpush1.msra.mxu0 %v267
    %940 = vmatprep.subr.mxu0 %v270
    %941 = vmatpush1.msra.mxu0 %v269
    %942 = vmatprep.subr.mxu0 0.0
    %943 = vmatpush1.msra.mxu0 0.0
    %944 = vmatprep.subr.mxu0 0.0
    %945 = vmatpush1.msra.mxu0 0.0
    %946 = vmatprep.subr.mxu0 0.0
    %947 = vmatpush1.msra.mxu0 0.0
    %948 = vmatprep.subr.mxu0 0.0
    %949 = vmatpush1.msra.mxu0 0.0
    %950 = vmatprep.subr.mxu0 0.0
    %951 = vmatpush1.msra.mxu0 0.0
    %952 = vmatprep.subr.mxu0 0.0
    %953 = vmatpush1.msra.mxu0 0.0
    %954 = vmatprep.subr.mxu0 0.0
    %955 = vmatpush1.msra.mxu0 0.0
    %956 = vmatprep.subr.mxu0 0.0
    %957 = vmatpush1.msra.mxu0 0.0
    %958 = vmatprep.subr.mxu0 0.0
    %959 = vmatpush1.msra.mxu0 0.0
    %960 = vmatprep.subr.mxu0 0.0
    %961 = vmatpush1.msra.mxu0 0.0
    %962 = vmatprep.subr.mxu0 0.0
    %963 = vmatpush1.msra.mxu0 0.0
    %964 = vmatprep.subr.mxu0 0.0
    %965 = vmatpush1.msra.mxu0 0.0
    %966 = vmatprep.subr.mxu0 0.0
    %967 = vmatpush1.msra.mxu0 0.0
    %968 = vmatprep.subr.mxu0 0.0
    %969 = vmatpush1.msra.mxu0 0.0
    %970 = vmatprep.subr.mxu0 0.0
    %971 = vmatpush1.msra.mxu0 0.0
    %972 = vmatprep.subr.mxu0 0.0
    %973 = vmatpush1.msra.mxu0 0.0
    %974 = vmatprep.subr.mxu0 0.0
    %975 = vmatpush1.msra.mxu0 0.0
    %976 = vmatprep.subr.mxu0 0.0
    %977 = vmatpush1.msra.mxu0 0.0
    %978 = vmatprep.subr.mxu0 0.0
    %979 = vmatpush1.msra.mxu0 0.0
    %980 = vmatprep.subr.mxu0 0.0
    %981 = vmatpush1.msra.mxu0 0.0
    %982 = vmatprep.subr.mxu0 0.0
    %983 = vmatpush1.msra.mxu0 0.0
    %984 = vmatprep.subr.mxu0 0.0
    %985 = vmatpush1.msra.mxu0 0.0
    %986 = vmatprep.subr.mxu0 0.0
    %987 = vmatpush1.msra.mxu0 0.0
    %988 = vmatprep.subr.mxu0 0.0
    %989 = vmatpush1.msra.mxu0 0.0
    %990 = vmatprep.mubr.f32.mxu0 0.0
    %991 = vmatmul.mubr.f32.gmra.mrb[0].mxu0 %v924
    %v992 = vpop.f32.mrb[0].mxu0
    %v993 = vadd.f32 0.0, %v992
    %v994 = vpop.f32.mrb[0].mxu0
    %v995 = vadd.f32 0.0, %v994
    %996 = vdwg.mxu0
    %v997 = vadd.f32 %v912, %v993
    %v998 = vxor.u32 %v997, 2147483648
    %v999 = vmul.f32 %v998, 1.442695
    %v1000 = vpow.pop %v999
    %v1001 = vadd.f32 %v1000, 1.0
    %v1002 = vrcp.pop %v1001
    %v1003 = vmul.f32 1.0, %v1002
    %v1004 = vadd.f32 %v993, %v364
    %1006 = vrot.lane.b32.xlu0 %v1004, 64
    %v1007 = vpop.permute.xlu0 %1006
    %v1009 = vmul.f32 %v1003, %v1007
    %1011 = vrot.lane.b32.xlu0 %v1009, 64
    %v1012 = vpop.permute.xlu0 %1011
    %v1014 = vadd.f32 %v912, %v1012
    %v1015 = vtanh.pop %v1014
    %v1016 = vsub.f32 %v898, %v1015
    %1018 = vrot.lane.b32.xlu0 %v1016, 96
    %v1019 = vpop.permute.xlu0 %1018
    %v1021 = vmul.f32 %v1003, %v1019
    %1023 = vrot.lane.b32.xlu0 %v1021, 32
    %v1024 = vpop.permute.xlu0 %1023
    %v1026 = vadd.f32 %v1015, %v1024
    %v1027 = vadd.f32 %v913, %v995
    %v1028 = vxor.u32 %v1027, 2147483648
    %v1029 = vmul.f32 %v1028, 1.442695
    %v1030 = vpow.pop %v1029
    %v1031 = vadd.f32 %v1030, 1.0
    %v1032 = vrcp.pop %v1031
    %v1033 = vmul.f32 1.0, %v1032
    %v1034 = vadd.f32 %v995, %v402
    %1036 = vrot.lane.b32.xlu0 %v1034, 64
    %v1037 = vpop.permute.xlu0 %1036
    %v1039 = vmul.f32 %v1033, %v1037
    %1041 = vrot.lane.b32.xlu0 %v1039, 64
    %v1042 = vpop.permute.xlu0 %1041
    %v1044 = vadd.f32 %v913, %v1042
    %v1045 = vtanh.pop %v1044
    %v1046 = vsub.f32 %v899, %v1045
    %1048 = vrot.lane.b32.xlu0 %v1046, 96
    %v1049 = vpop.permute.xlu0 %1048
    %v1051 = vmul.f32 %v1033, %v1049
    %1053 = vrot.lane.b32.xlu0 %v1051, 32
    %v1054 = vpop.permute.xlu0 %1053
    %v1056 = vadd.f32 %v1045, %v1054
    %v1057 = vsel %vm72, %v1026, %v898
    %v1058 = vsel %vm71, %v1056, %v899
    %v1059 = vsel %vm72, %v1026, 0.0
    %1061 = vrot.lane.b32.xlu0 %v1059, 64
    %v1062 = vpop.permute.xlu0 %1061
    %1064 = vst.msk [vmem:[#allocation3 + $0x20] sm:$0xff] %vm433, %v1062
    %v1065 = vsel %vm71, %v1056, 0.0
    %1067 = vrot.lane.b32.xlu0 %v1065, 64
    %v1068 = vpop.permute.xlu0 %1067
    %1070 = vst.msk [vmem:[#allocation4 + $0x18] sm:$0xff] %vm433, %v1068
    %v1071 = vld [vmem:[#allocation2 + $0x50] sm:$0xff]
    %v1072 = vld [vmem:[#allocation2 + $0x28] sm:$0xff]
    %1074 = vrot.lane.b32.xlu0 %v1057, 64
    %v1075 = vpop.permute.xlu0 %1074
    %1078 = vrot.lane.b32.xlu0 %v1058, 96
    %v1079 = vpop.permute.xlu0 %1078
    %v1081 = vsel %vm433, %v1075, %v1079
    %v1083 = vsel %vm276, %v1081, 0
    %1085 = vmatprep.subr.mxu0 %v256
    %1086 = vmatpush1.msra.mxu0 %v255
    %1087 = vmatprep.subr.mxu0 %v258
    %1088 = vmatpush1.msra.mxu0 %v257
    %1089 = vmatprep.subr.mxu0 %v260
    %1090 = vmatpush1.msra.mxu0 %v259
    %1091 = vmatprep.subr.mxu0 %v262
    %1092 = vmatpush1.msra.mxu0 %v261
    %1093 = vmatprep.subr.mxu0 %v264
    %1094 = vmatpush1.msra.mxu0 %v263
    %1095 = vmatprep.subr.mxu0 %v266
    %1096 = vmatpush1.msra.mxu0 %v265
    %1097 = vmatprep.subr.mxu0 %v268
    %1098 = vmatpush1.msra.mxu0 %v267
    %1099 = vmatprep.subr.mxu0 %v270
    %1100 = vmatpush1.msra.mxu0 %v269
    %1101 = vmatprep.subr.mxu0 0.0
    %1102 = vmatpush1.msra.mxu0 0.0
    %1103 = vmatprep.subr.mxu0 0.0
    %1104 = vmatpush1.msra.mxu0 0.0
    %1105 = vmatprep.subr.mxu0 0.0
    %1106 = vmatpush1.msra.mxu0 0.0
    %1107 = vmatprep.subr.mxu0 0.0
    %1108 = vmatpush1.msra.mxu0 0.0
    %1109 = vmatprep.subr.mxu0 0.0
    %1110 = vmatpush1.msra.mxu0 0.0
    %1111 = vmatprep.subr.mxu0 0.0
    %1112 = vmatpush1.msra.mxu0 0.0
    %1113 = vmatprep.subr.mxu0 0.0
    %1114 = vmatpush1.msra.mxu0 0.0
    %1115 = vmatprep.subr.mxu0 0.0
    %1116 = vmatpush1.msra.mxu0 0.0
    %1117 = vmatprep.subr.mxu0 0.0
    %1118 = vmatpush1.msra.mxu0 0.0
    %1119 = vmatprep.subr.mxu0 0.0
    %1120 = vmatpush1.msra.mxu0 0.0
    %1121 = vmatprep.subr.mxu0 0.0
    %1122 = vmatpush1.msra.mxu0 0.0
    %1123 = vmatprep.subr.mxu0 0.0
    %1124 = vmatpush1.msra.mxu0 0.0
    %1125 = vmatprep.subr.mxu0 0.0
    %1126 = vmatpush1.msra.mxu0 0.0
    %1127 = vmatprep.subr.mxu0 0.0
    %1128 = vmatpush1.msra.mxu0 0.0
    %1129 = vmatprep.subr.mxu0 0.0
    %1130 = vmatpush1.msra.mxu0 0.0
    %1131 = vmatprep.subr.mxu0 0.0
    %1132 = vmatpush1.msra.mxu0 0.0
    %1133 = vmatprep.subr.mxu0 0.0
    %1134 = vmatpush1.msra.mxu0 0.0
    %1135 = vmatprep.subr.mxu0 0.0
    %1136 = vmatpush1.msra.mxu0 0.0
    %1137 = vmatprep.subr.mxu0 0.0
    %1138 = vmatpush1.msra.mxu0 0.0
    %1139 = vmatprep.subr.mxu0 0.0
    %1140 = vmatpush1.msra.mxu0 0.0
    %1141 = vmatprep.subr.mxu0 0.0
    %1142 = vmatpush1.msra.mxu0 0.0
    %1143 = vmatprep.subr.mxu0 0.0
    %1144 = vmatpush1.msra.mxu0 0.0
    %1145 = vmatprep.subr.mxu0 0.0
    %1146 = vmatpush1.msra.mxu0 0.0
    %1147 = vmatprep.subr.mxu0 0.0
    %1148 = vmatpush1.msra.mxu0 0.0
    %1149 = vmatprep.mubr.f32.mxu0 0.0
    %1150 = vmatmul.mubr.f32.gmra.mrb[0].mxu0 %v1083
    %v1151 = vpop.f32.mrb[0].mxu0
    %v1152 = vadd.f32 0.0, %v1151
    %v1153 = vpop.f32.mrb[0].mxu0
    %v1154 = vadd.f32 0.0, %v1153
    %1155 = vdwg.mxu0
    %v1156 = vadd.f32 %v1071, %v1152
    %v1157 = vxor.u32 %v1156, 2147483648
    %v1158 = vmul.f32 %v1157, 1.442695
    %v1159 = vpow.pop %v1158
    %v1160 = vadd.f32 %v1159, 1.0
    %v1161 = vrcp.pop %v1160
    %v1162 = vmul.f32 1.0, %v1161
    %v1163 = vadd.f32 %v1152, %v364
    %1165 = vrot.lane.b32.xlu0 %v1163, 64
    %v1166 = vpop.permute.xlu0 %1165
    %v1168 = vmul.f32 %v1162, %v1166
    %1170 = vrot.lane.b32.xlu0 %v1168, 64
    %v1171 = vpop.permute.xlu0 %1170
    %v1173 = vadd.f32 %v1071, %v1171
    %v1174 = vtanh.pop %v1173
    %v1175 = vsub.f32 %v1057, %v1174
    %1177 = vrot.lane.b32.xlu0 %v1175, 96
    %v1178 = vpop.permute.xlu0 %1177
    %v1180 = vmul.f32 %v1162, %v1178
    %1182 = vrot.lane.b32.xlu0 %v1180, 32
    %v1183 = vpop.permute.xlu0 %1182
    %v1185 = vadd.f32 %v1174, %v1183
    %v1186 = vadd.f32 %v1072, %v1154
    %v1187 = vxor.u32 %v1186, 2147483648
    %v1188 = vmul.f32 %v1187, 1.442695
    %v1189 = vpow.pop %v1188
    %v1190 = vadd.f32 %v1189, 1.0
    %v1191 = vrcp.pop %v1190
    %v1192 = vmul.f32 1.0, %v1191
    %v1193 = vadd.f32 %v1154, %v402
    %1195 = vrot.lane.b32.xlu0 %v1193, 64
    %v1196 = vpop.permute.xlu0 %1195
    %v1198 = vmul.f32 %v1192, %v1196
    %1200 = vrot.lane.b32.xlu0 %v1198, 64
    %v1201 = vpop.permute.xlu0 %1200
    %v1203 = vadd.f32 %v1072, %v1201
    %v1204 = vtanh.pop %v1203
    %v1205 = vsub.f32 %v1058, %v1204
    %1207 = vrot.lane.b32.xlu0 %v1205, 96
    %v1208 = vpop.permute.xlu0 %1207
    %v1210 = vmul.f32 %v1192, %v1208
    %1212 = vrot.lane.b32.xlu0 %v1210, 32
    %v1213 = vpop.permute.xlu0 %1212
    %v1215 = vadd.f32 %v1204, %v1213
    %v1216 = vsel %vm73, %v1185, %v1057
    %v1217 = vsel %vm70, %v1215, %v1058
    %v1218 = vsel %vm73, %v1185, 0.0
    %1220 = vrot.lane.b32.xlu0 %v1218, 64
    %v1221 = vpop.permute.xlu0 %1220
    %1223 = vst.msk [vmem:[#allocation3 + $0x28] sm:$0xff] %vm433, %v1221
    %v1224 = vsel %vm70, %v1215, 0.0
    %1226 = vrot.lane.b32.xlu0 %v1224, 64
    %v1227 = vpop.permute.xlu0 %1226
    %1229 = vst.msk [vmem:[#allocation4 + $0x10] sm:$0xff] %vm433, %v1227
    %v1230 = vld [vmem:[#allocation2 + $0x60] sm:$0xff]
    %v1231 = vld [vmem:[#allocation2 + $0x18] sm:$0xff]
    %1233 = vrot.lane.b32.xlu0 %v1216, 64
    %v1234 = vpop.permute.xlu0 %1233
    %1237 = vrot.lane.b32.xlu0 %v1217, 96
    %v1238 = vpop.permute.xlu0 %1237
    %v1240 = vsel %vm433, %v1234, %v1238
    %v1242 = vsel %vm276, %v1240, 0
    %1244 = vmatprep.subr.mxu0 %v256
    %1245 = vmatpush1.msra.mxu0 %v255
    %1246 = vmatprep.subr.mxu0 %v258
    %1247 = vmatpush1.msra.mxu0 %v257
    %1248 = vmatprep.subr.mxu0 %v260
    %1249 = vmatpush1.msra.mxu0 %v259
    %1250 = vmatprep.subr.mxu0 %v262
    %1251 = vmatpush1.msra.mxu0 %v261
    %1252 = vmatprep.subr.mxu0 %v264
    %1253 = vmatpush1.msra.mxu0 %v263
    %1254 = vmatprep.subr.mxu0 %v266
    %1255 = vmatpush1.msra.mxu0 %v265
    %1256 = vmatprep.subr.mxu0 %v268
    %1257 = vmatpush1.msra.mxu0 %v267
    %1258 = vmatprep.subr.mxu0 %v270
    %1259 = vmatpush1.msra.mxu0 %v269
    %1260 = vmatprep.subr.mxu0 0.0
    %1261 = vmatpush1.msra.mxu0 0.0
    %1262 = vmatprep.subr.mxu0 0.0
    %1263 = vmatpush1.msra.mxu0 0.0
    %1264 = vmatprep.subr.mxu0 0.0
    %1265 = vmatpush1.msra.mxu0 0.0
    %1266 = vmatprep.subr.mxu0 0.0
    %1267 = vmatpush1.msra.mxu0 0.0
    %1268 = vmatprep.subr.mxu0 0.0
    %1269 = vmatpush1.msra.mxu0 0.0
    %1270 = vmatprep.subr.mxu0 0.0
    %1271 = vmatpush1.msra.mxu0 0.0
    %1272 = vmatprep.subr.mxu0 0.0
    %1273 = vmatpush1.msra.mxu0 0.0
    %1274 = vmatprep.subr.mxu0 0.0
    %1275 = vmatpush1.msra.mxu0 0.0
    %1276 = vmatprep.subr.mxu0 0.0
    %1277 = vmatpush1.msra.mxu0 0.0
    %1278 = vmatprep.subr.mxu0 0.0
    %1279 = vmatpush1.msra.mxu0 0.0
    %1280 = vmatprep.subr.mxu0 0.0
    %1281 = vmatpush1.msra.mxu0 0.0
    %1282 = vmatprep.subr.mxu0 0.0
    %1283 = vmatpush1.msra.mxu0 0.0
    %1284 = vmatprep.subr.mxu0 0.0
    %1285 = vmatpush1.msra.mxu0 0.0
    %1286 = vmatprep.subr.mxu0 0.0
    %1287 = vmatpush1.msra.mxu0 0.0
    %1288 = vmatprep.subr.mxu0 0.0
    %1289 = vmatpush1.msra.mxu0 0.0
    %1290 = vmatprep.subr.mxu0 0.0
    %1291 = vmatpush1.msra.mxu0 0.0
    %1292 = vmatprep.subr.mxu0 0.0
    %1293 = vmatpush1.msra.mxu0 0.0
    %1294 = vmatprep.subr.mxu0 0.0
    %1295 = vmatpush1.msra.mxu0 0.0
    %1296 = vmatprep.subr.mxu0 0.0
    %1297 = vmatpush1.msra.mxu0 0.0
    %1298 = vmatprep.subr.mxu0 0.0
    %1299 = vmatpush1.msra.mxu0 0.0
    %1300 = vmatprep.subr.mxu0 0.0
    %1301 = vmatpush1.msra.mxu0 0.0
    %1302 = vmatprep.subr.mxu0 0.0
    %1303 = vmatpush1.msra.mxu0 0.0
    %1304 = vmatprep.subr.mxu0 0.0
    %1305 = vmatpush1.msra.mxu0 0.0
    %1306 = vmatprep.subr.mxu0 0.0
    %1307 = vmatpush1.msra.mxu0 0.0
    %1308 = vmatprep.mubr.f32.mxu0 0.0
    %1309 = vmatmul.mubr.f32.gmra.mrb[0].mxu0 %v1242
    %v1310 = vpop.f32.mrb[0].mxu0
    %v1311 = vadd.f32 0.0, %v1310
    %v1312 = vpop.f32.mrb[0].mxu0
    %v1313 = vadd.f32 0.0, %v1312
    %1314 = vdwg.mxu0
    %v1315 = vadd.f32 %v1230, %v1311
    %v1316 = vxor.u32 %v1315, 2147483648
    %v1317 = vmul.f32 %v1316, 1.442695
    %v1318 = vpow.pop %v1317
    %v1319 = vadd.f32 %v1318, 1.0
    %v1320 = vrcp.pop %v1319
    %v1321 = vmul.f32 1.0, %v1320
    %v1322 = vadd.f32 %v1311, %v364
    %1324 = vrot.lane.b32.xlu0 %v1322, 64
    %v1325 = vpop.permute.xlu0 %1324
    %v1327 = vmul.f32 %v1321, %v1325
    %1329 = vrot.lane.b32.xlu0 %v1327, 64
    %v1330 = vpop.permute.xlu0 %1329
    %v1332 = vadd.f32 %v1230, %v1330
    %v1333 = vtanh.pop %v1332
    %v1334 = vsub.f32 %v1216, %v1333
    %1336 = vrot.lane.b32.xlu0 %v1334, 96
    %v1337 = vpop.permute.xlu0 %1336
    %v1339 = vmul.f32 %v1321, %v1337
    %1341 = vrot.lane.b32.xlu0 %v1339, 32
    %v1342 = vpop.permute.xlu0 %1341
    %v1344 = vadd.f32 %v1333, %v1342
    %v1345 = vadd.f32 %v1231, %v1313
    %v1346 = vxor.u32 %v1345, 2147483648
    %v1347 = vmul.f32 %v1346, 1.442695
    %v1348 = vpow.pop %v1347
    %v1349 = vadd.f32 %v1348, 1.0
    %v1350 = vrcp.pop %v1349
    %v1351 = vmul.f32 1.0, %v1350
    %v1352 = vadd.f32 %v1313, %v402
    %1354 = vrot.lane.b32.xlu0 %v1352, 64
    %v1355 = vpop.permute.xlu0 %1354
    %v1357 = vmul.f32 %v1351, %v1355
    %1359 = vrot.lane.b32.xlu0 %v1357, 64
    %v1360 = vpop.permute.xlu0 %1359
    %v1362 = vadd.f32 %v1231, %v1360
    %v1363 = vtanh.pop %v1362
    %v1364 = vsub.f32 %v1217, %v1363
    %1366 = vrot.lane.b32.xlu0 %v1364, 96
    %v1367 = vpop.permute.xlu0 %1366
    %v1369 = vmul.f32 %v1351, %v1367
    %1371 = vrot.lane.b32.xlu0 %v1369, 32
    %v1372 = vpop.permute.xlu0 %1371
    %v1374 = vadd.f32 %v1363, %v1372
    %v1375 = vsel %vm74, %v1344, %v1216
    %v1376 = vsel %vm69, %v1374, %v1217
    %v1377 = vsel %vm74, %v1344, 0.0
    %1379 = vrot.lane.b32.xlu0 %v1377, 64
    %v1380 = vpop.permute.xlu0 %1379
    %1382 = vst.msk [vmem:[#allocation3 + $0x30] sm:$0xff] %vm433, %v1380
    %v1383 = vsel %vm69, %v1374, 0.0
    %1385 = vrot.lane.b32.xlu0 %v1383, 64
    %v1386 = vpop.permute.xlu0 %1385
    %1388 = vst.msk [vmem:[#allocation4 + $0x8] sm:$0xff] %vm433, %v1386
    %v1389 = vld [vmem:[#allocation2 + $0x70] sm:$0xff]
    %v1390 = vld [vmem:[#allocation2 + $0x8] sm:$0xff]
    %1392 = vrot.lane.b32.xlu0 %v1375, 64
    %v1393 = vpop.permute.xlu0 %1392
    %1396 = vrot.lane.b32.xlu0 %v1376, 96
    %v1397 = vpop.permute.xlu0 %1396
    %v1399 = vsel %vm433, %v1393, %v1397
    %v1401 = vsel %vm276, %v1399, 0
    %1403 = vmatprep.subr.mxu0 %v256
    %1404 = vmatpush1.msra.mxu0 %v255
    %1405 = vmatprep.subr.mxu0 %v258
    %1406 = vmatpush1.msra.mxu0 %v257
    %1407 = vmatprep.subr.mxu0 %v260
    %1408 = vmatpush1.msra.mxu0 %v259
    %1409 = vmatprep.subr.mxu0 %v262
    %1410 = vmatpush1.msra.mxu0 %v261
    %1411 = vmatprep.subr.mxu0 %v264
    %1412 = vmatpush1.msra.mxu0 %v263
    %1413 = vmatprep.subr.mxu0 %v266
    %1414 = vmatpush1.msra.mxu0 %v265
    %1415 = vmatprep.subr.mxu0 %v268
    %1416 = vmatpush1.msra.mxu0 %v267
    %1417 = vmatprep.subr.mxu0 %v270
    %1418 = vmatpush1.msra.mxu0 %v269
    %1419 = vmatprep.subr.mxu0 0.0
    %1420 = vmatpush1.msra.mxu0 0.0
    %1421 = vmatprep.subr.mxu0 0.0
    %1422 = vmatpush1.msra.mxu0 0.0
    %1423 = vmatprep.subr.mxu0 0.0
    %1424 = vmatpush1.msra.mxu0 0.0
    %1425 = vmatprep.subr.mxu0 0.0
    %1426 = vmatpush1.msra.mxu0 0.0
    %1427 = vmatprep.subr.mxu0 0.0
    %1428 = vmatpush1.msra.mxu0 0.0
    %1429 = vmatprep.subr.mxu0 0.0
    %1430 = vmatpush1.msra.mxu0 0.0
    %1431 = vmatprep.subr.mxu0 0.0
    %1432 = vmatpush1.msra.mxu0 0.0
    %1433 = vmatprep.subr.mxu0 0.0
    %1434 = vmatpush1.msra.mxu0 0.0
    %1435 = vmatprep.subr.mxu0 0.0
    %1436 = vmatpush1.msra.mxu0 0.0
    %1437 = vmatprep.subr.mxu0 0.0
    %1438 = vmatpush1.msra.mxu0 0.0
    %1439 = vmatprep.subr.mxu0 0.0
    %1440 = vmatpush1.msra.mxu0 0.0
    %1441 = vmatprep.subr.mxu0 0.0
    %1442 = vmatpush1.msra.mxu0 0.0
    %1443 = vmatprep.subr.mxu0 0.0
    %1444 = vmatpush1.msra.mxu0 0.0
    %1445 = vmatprep.subr.mxu0 0.0
    %1446 = vmatpush1.msra.mxu0 0.0
    %1447 = vmatprep.subr.mxu0 0.0
    %1448 = vmatpush1.msra.mxu0 0.0
    %1449 = vmatprep.subr.mxu0 0.0
    %1450 = vmatpush1.msra.mxu0 0.0
    %1451 = vmatprep.subr.mxu0 0.0
    %1452 = vmatpush1.msra.mxu0 0.0
    %1453 = vmatprep.subr.mxu0 0.0
    %1454 = vmatpush1.msra.mxu0 0.0
    %1455 = vmatprep.subr.mxu0 0.0
    %1456 = vmatpush1.msra.mxu0 0.0
    %1457 = vmatprep.subr.mxu0 0.0
    %1458 = vmatpush1.msra.mxu0 0.0
    %1459 = vmatprep.subr.mxu0 0.0
    %1460 = vmatpush1.msra.mxu0 0.0
    %1461 = vmatprep.subr.mxu0 0.0
    %1462 = vmatpush1.msra.mxu0 0.0
    %1463 = vmatprep.subr.mxu0 0.0
    %1464 = vmatpush1.msra.mxu0 0.0
    %1465 = vmatprep.subr.mxu0 0.0
    %1466 = vmatpush1.msra.mxu0 0.0
    %1467 = vmatprep.mubr.f32.mxu0 0.0
    %1468 = vmatmul.mubr.f32.gmra.mrb[0].mxu0 %v1401
    %v1469 = vpop.f32.mrb[0].mxu0
    %v1470 = vadd.f32 0.0, %v1469
    %v1471 = vpop.f32.mrb[0].mxu0
    %v1472 = vadd.f32 0.0, %v1471
    %1473 = vdwg.mxu0
    %v1474 = vadd.f32 %v1389, %v1470
    %v1475 = vxor.u32 %v1474, 2147483648
    %v1476 = vmul.f32 %v1475, 1.442695
    %v1477 = vpow.pop %v1476
    %v1478 = vadd.f32 %v1477, 1.0
    %v1479 = vrcp.pop %v1478
    %v1480 = vmul.f32 1.0, %v1479
    %v1481 = vadd.f32 %v1470, %v364
    %1483 = vrot.lane.b32.xlu0 %v1481, 64
    %v1484 = vpop.permute.xlu0 %1483
    %v1486 = vmul.f32 %v1480, %v1484
    %1488 = vrot.lane.b32.xlu0 %v1486, 64
    %v1489 = vpop.permute.xlu0 %1488
    %v1491 = vadd.f32 %v1389, %v1489
    %v1492 = vtanh.pop %v1491
    %v1493 = vsub.f32 %v1375, %v1492
    %1495 = vrot.lane.b32.xlu0 %v1493, 96
    %v1496 = vpop.permute.xlu0 %1495
    %v1498 = vmul.f32 %v1480, %v1496
    %1500 = vrot.lane.b32.xlu0 %v1498, 32
    %v1501 = vpop.permute.xlu0 %1500
    %v1503 = vadd.f32 %v1492, %v1501
    %v1504 = vadd.f32 %v1390, %v1472
    %v1505 = vxor.u32 %v1504, 2147483648
    %v1506 = vmul.f32 %v1505, 1.442695
    %v1507 = vpow.pop %v1506
    %v1508 = vadd.f32 %v1507, 1.0
    %v1509 = vrcp.pop %v1508
    %v1510 = vmul.f32 1.0, %v1509
    %v1511 = vadd.f32 %v1472, %v402
    %1513 = vrot.lane.b32.xlu0 %v1511, 64
    %v1514 = vpop.permute.xlu0 %1513
    %v1516 = vmul.f32 %v1510, %v1514
    %1518 = vrot.lane.b32.xlu0 %v1516, 64
    %v1519 = vpop.permute.xlu0 %1518
    %v1521 = vadd.f32 %v1390, %v1519
    %v1522 = vtanh.pop %v1521
    %v1523 = vsub.f32 %v1376, %v1522
    %1525 = vrot.lane.b32.xlu0 %v1523, 96
    %v1526 = vpop.permute.xlu0 %1525
    %v1528 = vmul.f32 %v1510, %v1526
    %1530 = vrot.lane.b32.xlu0 %v1528, 32
    %v1531 = vpop.permute.xlu0 %1530
    %v1533 = vadd.f32 %v1522, %v1531
    %v1534 = vsel %vm75, %v1503, 0.0
    %1536 = vrot.lane.b32.xlu0 %v1534, 64
    %v1537 = vpop.permute.xlu0 %1536
    %1539 = vst.msk [vmem:[#allocation3 + $0x38] sm:$0xff] %vm433, %v1537
    %v1540 = vsel %vm68, %v1533, 0.0
    %1542 = vrot.lane.b32.xlu0 %v1540, 64
    %v1543 = vpop.permute.xlu0 %1542
    %1545 = vst.msk [vmem:[#allocation4] sm:$0xff] %vm433, %v1543
    %v1546 = vld [vmem:[#allocation3] sm:$0xff]
    %v1547 = vld [vmem:[#allocation3 + $0x8] sm:$0xff]
    %v1548 = vld [vmem:[#allocation3 + $0x10] sm:$0xff]
    %v1549 = vld [vmem:[#allocation3 + $0x18] sm:$0xff]
    %v1550 = vld [vmem:[#allocation3 + $0x20] sm:$0xff]
    %v1551 = vld [vmem:[#allocation3 + $0x28] sm:$0xff]
    %v1552 = vld [vmem:[#allocation3 + $0x30] sm:$0xff]
    %v1553 = vld [vmem:[#allocation3 + $0x38] sm:$0xff]
    %v1554 = vld [vmem:[#allocation5] sm:$0xff]
    %v1555 = vld [vmem:[#allocation5 + $0x8] sm:$0xff]
    %v1556 = vld [vmem:[#allocation5 + $0x10] sm:$0xff]
    %v1557 = vld [vmem:[#allocation5 + $0x18] sm:$0xff]
    %v1558 = vld [vmem:[#allocation5 + $0x20] sm:$0xff]
    %v1559 = vld [vmem:[#allocation5 + $0x28] sm:$0xff]
    %v1560 = vld [vmem:[#allocation5 + $0x30] sm:$0xff]
    %v1561 = vld [vmem:[#allocation5 + $0x38] sm:$0xff]
    %v1562 = vld [vmem:[#allocation4] sm:$0xff]
    %v1563 = vld [vmem:[#allocation4 + $0x8] sm:$0xff]
    %v1564 = vld [vmem:[#allocation4 + $0x10] sm:$0xff]
    %v1565 = vld [vmem:[#allocation4 + $0x18] sm:$0xff]
    %v1566 = vld [vmem:[#allocation4 + $0x20] sm:$0xff]
    %v1567 = vld [vmem:[#allocation4 + $0x28] sm:$0xff]
    %v1568 = vld [vmem:[#allocation4 + $0x30] sm:$0xff]
    %v1569 = vld [vmem:[#allocation4 + $0x38] sm:$0xff]
    %s1570 = scalar_lea.vmem [#allocation5], 64
    %v1571 = vld [vmem:[%s1570] sm:$0xff]
    %v1572 = vld [vmem:[%s1570 + $0x8] sm:$0xff]
    %v1573 = vld [vmem:[%s1570 + $0x10] sm:$0xff]
    %v1574 = vld [vmem:[%s1570 + $0x18] sm:$0xff]
    %v1575 = vld [vmem:[%s1570 + $0x20] sm:$0xff]
    %v1576 = vld [vmem:[%s1570 + $0x28] sm:$0xff]
    %v1577 = vld [vmem:[%s1570 + $0x30] sm:$0xff]
    %v1578 = vld [vmem:[%s1570 + $0x38] sm:$0xff]
    %v1580 = vsel %vm433, %v1562, 0
    %v1583 = vsel %vm433, %v1563, 0
    %v1586 = vsel %vm433, %v1564, 0
    %v1589 = vsel %vm433, %v1565, 0
    %v1592 = vsel %vm433, %v1566, 0
    %v1595 = vsel %vm433, %v1567, 0
    %v1598 = vsel %vm433, %v1568, 0
    %v1601 = vsel %vm433, %v1569, 0
    %1603 = vmatprep.subr.mxu0 %v1572
    %1604 = vmatpush1.msra.mxu0 %v1571
    %1605 = vmatprep.subr.mxu0 %v1574
    %1606 = vmatpush1.msra.mxu0 %v1573
    %1607 = vmatprep.subr.mxu0 %v1576
    %1608 = vmatpush1.msra.mxu0 %v1575
    %1609 = vmatprep.subr.mxu0 %v1578
    %1610 = vmatpush1.msra.mxu0 %v1577
    %1611 = vmatprep.subr.mxu0 0.0
    %1612 = vmatpush1.msra.mxu0 0.0
    %1613 = vmatprep.subr.mxu0 0.0
    %1614 = vmatpush1.msra.mxu0 0.0
    %1615 = vmatprep.subr.mxu0 0.0
    %1616 = vmatpush1.msra.mxu0 0.0
    %1617 = vmatprep.subr.mxu0 0.0
    %1618 = vmatpush1.msra.mxu0 0.0
    %1619 = vmatprep.subr.mxu0 0.0
    %1620 = vmatpush1.msra.mxu0 0.0
    %1621 = vmatprep.subr.mxu0 0.0
    %1622 = vmatpush1.msra.mxu0 0.0
    %1623 = vmatprep.subr.mxu0 0.0
    %1624 = vmatpush1.msra.mxu0 0.0
    %1625 = vmatprep.subr.mxu0 0.0
    %1626 = vmatpush1.msra.mxu0 0.0
    %1627 = vmatprep.subr.mxu0 0.0
    %1628 = vmatpush1.msra.mxu0 0.0
    %1629 = vmatprep.subr.mxu0 0.0
    %1630 = vmatpush1.msra.mxu0 0.0
    %1631 = vmatprep.subr.mxu0 0.0
    %1632 = vmatpush1.msra.mxu0 0.0
    %1633 = vmatprep.subr.mxu0 0.0
    %1634 = vmatpush1.msra.mxu0 0.0
    %1635 = vmatprep.subr.mxu0 0.0
    %1636 = vmatpush1.msra.mxu0 0.0
    %1637 = vmatprep.subr.mxu0 0.0
    %1638 = vmatpush1.msra.mxu0 0.0
    %1639 = vmatprep.subr.mxu0 0.0
    %1640 = vmatpush1.msra.mxu0 0.0
    %1641 = vmatprep.subr.mxu0 0.0
    %1642 = vmatpush1.msra.mxu0 0.0
    %1643 = vmatprep.subr.mxu0 0.0
    %1644 = vmatpush1.msra.mxu0 0.0
    %1645 = vmatprep.subr.mxu0 0.0
    %1646 = vmatpush1.msra.mxu0 0.0
    %1647 = vmatprep.subr.mxu0 0.0
    %1648 = vmatpush1.msra.mxu0 0.0
    %1649 = vmatprep.subr.mxu0 0.0
    %1650 = vmatpush1.msra.mxu0 0.0
    %1651 = vmatprep.subr.mxu0 0.0
    %1652 = vmatpush1.msra.mxu0 0.0
    %1653 = vmatprep.subr.mxu0 0.0
    %1654 = vmatpush1.msra.mxu0 0.0
    %1655 = vmatprep.subr.mxu0 0.0
    %1656 = vmatpush1.msra.mxu0 0.0
    %1657 = vmatprep.subr.mxu0 0.0
    %1658 = vmatpush1.msra.mxu0 0.0
    %1659 = vmatprep.subr.mxu0 0.0
    %1660 = vmatpush1.msra.mxu0 0.0
    %1661 = vmatprep.subr.mxu0 0.0
    %1662 = vmatpush1.msra.mxu0 0.0
    %1663 = vmatprep.subr.mxu0 0.0
    %1664 = vmatpush1.msra.mxu0 0.0
    %1665 = vmatprep.subr.mxu0 0.0
    %1666 = vmatpush1.msra.mxu0 0.0
    %1667 = vmatprep.mubr.f32.mxu0 0.0
    %1668 = vmatmul.mubr.f32.gmra.mrb[0].mxu0 %v1580
    %v1669 = vpop.f32.mrb[0].mxu0
    %v1670 = vadd.f32 0.0, %v1669
    %v1671 = vpop.f32.mrb[0].mxu0
    %v1672 = vadd.f32 0.0, %v1671
    %1673 = vmatprep.mubr.f32.mxu0 0.0
    %1674 = vmatmul.mubr.f32.gmra.mrb[0].mxu0 %v1583
    %v1675 = vpop.f32.mrb[0].mxu0
    %v1676 = vadd.f32 0.0, %v1675
    %v1677 = vpop.f32.mrb[0].mxu0
    %v1678 = vadd.f32 0.0, %v1677
    %1679 = vmatprep.mubr.f32.mxu0 0.0
    %1680 = vmatmul.mubr.f32.gmra.mrb[0].mxu0 %v1586
    %v1681 = vpop.f32.mrb[0].mxu0
    %v1682 = vadd.f32 0.0, %v1681
    %v1683 = vpop.f32.mrb[0].mxu0
    %v1684 = vadd.f32 0.0, %v1683
    %1685 = vmatprep.mubr.f32.mxu0 0.0
    %1686 = vmatmul.mubr.f32.gmra.mrb[0].mxu0 %v1589
    %v1687 = vpop.f32.mrb[0].mxu0
    %v1688 = vadd.f32 0.0, %v1687
    %v1689 = vpop.f32.mrb[0].mxu0
    %v1690 = vadd.f32 0.0, %v1689
    %1691 = vmatprep.mubr.f32.mxu0 0.0
    %1692 = vmatmul.mubr.f32.gmra.mrb[0].mxu0 %v1592
    %v1693 = vpop.f32.mrb[0].mxu0
    %v1694 = vadd.f32 0.0, %v1693
    %v1695 = vpop.f32.mrb[0].mxu0
    %v1696 = vadd.f32 0.0, %v1695
    %1697 = vmatprep.mubr.f32.mxu0 0.0
    %1698 = vmatmul.mubr.f32.gmra.mrb[0].mxu0 %v1595
    %v1699 = vpop.f32.mrb[0].mxu0
    %v1700 = vadd.f32 0.0, %v1699
    %v1701 = vpop.f32.mrb[0].mxu0
    %v1702 = vadd.f32 0.0, %v1701
    %1703 = vmatprep.mubr.f32.mxu0 0.0
    %1704 = vmatmul.mubr.f32.gmra.mrb[0].mxu0 %v1598
    %v1705 = vpop.f32.mrb[0].mxu0
    %v1706 = vadd.f32 0.0, %v1705
    %v1707 = vpop.f32.mrb[0].mxu0
    %v1708 = vadd.f32 0.0, %v1707
    %1709 = vmatprep.mubr.f32.mxu0 0.0
    %1710 = vmatmul.mubr.f32.gmra.mrb[0].mxu0 %v1601
    %v1711 = vpop.f32.mrb[0].mxu0
    %v1712 = vadd.f32 0.0, %v1711
    %v1713 = vpop.f32.mrb[0].mxu0
    %v1714 = vadd.f32 0.0, %v1713
    %1715 = vdwg.mxu0
    %v1717 = vsel %vm433, %v1546, 0
    %v1720 = vsel %vm433, %v1547, 0
    %v1723 = vsel %vm433, %v1548, 0
    %v1726 = vsel %vm433, %v1549, 0
    %v1729 = vsel %vm433, %v1550, 0
    %v1732 = vsel %vm433, %v1551, 0
    %v1735 = vsel %vm433, %v1552, 0
    %v1738 = vsel %vm433, %v1553, 0
    %1740 = vmatprep.subr.mxu0 %v1555
    %1741 = vmatpush1.msra.mxu0 %v1554
    %1742 = vmatprep.subr.mxu0 %v1557
    %1743 = vmatpush1.msra.mxu0 %v1556
    %1744 = vmatprep.subr.mxu0 %v1559
    %1745 = vmatpush1.msra.mxu0 %v1558
    %1746 = vmatprep.subr.mxu0 %v1561
    %1747 = vmatpush1.msra.mxu0 %v1560
    %1748 = vmatprep.subr.mxu0 0.0
    %1749 = vmatpush1.msra.mxu0 0.0
    %1750 = vmatprep.subr.mxu0 0.0
    %1751 = vmatpush1.msra.mxu0 0.0
    %1752 = vmatprep.subr.mxu0 0.0
    %1753 = vmatpush1.msra.mxu0 0.0
    %1754 = vmatprep.subr.mxu0 0.0
    %1755 = vmatpush1.msra.mxu0 0.0
    %1756 = vmatprep.subr.mxu0 0.0
    %1757 = vmatpush1.msra.mxu0 0.0
    %1758 = vmatprep.subr.mxu0 0.0
    %1759 = vmatpush1.msra.mxu0 0.0
    %1760 = vmatprep.subr.mxu0 0.0
    %1761 = vmatpush1.msra.mxu0 0.0
    %1762 = vmatprep.subr.mxu0 0.0
    %1763 = vmatpush1.msra.mxu0 0.0
    %1764 = vmatprep.subr.mxu0 0.0
    %1765 = vmatpush1.msra.mxu0 0.0
    %1766 = vmatprep.subr.mxu0 0.0
    %1767 = vmatpush1.msra.mxu0 0.0
    %1768 = vmatprep.subr.mxu0 0.0
    %1769 = vmatpush1.msra.mxu0 0.0
    %1770 = vmatprep.subr.mxu0 0.0
    %1771 = vmatpush1.msra.mxu0 0.0
    %1772 = vmatprep.subr.mxu0 0.0
    %1773 = vmatpush1.msra.mxu0 0.0
    %1774 = vmatprep.subr.mxu0 0.0
    %1775 = vmatpush1.msra.mxu0 0.0
    %1776 = vmatprep.subr.mxu0 0.0
    %1777 = vmatpush1.msra.mxu0 0.0
    %1778 = vmatprep.subr.mxu0 0.0
    %1779 = vmatpush1.msra.mxu0 0.0
    %1780 = vmatprep.subr.mxu0 0.0
    %1781 = vmatpush1.msra.mxu0 0.0
    %1782 = vmatprep.subr.mxu0 0.0
    %1783 = vmatpush1.msra.mxu0 0.0
    %1784 = vmatprep.subr.mxu0 0.0
    %1785 = vmatpush1.msra.mxu0 0.0
    %1786 = vmatprep.subr.mxu0 0.0
    %1787 = vmatpush1.msra.mxu0 0.0
    %1788 = vmatprep.subr.mxu0 0.0
    %1789 = vmatpush1.msra.mxu0 0.0
    %1790 = vmatprep.subr.mxu0 0.0
    %1791 = vmatpush1.msra.mxu0 0.0
    %1792 = vmatprep.subr.mxu0 0.0
    %1793 = vmatpush1.msra.mxu0 0.0
    %1794 = vmatprep.subr.mxu0 0.0
    %1795 = vmatpush1.msra.mxu0 0.0
    %1796 = vmatprep.subr.mxu0 0.0
    %1797 = vmatpush1.msra.mxu0 0.0
    %1798 = vmatprep.subr.mxu0 0.0
    %1799 = vmatpush1.msra.mxu0 0.0
    %1800 = vmatprep.subr.mxu0 0.0
    %1801 = vmatpush1.msra.mxu0 0.0
    %1802 = vmatprep.subr.mxu0 0.0
    %1803 = vmatpush1.msra.mxu0 0.0
    %1804 = vmatprep.mubr.f32.mxu0 0.0
    %1805 = vmatmul.mubr.f32.gmra.mrb[0].mxu0 %v1717
    %v1806 = vpop.f32.mrb[0].mxu0
    %v1807 = vadd.f32 %v1670, %v1806
    %v1808 = vpop.f32.mrb[0].mxu0
    %v1809 = vadd.f32 %v1672, %v1808
    %1810 = vmatprep.mubr.f32.mxu0 0.0
    %1811 = vmatmul.mubr.f32.gmra.mrb[0].mxu0 %v1720
    %v1812 = vpop.f32.mrb[0].mxu0
    %v1813 = vadd.f32 %v1676, %v1812
    %v1814 = vpop.f32.mrb[0].mxu0
    %v1815 = vadd.f32 %v1678, %v1814
    %1816 = vmatprep.mubr.f32.mxu0 0.0
    %1817 = vmatmul.mubr.f32.gmra.mrb[0].mxu0 %v1723
    %v1818 = vpop.f32.mrb[0].mxu0
    %v1819 = vadd.f32 %v1682, %v1818
    %v1820 = vpop.f32.mrb[0].mxu0
    %v1821 = vadd.f32 %v1684, %v1820
    %1822 = vmatprep.mubr.f32.mxu0 0.0
    %1823 = vmatmul.mubr.f32.gmra.mrb[0].mxu0 %v1726
    %v1824 = vpop.f32.mrb[0].mxu0
    %v1825 = vadd.f32 %v1688, %v1824
    %v1826 = vpop.f32.mrb[0].mxu0
    %v1827 = vadd.f32 %v1690, %v1826
    %1828 = vmatprep.mubr.f32.mxu0 0.0
    %1829 = vmatmul.mubr.f32.gmra.mrb[0].mxu0 %v1729
    %v1830 = vpop.f32.mrb[0].mxu0
    %v1831 = vadd.f32 %v1694, %v1830
    %v1832 = vpop.f32.mrb[0].mxu0
    %v1833 = vadd.f32 %v1696, %v1832
    %1834 = vmatprep.mubr.f32.mxu0 0.0
    %1835 = vmatmul.mubr.f32.gmra.mrb[0].mxu0 %v1732
    %v1836 = vpop.f32.mrb[0].mxu0
    %v1837 = vadd.f32 %v1700, %v1836
    %v1838 = vpop.f32.mrb[0].mxu0
    %v1839 = vadd.f32 %v1702, %v1838
    %1840 = vmatprep.mubr.f32.mxu0 0.0
    %1841 = vmatmul.mubr.f32.gmra.mrb[0].mxu0 %v1735
    %v1842 = vpop.f32.mrb[0].mxu0
    %v1843 = vadd.f32 %v1706, %v1842
    %v1844 = vpop.f32.mrb[0].mxu0
    %v1845 = vadd.f32 %v1708, %v1844
    %1846 = vmatprep.mubr.f32.mxu0 0.0
    %1847 = vmatmul.mubr.f32.gmra.mrb[0].mxu0 %v1738
    %v1848 = vpop.f32.mrb[0].mxu0
    %v1849 = vadd.f32 %v1712, %v1848
    %v1850 = vpop.f32.mrb[0].mxu0
    %v1851 = vadd.f32 %v1714, %v1850
    %1852 = vdwg.mxu0
    %v1853 = vld [vmem:[%s5] sm:$0x3]
    %v1855 = vlaneseq
    %v1856 = vshrl.u32 %v1855, 7
    %v1857 = vsub.s32 0, %v1856
    %v1858 = vrot.slane %v1853, %v1857
    %v1859 = vlaneseq
    %v1860 = vshrl.u32 %v1859, 7
    %v1861 = vsub.s32 1, %v1860
    %v1862 = vrot.slane %v1853, %v1861
    %v1865 = vadd.f32 %v1807, %v1858
    %v1866 = vadd.f32 %v1809, %v1862
    %v1867 = vadd.f32 %v1813, %v1858
    %v1868 = vadd.f32 %v1815, %v1862
    %v1869 = vadd.f32 %v1819, %v1858
    %v1870 = vadd.f32 %v1821, %v1862
    %v1871 = vadd.f32 %v1825, %v1858
    %v1872 = vadd.f32 %v1827, %v1862
    %v1873 = vadd.f32 %v1831, %v1858
    %v1874 = vadd.f32 %v1833, %v1862
    %v1875 = vadd.f32 %v1837, %v1858
    %v1876 = vadd.f32 %v1839, %v1862
    %v1877 = vadd.f32 %v1843, %v1858
    %v1878 = vadd.f32 %v1845, %v1862
    %v1879 = vadd.f32 %v1849, %v1858
    %v1880 = vadd.f32 %v1851, %v1862
    %1881 = vst [vmem:[#allocation2] sm:$0xff] %v1865
    %1882 = vst.msk [vmem:[#allocation2 + $0x8] sm:$0xff] %vm239, %v1866
    %1883 = vst [vmem:[#allocation2 + $0x10] sm:$0xff] %v1867
    %1884 = vst.msk [vmem:[#allocation2 + $0x18] sm:$0xff] %vm239, %v1868
    %1885 = vst [vmem:[#allocation2 + $0x20] sm:$0xff] %v1869
    %1886 = vst.msk [vmem:[#allocation2 + $0x28] sm:$0xff] %vm239, %v1870
    %1887 = vst [vmem:[#allocation2 + $0x30] sm:$0xff] %v1871
    %1888 = vst.msk [vmem:[#allocation2 + $0x38] sm:$0xff] %vm239, %v1872
    %1889 = vst [vmem:[#allocation2 + $0x40] sm:$0xff] %v1873
    %1890 = vst.msk [vmem:[#allocation2 + $0x48] sm:$0xff] %vm239, %v1874
    %1891 = vst [vmem:[#allocation2 + $0x50] sm:$0xff] %v1875
    %1892 = vst.msk [vmem:[#allocation2 + $0x58] sm:$0xff] %vm239, %v1876
    %1893 = vst [vmem:[#allocation2 + $0x60] sm:$0xff] %v1877
    %1894 = vst.msk [vmem:[#allocation2 + $0x68] sm:$0xff] %vm239, %v1878
    %1895 = vst [vmem:[#allocation2 + $0x70] sm:$0xff] %v1879
    %1896 = vst.msk [vmem:[#allocation2 + $0x78] sm:$0xff] %vm239, %v1880
    %s1897 = scalar_lea.vmem [#allocation8], 128
    %v1898 = vld [vmem:[%s1897] sm:$0xff]
    %v1899 = vld [vmem:[%s1897 + $0x8] sm:$0xff]
    %v1900 = vld [vmem:[%s1897 + $0x10] sm:$0xff]
    %v1901 = vld [vmem:[%s1897 + $0x18] sm:$0xff]
    %v1902 = vld [vmem:[%s1897 + $0x20] sm:$0xff]
    %v1903 = vld [vmem:[%s1897 + $0x28] sm:$0xff]
    %v1904 = vld [vmem:[%s1897 + $0x30] sm:$0xff]
    %v1905 = vld [vmem:[%s1897 + $0x38] sm:$0xff]
    %v1906 = vld [vmem:[%s1897 + $0x40] sm:$0xff]
    %v1907 = vld [vmem:[%s1897 + $0x48] sm:$0xff]
    %v1908 = vld [vmem:[%s1897 + $0x50] sm:$0xff]
    %v1909 = vld [vmem:[%s1897 + $0x58] sm:$0xff]
    %v1910 = vld [vmem:[%s1897 + $0x60] sm:$0xff]
    %v1911 = vld [vmem:[%s1897 + $0x68] sm:$0xff]
    %v1912 = vld [vmem:[%s1897 + $0x70] sm:$0xff]
    %v1913 = vld [vmem:[%s1897 + $0x78] sm:$0xff]
    %s1914 = scalar_lea.vmem %s7, 2
    %v1915 = vld [vmem:[%s1914] sm:$0x1]
    %s1916 = scalar_lea.vmem %s7, 3
    %v1917 = vld [vmem:[%s1916] sm:$0x1]
    %v1918 = vld [vmem:[#allocation2] sm:$0xff]
    %v1919 = vld [vmem:[#allocation2 + $0x8] sm:$0xff]
    %v1920 = vld [vmem:[#allocation2 + $0x70] sm:$0xff]
    %v1921 = vld [vmem:[#allocation2 + $0x78] sm:$0xff]
    %1922 = vmatprep.subr.mxu0 %v1899
    %1923 = vmatpush1.msra.mxu0 %v1898
    %1924 = vmatprep.subr.mxu0 %v1901
    %1925 = vmatpush1.msra.mxu0 %v1900
    %1926 = vmatprep.subr.mxu0 %v1903
    %1927 = vmatpush1.msra.mxu0 %v1902
    %1928 = vmatprep.subr.mxu0 %v1905
    %1929 = vmatpush1.msra.mxu0 %v1904
    %1930 = vmatprep.subr.mxu0 %v1907
    %1931 = vmatpush1.msra.mxu0 %v1906
    %1932 = vmatprep.subr.mxu0 %v1909
    %1933 = vmatpush1.msra.mxu0 %v1908
    %1934 = vmatprep.subr.mxu0 %v1911
    %1935 = vmatpush1.msra.mxu0 %v1910
    %1936 = vmatprep.subr.mxu0 %v1913
    %1937 = vmatpush1.msra.mxu0 %v1912
    %1938 = vmatprep.subr.mxu0 0.0
    %1939 = vmatpush1.msra.mxu0 0.0
    %1940 = vmatprep.subr.mxu0 0.0
    %1941 = vmatpush1.msra.mxu0 0.0
    %1942 = vmatprep.subr.mxu0 0.0
    %1943 = vmatpush1.msra.mxu0 0.0
    %1944 = vmatprep.subr.mxu0 0.0
    %1945 = vmatpush1.msra.mxu0 0.0
    %1946 = vmatprep.subr.mxu0 0.0
    %1947 = vmatpush1.msra.mxu0 0.0
    %1948 = vmatprep.subr.mxu0 0.0
    %1949 = vmatpush1.msra.mxu0 0.0
    %1950 = vmatprep.subr.mxu0 0.0
    %1951 = vmatpush1.msra.mxu0 0.0
    %1952 = vmatprep.subr.mxu0 0.0
    %1953 = vmatpush1.msra.mxu0 0.0
    %1954 = vmatprep.subr.mxu0 0.0
    %1955 = vmatpush1.msra.mxu0 0.0
    %1956 = vmatprep.subr.mxu0 0.0
    %1957 = vmatpush1.msra.mxu0 0.0
    %1958 = vmatprep.subr.mxu0 0.0
    %1959 = vmatpush1.msra.mxu0 0.0
    %1960 = vmatprep.subr.mxu0 0.0
    %1961 = vmatpush1.msra.mxu0 0.0
    %1962 = vmatprep.subr.mxu0 0.0
    %1963 = vmatpush1.msra.mxu0 0.0
    %1964 = vmatprep.subr.mxu0 0.0
    %1965 = vmatpush1.msra.mxu0 0.0
    %1966 = vmatprep.subr.mxu0 0.0
    %1967 = vmatpush1.msra.mxu0 0.0
    %1968 = vmatprep.subr.mxu0 0.0
    %1969 = vmatpush1.msra.mxu0 0.0
    %1970 = vmatprep.subr.mxu0 0.0
    %1971 = vmatpush1.msra.mxu0 0.0
    %1972 = vmatprep.subr.mxu0 0.0
    %1973 = vmatpush1.msra.mxu0 0.0
    %1974 = vmatprep.subr.mxu0 0.0
    %1975 = vmatpush1.msra.mxu0 0.0
    %1976 = vmatprep.subr.mxu0 0.0
    %1977 = vmatpush1.msra.mxu0 0.0
    %1978 = vmatprep.subr.mxu0 0.0
    %1979 = vmatpush1.msra.mxu0 0.0
    %1980 = vmatprep.subr.mxu0 0.0
    %1981 = vmatpush1.msra.mxu0 0.0
    %1982 = vmatprep.subr.mxu0 0.0
    %1983 = vmatpush1.msra.mxu0 0.0
    %1984 = vmatprep.subr.mxu0 0.0
    %1985 = vmatpush1.msra.mxu0 0.0
    %1986 = vmatprep.mubr.f32.mxu0 0.0
    %1987 = vmatmul.mubr.f32.gmra.mrb[0].mxu0 %v278
    %v1988 = vpop.f32.mrb[0].mxu0
    %v1989 = vadd.f32 0.0, %v1988
    %v1990 = vpop.f32.mrb[0].mxu0
    %v1991 = vadd.f32 0.0, %v1990
    %1992 = vdwg.mxu0
    %v1993 = vadd.f32 %v1918, %v1989
    %v1994 = vxor.u32 %v1993, 2147483648
    %v1995 = vmul.f32 %v1994, 1.442695
    %v1996 = vpow.pop %v1995
    %v1997 = vadd.f32 %v1996, 1.0
    %v1998 = vrcp.pop %v1997
    %v1999 = vmul.f32 1.0, %v1998
    %v2001 = vlaneseq
    %v2002 = vshrl.u32 %v2001, 7
    %v2003 = vsub.s32 0, %v2002
    %v2004 = vrot.slane %v1915, %v2003
    %2005 = vrot.lane.b32.xlu0 %v2004, 64
    %v2006 = vpop.permute.xlu0 %2005
    %v2008 = vadd.f32 %v1989, %v2006
    %2010 = vrot.lane.b32.xlu0 %v2008, 64
    %v2011 = vpop.permute.xlu0 %2010
    %v2013 = vmul.f32 %v1999, %v2011
    %2015 = vrot.lane.b32.xlu0 %v2013, 64
    %v2016 = vpop.permute.xlu0 %2015
    %v2018 = vadd.f32 %v1918, %v2016
    %v2019 = vtanh.pop %v2018
    %v2020 = vsub.f32 0.0, %v2019
    %2022 = vrot.lane.b32.xlu0 %v2020, 96
    %v2023 = vpop.permute.xlu0 %2022
    %v2025 = vmul.f32 %v1999, %v2023
    %2027 = vrot.lane.b32.xlu0 %v2025, 32
    %v2028 = vpop.permute.xlu0 %2027
    %v2030 = vadd.f32 %v2019, %v2028
    %v2031 = vadd.f32 %v1921, %v1991
    %v2032 = vxor.u32 %v2031, 2147483648
    %v2033 = vmul.f32 %v2032, 1.442695
    %v2034 = vpow.pop %v2033
    %v2035 = vadd.f32 %v2034, 1.0
    %v2036 = vrcp.pop %v2035
    %v2037 = vmul.f32 1.0, %v2036
    %v2039 = vlaneseq
    %v2040 = vshrl.u32 %v2039, 7
    %v2041 = vsub.s32 0, %v2040
    %v2042 = vrot.slane %v1917, %v2041
    %2043 = vrot.lane.b32.xlu0 %v2042, 64
    %v2044 = vpop.permute.xlu0 %2043
    %v2046 = vadd.f32 %v1991, %v2044
    %2048 = vrot.lane.b32.xlu0 %v2046, 64
    %v2049 = vpop.permute.xlu0 %2048
    %v2051 = vmul.f32 %v2037, %v2049
    %2053 = vrot.lane.b32.xlu0 %v2051, 64
    %v2054 = vpop.permute.xlu0 %2053
    %v2056 = vadd.f32 %v1921, %v2054
    %v2057 = vtanh.pop %v2056
    %v2058 = vsub.f32 0.0, %v2057
    %2060 = vrot.lane.b32.xlu0 %v2058, 96
    %v2061 = vpop.permute.xlu0 %2060
    %v2063 = vmul.f32 %v2037, %v2061
    %2065 = vrot.lane.b32.xlu0 %v2063, 32
    %v2066 = vpop.permute.xlu0 %2065
    %v2068 = vadd.f32 %v2057, %v2066
    %v2069 = vsel %vm68, %v2030, 0.0
    %v2070 = vsel %vm75, %v2068, 0.0
    %vm2071 = vcmp.eq.s32.totalorder %v67, 8
    %v2072 = vsel %vm2071, %v2068, 0.0
    %v2073 = vld [vmem:[#allocation2 + $0x10] sm:$0xff]
    %v2074 = vld [vmem:[#allocation2 + $0x18] sm:$0xff]
    %v2075 = vld [vmem:[#allocation2 + $0x60] sm:$0xff]
    %v2076 = vld [vmem:[#allocation2 + $0x68] sm:$0xff]
    %2078 = vrot.lane.b32.xlu0 %v2069, 64
    %v2079 = vpop.permute.xlu0 %2078
    %2082 = vrot.lane.b32.xlu0 %v2070, 96
    %v2083 = vpop.permute.xlu0 %2082
    %v2085 = vsel %vm433, %v2079, %v2083
    %v2087 = vsel %vm276, %v2085, 0
    %2089 = vmatprep.subr.mxu0 %v1899
    %2090 = vmatpush1.msra.mxu0 %v1898
    %2091 = vmatprep.subr.mxu0 %v1901
    %2092 = vmatpush1.msra.mxu0 %v1900
    %2093 = vmatprep.subr.mxu0 %v1903
    %2094 = vmatpush1.msra.mxu0 %v1902
    %2095 = vmatprep.subr.mxu0 %v1905
    %2096 = vmatpush1.msra.mxu0 %v1904
    %2097 = vmatprep.subr.mxu0 %v1907
    %2098 = vmatpush1.msra.mxu0 %v1906
    %2099 = vmatprep.subr.mxu0 %v1909
    %2100 = vmatpush1.msra.mxu0 %v1908
    %2101 = vmatprep.subr.mxu0 %v1911
    %2102 = vmatpush1.msra.mxu0 %v1910
    %2103 = vmatprep.subr.mxu0 %v1913
    %2104 = vmatpush1.msra.mxu0 %v1912
    %2105 = vmatprep.subr.mxu0 0.0
    %2106 = vmatpush1.msra.mxu0 0.0
    %2107 = vmatprep.subr.mxu0 0.0
    %2108 = vmatpush1.msra.mxu0 0.0
    %2109 = vmatprep.subr.mxu0 0.0
    %2110 = vmatpush1.msra.mxu0 0.0
    %2111 = vmatprep.subr.mxu0 0.0
    %2112 = vmatpush1.msra.mxu0 0.0
    %2113 = vmatprep.subr.mxu0 0.0
    %2114 = vmatpush1.msra.mxu0 0.0
    %2115 = vmatprep.subr.mxu0 0.0
    %2116 = vmatpush1.msra.mxu0 0.0
    %2117 = vmatprep.subr.mxu0 0.0
    %2118 = vmatpush1.msra.mxu0 0.0
    %2119 = vmatprep.subr.mxu0 0.0
    %2120 = vmatpush1.msra.mxu0 0.0
    %2121 = vmatprep.subr.mxu0 0.0
    %2122 = vmatpush1.msra.mxu0 0.0
    %2123 = vmatprep.subr.mxu0 0.0
    %2124 = vmatpush1.msra.mxu0 0.0
    %2125 = vmatprep.subr.mxu0 0.0
    %2126 = vmatpush1.msra.mxu0 0.0
    %2127 = vmatprep.subr.mxu0 0.0
    %2128 = vmatpush1.msra.mxu0 0.0
    %2129 = vmatprep.subr.mxu0 0.0
    %2130 = vmatpush1.msra.mxu0 0.0
    %2131 = vmatprep.subr.mxu0 0.0
    %2132 = vmatpush1.msra.mxu0 0.0
    %2133 = vmatprep.subr.mxu0 0.0
    %2134 = vmatpush1.msra.mxu0 0.0
    %2135 = vmatprep.subr.mxu0 0.0
    %2136 = vmatpush1.msra.mxu0 0.0
    %2137 = vmatprep.subr.mxu0 0.0
    %2138 = vmatpush1.msra.mxu0 0.0
    %2139 = vmatprep.subr.mxu0 0.0
    %2140 = vmatpush1.msra.mxu0 0.0
    %2141 = vmatprep.subr.mxu0 0.0
    %2142 = vmatpush1.msra.mxu0 0.0
    %2143 = vmatprep.subr.mxu0 0.0
    %2144 = vmatpush1.msra.mxu0 0.0
    %2145 = vmatprep.subr.mxu0 0.0
    %2146 = vmatpush1.msra.mxu0 0.0
    %2147 = vmatprep.subr.mxu0 0.0
    %2148 = vmatpush1.msra.mxu0 0.0
    %2149 = vmatprep.subr.mxu0 0.0
    %2150 = vmatpush1.msra.mxu0 0.0
    %2151 = vmatprep.subr.mxu0 0.0
    %2152 = vmatpush1.msra.mxu0 0.0
    %2153 = vmatprep.mubr.f32.mxu0 0.0
    %2154 = vmatmul.mubr.f32.gmra.mrb[0].mxu0 %v2087
    %v2155 = vpop.f32.mrb[0].mxu0
    %v2156 = vadd.f32 0.0, %v2155
    %v2157 = vpop.f32.mrb[0].mxu0
    %v2158 = vadd.f32 0.0, %v2157
    %2159 = vdwg.mxu0
    %v2160 = vadd.f32 %v2073, %v2156
    %v2161 = vxor.u32 %v2160, 2147483648
    %v2162 = vmul.f32 %v2161, 1.442695
    %v2163 = vpow.pop %v2162
    %v2164 = vadd.f32 %v2163, 1.0
    %v2165 = vrcp.pop %v2164
    %v2166 = vmul.f32 1.0, %v2165
    %v2167 = vadd.f32 %v2156, %v2006
    %2169 = vrot.lane.b32.xlu0 %v2167, 64
    %v2170 = vpop.permute.xlu0 %2169
    %v2172 = vmul.f32 %v2166, %v2170
    %2174 = vrot.lane.b32.xlu0 %v2172, 64
    %v2175 = vpop.permute.xlu0 %2174
    %v2177 = vadd.f32 %v2073, %v2175
    %v2178 = vtanh.pop %v2177
    %v2179 = vsub.f32 %v2069, %v2178
    %2181 = vrot.lane.b32.xlu0 %v2179, 96
    %v2182 = vpop.permute.xlu0 %2181
    %v2184 = vmul.f32 %v2166, %v2182
    %2186 = vrot.lane.b32.xlu0 %v2184, 32
    %v2187 = vpop.permute.xlu0 %2186
    %v2189 = vadd.f32 %v2178, %v2187
    %v2190 = vadd.f32 %v2076, %v2158
    %v2191 = vxor.u32 %v2190, 2147483648
    %v2192 = vmul.f32 %v2191, 1.442695
    %v2193 = vpow.pop %v2192
    %v2194 = vadd.f32 %v2193, 1.0
    %v2195 = vrcp.pop %v2194
    %v2196 = vmul.f32 1.0, %v2195
    %v2197 = vadd.f32 %v2158, %v2044
    %2199 = vrot.lane.b32.xlu0 %v2197, 64
    %v2200 = vpop.permute.xlu0 %2199
    %v2202 = vmul.f32 %v2196, %v2200
    %2204 = vrot.lane.b32.xlu0 %v2202, 64
    %v2205 = vpop.permute.xlu0 %2204
    %v2207 = vadd.f32 %v2076, %v2205
    %v2208 = vtanh.pop %v2207
    %v2209 = vsub.f32 %v2070, %v2208
    %2211 = vrot.lane.b32.xlu0 %v2209, 96
    %v2212 = vpop.permute.xlu0 %2211
    %v2214 = vmul.f32 %v2196, %v2212
    %2216 = vrot.lane.b32.xlu0 %v2214, 32
    %v2217 = vpop.permute.xlu0 %2216
    %v2219 = vadd.f32 %v2208, %v2217
    %v2220 = vsel %vm69, %v2189, %v2069
    %v2221 = vsel %vm74, %v2219, %v2070
    %vm2222 = vcmp.eq.s32.totalorder %v67, 7
    %v2223 = vsel %vm2222, %v2219, %v2072
    %v2224 = vld [vmem:[#allocation2 + $0x20] sm:$0xff]
    %v2225 = vld [vmem:[#allocation2 + $0x28] sm:$0xff]
    %v2226 = vld [vmem:[#allocation2 + $0x50] sm:$0xff]
    %v2227 = vld [vmem:[#allocation2 + $0x58] sm:$0xff]
    %2229 = vrot.lane.b32.xlu0 %v2220, 64
    %v2230 = vpop.permute.xlu0 %2229
    %2233 = vrot.lane.b32.xlu0 %v2221, 96
    %v2234 = vpop.permute.xlu0 %2233
    %v2236 = vsel %vm433, %v2230, %v2234
    %v2238 = vsel %vm276, %v2236, 0
    %2240 = vmatprep.subr.mxu0 %v1899
    %2241 = vmatpush1.msra.mxu0 %v1898
    %2242 = vmatprep.subr.mxu0 %v1901
    %2243 = vmatpush1.msra.mxu0 %v1900
    %2244 = vmatprep.subr.mxu0 %v1903
    %2245 = vmatpush1.msra.mxu0 %v1902
    %2246 = vmatprep.subr.mxu0 %v1905
    %2247 = vmatpush1.msra.mxu0 %v1904
    %2248 = vmatprep.subr.mxu0 %v1907
    %2249 = vmatpush1.msra.mxu0 %v1906
    %2250 = vmatprep.subr.mxu0 %v1909
    %2251 = vmatpush1.msra.mxu0 %v1908
    %2252 = vmatprep.subr.mxu0 %v1911
    %2253 = vmatpush1.msra.mxu0 %v1910
    %2254 = vmatprep.subr.mxu0 %v1913
    %2255 = vmatpush1.msra.mxu0 %v1912
    %2256 = vmatprep.subr.mxu0 0.0
    %2257 = vmatpush1.msra.mxu0 0.0
    %2258 = vmatprep.subr.mxu0 0.0
    %2259 = vmatpush1.msra.mxu0 0.0
    %2260 = vmatprep.subr.mxu0 0.0
    %2261 = vmatpush1.msra.mxu0 0.0
    %2262 = vmatprep.subr.mxu0 0.0
    %2263 = vmatpush1.msra.mxu0 0.0
    %2264 = vmatprep.subr.mxu0 0.0
    %2265 = vmatpush1.msra.mxu0 0.0
    %2266 = vmatprep.subr.mxu0 0.0
    %2267 = vmatpush1.msra.mxu0 0.0
    %2268 = vmatprep.subr.mxu0 0.0
    %2269 = vmatpush1.msra.mxu0 0.0
    %2270 = vmatprep.subr.mxu0 0.0
    %2271 = vmatpush1.msra.mxu0 0.0
    %2272 = vmatprep.subr.mxu0 0.0
    %2273 = vmatpush1.msra.mxu0 0.0
    %2274 = vmatprep.subr.mxu0 0.0
    %2275 = vmatpush1.msra.mxu0 0.0
    %2276 = vmatprep.subr.mxu0 0.0
    %2277 = vmatpush1.msra.mxu0 0.0
    %2278 = vmatprep.subr.mxu0 0.0
    %2279 = vmatpush1.msra.mxu0 0.0
    %2280 = vmatprep.subr.mxu0 0.0
    %2281 = vmatpush1.msra.mxu0 0.0
    %2282 = vmatprep.subr.mxu0 0.0
    %2283 = vmatpush1.msra.mxu0 0.0
    %2284 = vmatprep.subr.mxu0 0.0
    %2285 = vmatpush1.msra.mxu0 0.0
    %2286 = vmatprep.subr.mxu0 0.0
    %2287 = vmatpush1.msra.mxu0 0.0
    %2288 = vmatprep.subr.mxu0 0.0
    %2289 = vmatpush1.msra.mxu0 0.0
    %2290 = vmatprep.subr.mxu0 0.0
    %2291 = vmatpush1.msra.mxu0 0.0
    %2292 = vmatprep.subr.mxu0 0.0
    %2293 = vmatpush1.msra.mxu0 0.0
    %2294 = vmatprep.subr.mxu0 0.0
    %2295 = vmatpush1.msra.mxu0 0.0
    %2296 = vmatprep.subr.mxu0 0.0
    %2297 = vmatpush1.msra.mxu0 0.0
    %2298 = vmatprep.subr.mxu0 0.0
    %2299 = vmatpush1.msra.mxu0 0.0
    %2300 = vmatprep.subr.mxu0 0.0
    %2301 = vmatpush1.msra.mxu0 0.0
    %2302 = vmatprep.subr.mxu0 0.0
    %2303 = vmatpush1.msra.mxu0 0.0
    %2304 = vmatprep.mubr.f32.mxu0 0.0
    %2305 = vmatmul.mubr.f32.gmra.mrb[0].mxu0 %v2238
    %v2306 = vpop.f32.mrb[0].mxu0
    %v2307 = vadd.f32 0.0, %v2306
    %v2308 = vpop.f32.mrb[0].mxu0
    %v2309 = vadd.f32 0.0, %v2308
    %2310 = vdwg.mxu0
    %v2311 = vadd.f32 %v2224, %v2307
    %v2312 = vxor.u32 %v2311, 2147483648
    %v2313 = vmul.f32 %v2312, 1.442695
    %v2314 = vpow.pop %v2313
    %v2315 = vadd.f32 %v2314, 1.0
    %v2316 = vrcp.pop %v2315
    %v2317 = vmul.f32 1.0, %v2316
    %v2318 = vadd.f32 %v2307, %v2006
    %2320 = vrot.lane.b32.xlu0 %v2318, 64
    %v2321 = vpop.permute.xlu0 %2320
    %v2323 = vmul.f32 %v2317, %v2321
    %2325 = vrot.lane.b32.xlu0 %v2323, 64
    %v2326 = vpop.permute.xlu0 %2325
    %v2328 = vadd.f32 %v2224, %v2326
    %v2329 = vtanh.pop %v2328
    %v2330 = vsub.f32 %v2220, %v2329
    %2332 = vrot.lane.b32.xlu0 %v2330, 96
    %v2333 = vpop.permute.xlu0 %2332
    %v2335 = vmul.f32 %v2317, %v2333
    %2337 = vrot.lane.b32.xlu0 %v2335, 32
    %v2338 = vpop.permute.xlu0 %2337
    %v2340 = vadd.f32 %v2329, %v2338
    %v2341 = vadd.f32 %v2227, %v2309
    %v2342 = vxor.u32 %v2341, 2147483648
    %v2343 = vmul.f32 %v2342, 1.442695
    %v2344 = vpow.pop %v2343
    %v2345 = vadd.f32 %v2344, 1.0
    %v2346 = vrcp.pop %v2345
    %v2347 = vmul.f32 1.0, %v2346
    %v2348 = vadd.f32 %v2309, %v2044
    %2350 = vrot.lane.b32.xlu0 %v2348, 64
    %v2351 = vpop.permute.xlu0 %2350
    %v2353 = vmul.f32 %v2347, %v2351
    %2355 = vrot.lane.b32.xlu0 %v2353, 64
    %v2356 = vpop.permute.xlu0 %2355
    %v2358 = vadd.f32 %v2227, %v2356
    %v2359 = vtanh.pop %v2358
    %v2360 = vsub.f32 %v2221, %v2359
    %2362 = vrot.lane.b32.xlu0 %v2360, 96
    %v2363 = vpop.permute.xlu0 %2362
    %v2365 = vmul.f32 %v2347, %v2363
    %2367 = vrot.lane.b32.xlu0 %v2365, 32
    %v2368 = vpop.permute.xlu0 %2367
    %v2370 = vadd.f32 %v2359, %v2368
    %v2371 = vsel %vm70, %v2340, %v2220
    %v2372 = vsel %vm73, %v2370, %v2221
    %vm2373 = vcmp.eq.s32.totalorder %v67, 6
    %v2374 = vsel %vm2373, %v2370, %v2223
    %v2375 = vld [vmem:[#allocation2 + $0x30] sm:$0xff]
    %v2376 = vld [vmem:[#allocation2 + $0x38] sm:$0xff]
    %v2377 = vld [vmem:[#allocation2 + $0x40] sm:$0xff]
    %v2378 = vld [vmem:[#allocation2 + $0x48] sm:$0xff]
    %2380 = vrot.lane.b32.xlu0 %v2371, 64
    %v2381 = vpop.permute.xlu0 %2380
    %2384 = vrot.lane.b32.xlu0 %v2372, 96
    %v2385 = vpop.permute.xlu0 %2384
    %v2387 = vsel %vm433, %v2381, %v2385
    %v2389 = vsel %vm276, %v2387, 0
    %2391 = vmatprep.subr.mxu0 %v1899
    %2392 = vmatpush1.msra.mxu0 %v1898
    %2393 = vmatprep.subr.mxu0 %v1901
    %2394 = vmatpush1.msra.mxu0 %v1900
    %2395 = vmatprep.subr.mxu0 %v1903
    %2396 = vmatpush1.msra.mxu0 %v1902
    %2397 = vmatprep.subr.mxu0 %v1905
    %2398 = vmatpush1.msra.mxu0 %v1904
    %2399 = vmatprep.subr.mxu0 %v1907
    %2400 = vmatpush1.msra.mxu0 %v1906
    %2401 = vmatprep.subr.mxu0 %v1909
    %2402 = vmatpush1.msra.mxu0 %v1908
    %2403 = vmatprep.subr.mxu0 %v1911
    %2404 = vmatpush1.msra.mxu0 %v1910
    %2405 = vmatprep.subr.mxu0 %v1913
    %2406 = vmatpush1.msra.mxu0 %v1912
    %2407 = vmatprep.subr.mxu0 0.0
    %2408 = vmatpush1.msra.mxu0 0.0
    %2409 = vmatprep.subr.mxu0 0.0
    %2410 = vmatpush1.msra.mxu0 0.0
    %2411 = vmatprep.subr.mxu0 0.0
    %2412 = vmatpush1.msra.mxu0 0.0
    %2413 = vmatprep.subr.mxu0 0.0
    %2414 = vmatpush1.msra.mxu0 0.0
    %2415 = vmatprep.subr.mxu0 0.0
    %2416 = vmatpush1.msra.mxu0 0.0
    %2417 = vmatprep.subr.mxu0 0.0
    %2418 = vmatpush1.msra.mxu0 0.0
    %2419 = vmatprep.subr.mxu0 0.0
    %2420 = vmatpush1.msra.mxu0 0.0
    %2421 = vmatprep.subr.mxu0 0.0
    %2422 = vmatpush1.msra.mxu0 0.0
    %2423 = vmatprep.subr.mxu0 0.0
    %2424 = vmatpush1.msra.mxu0 0.0
    %2425 = vmatprep.subr.mxu0 0.0
    %2426 = vmatpush1.msra.mxu0 0.0
    %2427 = vmatprep.subr.mxu0 0.0
    %2428 = vmatpush1.msra.mxu0 0.0
    %2429 = vmatprep.subr.mxu0 0.0
    %2430 = vmatpush1.msra.mxu0 0.0
    %2431 = vmatprep.subr.mxu0 0.0
    %2432 = vmatpush1.msra.mxu0 0.0
    %2433 = vmatprep.subr.mxu0 0.0
    %2434 = vmatpush1.msra.mxu0 0.0
    %2435 = vmatprep.subr.mxu0 0.0
    %2436 = vmatpush1.msra.mxu0 0.0
    %2437 = vmatprep.subr.mxu0 0.0
    %2438 = vmatpush1.msra.mxu0 0.0
    %2439 = vmatprep.subr.mxu0 0.0
    %2440 = vmatpush1.msra.mxu0 0.0
    %2441 = vmatprep.subr.mxu0 0.0
    %2442 = vmatpush1.msra.mxu0 0.0
    %2443 = vmatprep.subr.mxu0 0.0
    %2444 = vmatpush1.msra.mxu0 0.0
    %2445 = vmatprep.subr.mxu0 0.0
    %2446 = vmatpush1.msra.mxu0 0.0
    %2447 = vmatprep.subr.mxu0 0.0
    %2448 = vmatpush1.msra.mxu0 0.0
    %2449 = vmatprep.subr.mxu0 0.0
    %2450 = vmatpush1.msra.mxu0 0.0
    %2451 = vmatprep.subr.mxu0 0.0
    %2452 = vmatpush1.msra.mxu0 0.0
    %2453 = vmatprep.subr.mxu0 0.0
    %2454 = vmatpush1.msra.mxu0 0.0
    %2455 = vmatprep.mubr.f32.mxu0 0.0
    %2456 = vmatmul.mubr.f32.gmra.mrb[0].mxu0 %v2389
    %v2457 = vpop.f32.mrb[0].mxu0
    %v2458 = vadd.f32 0.0, %v2457
    %v2459 = vpop.f32.mrb[0].mxu0
    %v2460 = vadd.f32 0.0, %v2459
    %2461 = vdwg.mxu0
    %v2462 = vadd.f32 %v2375, %v2458
    %v2463 = vxor.u32 %v2462, 2147483648
    %v2464 = vmul.f32 %v2463, 1.442695
    %v2465 = vpow.pop %v2464
    %v2466 = vadd.f32 %v2465, 1.0
    %v2467 = vrcp.pop %v2466
    %v2468 = vmul.f32 1.0, %v2467
    %v2469 = vadd.f32 %v2458, %v2006
    %2471 = vrot.lane.b32.xlu0 %v2469, 64
    %v2472 = vpop.permute.xlu0 %2471
    %v2474 = vmul.f32 %v2468, %v2472
    %2476 = vrot.lane.b32.xlu0 %v2474, 64
    %v2477 = vpop.permute.xlu0 %2476
    %v2479 = vadd.f32 %v2375, %v2477
    %v2480 = vtanh.pop %v2479
    %v2481 = vsub.f32 %v2371, %v2480
    %2483 = vrot.lane.b32.xlu0 %v2481, 96
    %v2484 = vpop.permute.xlu0 %2483
    %v2486 = vmul.f32 %v2468, %v2484
    %2488 = vrot.lane.b32.xlu0 %v2486, 32
    %v2489 = vpop.permute.xlu0 %2488
    %v2491 = vadd.f32 %v2480, %v2489
    %v2492 = vadd.f32 %v2378, %v2460
    %v2493 = vxor.u32 %v2492, 2147483648
    %v2494 = vmul.f32 %v2493, 1.442695
    %v2495 = vpow.pop %v2494
    %v2496 = vadd.f32 %v2495, 1.0
    %v2497 = vrcp.pop %v2496
    %v2498 = vmul.f32 1.0, %v2497
    %v2499 = vadd.f32 %v2460, %v2044
    %2501 = vrot.lane.b32.xlu0 %v2499, 64
    %v2502 = vpop.permute.xlu0 %2501
    %v2504 = vmul.f32 %v2498, %v2502
    %2506 = vrot.lane.b32.xlu0 %v2504, 64
    %v2507 = vpop.permute.xlu0 %2506
    %v2509 = vadd.f32 %v2378, %v2507
    %v2510 = vtanh.pop %v2509
    %v2511 = vsub.f32 %v2372, %v2510
    %2513 = vrot.lane.b32.xlu0 %v2511, 96
    %v2514 = vpop.permute.xlu0 %2513
    %v2516 = vmul.f32 %v2498, %v2514
    %2518 = vrot.lane.b32.xlu0 %v2516, 32
    %v2519 = vpop.permute.xlu0 %2518
    %v2521 = vadd.f32 %v2510, %v2519
    %v2522 = vsel %vm71, %v2491, %v2371
    %v2523 = vsel %vm72, %v2521, %v2372
    %vm2524 = vcmp.eq.s32.totalorder %v67, 5
    %v2525 = vsel %vm2524, %v2521, %v2374
    %2527 = vrot.lane.b32.xlu0 %v2522, 64
    %v2528 = vpop.permute.xlu0 %2527
    %2531 = vrot.lane.b32.xlu0 %v2523, 96
    %v2532 = vpop.permute.xlu0 %2531
    %v2534 = vsel %vm433, %v2528, %v2532
    %v2536 = vsel %vm276, %v2534, 0
    %2538 = vmatprep.subr.mxu0 %v1899
    %2539 = vmatpush1.msra.mxu0 %v1898
    %2540 = vmatprep.subr.mxu0 %v1901
    %2541 = vmatpush1.msra.mxu0 %v1900
    %2542 = vmatprep.subr.mxu0 %v1903
    %2543 = vmatpush1.msra.mxu0 %v1902
    %2544 = vmatprep.subr.mxu0 %v1905
    %2545 = vmatpush1.msra.mxu0 %v1904
    %2546 = vmatprep.subr.mxu0 %v1907
    %2547 = vmatpush1.msra.mxu0 %v1906
    %2548 = vmatprep.subr.mxu0 %v1909
    %2549 = vmatpush1.msra.mxu0 %v1908
    %2550 = vmatprep.subr.mxu0 %v1911
    %2551 = vmatpush1.msra.mxu0 %v1910
    %2552 = vmatprep.subr.mxu0 %v1913
    %2553 = vmatpush1.msra.mxu0 %v1912
    %2554 = vmatprep.subr.mxu0 0.0
    %2555 = vmatpush1.msra.mxu0 0.0
    %2556 = vmatprep.subr.mxu0 0.0
    %2557 = vmatpush1.msra.mxu0 0.0
    %2558 = vmatprep.subr.mxu0 0.0
    %2559 = vmatpush1.msra.mxu0 0.0
    %2560 = vmatprep.subr.mxu0 0.0
    %2561 = vmatpush1.msra.mxu0 0.0
    %2562 = vmatprep.subr.mxu0 0.0
    %2563 = vmatpush1.msra.mxu0 0.0
    %2564 = vmatprep.subr.mxu0 0.0
    %2565 = vmatpush1.msra.mxu0 0.0
    %2566 = vmatprep.subr.mxu0 0.0
    %2567 = vmatpush1.msra.mxu0 0.0
    %2568 = vmatprep.subr.mxu0 0.0
    %2569 = vmatpush1.msra.mxu0 0.0
    %2570 = vmatprep.subr.mxu0 0.0
    %2571 = vmatpush1.msra.mxu0 0.0
    %2572 = vmatprep.subr.mxu0 0.0
    %2573 = vmatpush1.msra.mxu0 0.0
    %2574 = vmatprep.subr.mxu0 0.0
    %2575 = vmatpush1.msra.mxu0 0.0
    %2576 = vmatprep.subr.mxu0 0.0
    %2577 = vmatpush1.msra.mxu0 0.0
    %2578 = vmatprep.subr.mxu0 0.0
    %2579 = vmatpush1.msra.mxu0 0.0
    %2580 = vmatprep.subr.mxu0 0.0
    %2581 = vmatpush1.msra.mxu0 0.0
    %2582 = vmatprep.subr.mxu0 0.0
    %2583 = vmatpush1.msra.mxu0 0.0
    %2584 = vmatprep.subr.mxu0 0.0
    %2585 = vmatpush1.msra.mxu0 0.0
    %2586 = vmatprep.subr.mxu0 0.0
    %2587 = vmatpush1.msra.mxu0 0.0
    %2588 = vmatprep.subr.mxu0 0.0
    %2589 = vmatpush1.msra.mxu0 0.0
    %2590 = vmatprep.subr.mxu0 0.0
    %2591 = vmatpush1.msra.mxu0 0.0
    %2592 = vmatprep.subr.mxu0 0.0
    %2593 = vmatpush1.msra.mxu0 0.0
    %2594 = vmatprep.subr.mxu0 0.0
    %2595 = vmatpush1.msra.mxu0 0.0
    %2596 = vmatprep.subr.mxu0 0.0
    %2597 = vmatpush1.msra.mxu0 0.0
    %2598 = vmatprep.subr.mxu0 0.0
    %2599 = vmatpush1.msra.mxu0 0.0
    %2600 = vmatprep.subr.mxu0 0.0
    %2601 = vmatpush1.msra.mxu0 0.0
    %2602 = vmatprep.mubr.f32.mxu0 0.0
    %2603 = vmatmul.mubr.f32.gmra.mrb[0].mxu0 %v2536
    %v2604 = vpop.f32.mrb[0].mxu0
    %v2605 = vadd.f32 0.0, %v2604
    %v2606 = vpop.f32.mrb[0].mxu0
    %v2607 = vadd.f32 0.0, %v2606
    %2608 = vdwg.mxu0
    %v2609 = vadd.f32 %v2377, %v2605
    %v2610 = vxor.u32 %v2609, 2147483648
    %v2611 = vmul.f32 %v2610, 1.442695
    %v2612 = vpow.pop %v2611
    %v2613 = vadd.f32 %v2612, 1.0
    %v2614 = vrcp.pop %v2613
    %v2615 = vmul.f32 1.0, %v2614
    %v2616 = vadd.f32 %v2605, %v2006
    %2618 = vrot.lane.b32.xlu0 %v2616, 64
    %v2619 = vpop.permute.xlu0 %2618
    %v2621 = vmul.f32 %v2615, %v2619
    %2623 = vrot.lane.b32.xlu0 %v2621, 64
    %v2624 = vpop.permute.xlu0 %2623
    %v2626 = vadd.f32 %v2377, %v2624
    %v2627 = vtanh.pop %v2626
    %v2628 = vsub.f32 %v2522, %v2627
    %2630 = vrot.lane.b32.xlu0 %v2628, 96
    %v2631 = vpop.permute.xlu0 %2630
    %v2633 = vmul.f32 %v2615, %v2631
    %2635 = vrot.lane.b32.xlu0 %v2633, 32
    %v2636 = vpop.permute.xlu0 %2635
    %v2638 = vadd.f32 %v2627, %v2636
    %v2639 = vadd.f32 %v2376, %v2607
    %v2640 = vxor.u32 %v2639, 2147483648
    %v2641 = vmul.f32 %v2640, 1.442695
    %v2642 = vpow.pop %v2641
    %v2643 = vadd.f32 %v2642, 1.0
    %v2644 = vrcp.pop %v2643
    %v2645 = vmul.f32 1.0, %v2644
    %v2646 = vadd.f32 %v2607, %v2044
    %2648 = vrot.lane.b32.xlu0 %v2646, 64
    %v2649 = vpop.permute.xlu0 %2648
    %v2651 = vmul.f32 %v2645, %v2649
    %2653 = vrot.lane.b32.xlu0 %v2651, 64
    %v2654 = vpop.permute.xlu0 %2653
    %v2656 = vadd.f32 %v2376, %v2654
    %v2657 = vtanh.pop %v2656
    %v2658 = vsub.f32 %v2523, %v2657
    %2660 = vrot.lane.b32.xlu0 %v2658, 96
    %v2661 = vpop.permute.xlu0 %2660
    %v2663 = vmul.f32 %v2645, %v2661
    %2665 = vrot.lane.b32.xlu0 %v2663, 32
    %v2666 = vpop.permute.xlu0 %2665
    %v2668 = vadd.f32 %v2657, %v2666
    %v2669 = vsel %vm72, %v2638, %v2522
    %v2670 = vsel %vm71, %v2668, %v2523
    %vm2671 = vcmp.eq.s32.totalorder %v67, 4
    %v2672 = vsel %vm2671, %v2668, %v2525
    %2674 = vrot.lane.b32.xlu0 %v2669, 64
    %v2675 = vpop.permute.xlu0 %2674
    %2678 = vrot.lane.b32.xlu0 %v2670, 96
    %v2679 = vpop.permute.xlu0 %2678
    %v2681 = vsel %vm433, %v2675, %v2679
    %v2683 = vsel %vm276, %v2681, 0
    %2685 = vmatprep.subr.mxu0 %v1899
    %2686 = vmatpush1.msra.mxu0 %v1898
    %2687 = vmatprep.subr.mxu0 %v1901
    %2688 = vmatpush1.msra.mxu0 %v1900
    %2689 = vmatprep.subr.mxu0 %v1903
    %2690 = vmatpush1.msra.mxu0 %v1902
    %2691 = vmatprep.subr.mxu0 %v1905
    %2692 = vmatpush1.msra.mxu0 %v1904
    %2693 = vmatprep.subr.mxu0 %v1907
    %2694 = vmatpush1.msra.mxu0 %v1906
    %2695 = vmatprep.subr.mxu0 %v1909
    %2696 = vmatpush1.msra.mxu0 %v1908
    %2697 = vmatprep.subr.mxu0 %v1911
    %2698 = vmatpush1.msra.mxu0 %v1910
    %2699 = vmatprep.subr.mxu0 %v1913
    %2700 = vmatpush1.msra.mxu0 %v1912
    %2701 = vmatprep.subr.mxu0 0.0
    %2702 = vmatpush1.msra.mxu0 0.0
    %2703 = vmatprep.subr.mxu0 0.0
    %2704 = vmatpush1.msra.mxu0 0.0
    %2705 = vmatprep.subr.mxu0 0.0
    %2706 = vmatpush1.msra.mxu0 0.0
    %2707 = vmatprep.subr.mxu0 0.0
    %2708 = vmatpush1.msra.mxu0 0.0
    %2709 = vmatprep.subr.mxu0 0.0
    %2710 = vmatpush1.msra.mxu0 0.0
    %2711 = vmatprep.subr.mxu0 0.0
    %2712 = vmatpush1.msra.mxu0 0.0
    %2713 = vmatprep.subr.mxu0 0.0
    %2714 = vmatpush1.msra.mxu0 0.0
    %2715 = vmatprep.subr.mxu0 0.0
    %2716 = vmatpush1.msra.mxu0 0.0
    %2717 = vmatprep.subr.mxu0 0.0
    %2718 = vmatpush1.msra.mxu0 0.0
    %2719 = vmatprep.subr.mxu0 0.0
    %2720 = vmatpush1.msra.mxu0 0.0
    %2721 = vmatprep.subr.mxu0 0.0
    %2722 = vmatpush1.msra.mxu0 0.0
    %2723 = vmatprep.subr.mxu0 0.0
    %2724 = vmatpush1.msra.mxu0 0.0
    %2725 = vmatprep.subr.mxu0 0.0
    %2726 = vmatpush1.msra.mxu0 0.0
    %2727 = vmatprep.subr.mxu0 0.0
    %2728 = vmatpush1.msra.mxu0 0.0
    %2729 = vmatprep.subr.mxu0 0.0
    %2730 = vmatpush1.msra.mxu0 0.0
    %2731 = vmatprep.subr.mxu0 0.0
    %2732 = vmatpush1.msra.mxu0 0.0
    %2733 = vmatprep.subr.mxu0 0.0
    %2734 = vmatpush1.msra.mxu0 0.0
    %2735 = vmatprep.subr.mxu0 0.0
    %2736 = vmatpush1.msra.mxu0 0.0
    %2737 = vmatprep.subr.mxu0 0.0
    %2738 = vmatpush1.msra.mxu0 0.0
    %2739 = vmatprep.subr.mxu0 0.0
    %2740 = vmatpush1.msra.mxu0 0.0
    %2741 = vmatprep.subr.mxu0 0.0
    %2742 = vmatpush1.msra.mxu0 0.0
    %2743 = vmatprep.subr.mxu0 0.0
    %2744 = vmatpush1.msra.mxu0 0.0
    %2745 = vmatprep.subr.mxu0 0.0
    %2746 = vmatpush1.msra.mxu0 0.0
    %2747 = vmatprep.subr.mxu0 0.0
    %2748 = vmatpush1.msra.mxu0 0.0
    %2749 = vmatprep.mubr.f32.mxu0 0.0
    %2750 = vmatmul.mubr.f32.gmra.mrb[0].mxu0 %v2683
    %v2751 = vpop.f32.mrb[0].mxu0
    %v2752 = vadd.f32 0.0, %v2751
    %v2753 = vpop.f32.mrb[0].mxu0
    %v2754 = vadd.f32 0.0, %v2753
    %2755 = vdwg.mxu0
    %v2756 = vadd.f32 %v2226, %v2752
    %v2757 = vxor.u32 %v2756, 2147483648
    %v2758 = vmul.f32 %v2757, 1.442695
    %v2759 = vpow.pop %v2758
    %v2760 = vadd.f32 %v2759, 1.0
    %v2761 = vrcp.pop %v2760
    %v2762 = vmul.f32 1.0, %v2761
    %v2763 = vadd.f32 %v2752, %v2006
    %2765 = vrot.lane.b32.xlu0 %v2763, 64
    %v2766 = vpop.permute.xlu0 %2765
    %v2768 = vmul.f32 %v2762, %v2766
    %2770 = vrot.lane.b32.xlu0 %v2768, 64
    %v2771 = vpop.permute.xlu0 %2770
    %v2773 = vadd.f32 %v2226, %v2771
    %v2774 = vtanh.pop %v2773
    %v2775 = vsub.f32 %v2669, %v2774
    %2777 = vrot.lane.b32.xlu0 %v2775, 96
    %v2778 = vpop.permute.xlu0 %2777
    %v2780 = vmul.f32 %v2762, %v2778
    %2782 = vrot.lane.b32.xlu0 %v2780, 32
    %v2783 = vpop.permute.xlu0 %2782
    %v2785 = vadd.f32 %v2774, %v2783
    %v2786 = vadd.f32 %v2225, %v2754
    %v2787 = vxor.u32 %v2786, 2147483648
    %v2788 = vmul.f32 %v2787, 1.442695
    %v2789 = vpow.pop %v2788
    %v2790 = vadd.f32 %v2789, 1.0
    %v2791 = vrcp.pop %v2790
    %v2792 = vmul.f32 1.0, %v2791
    %v2793 = vadd.f32 %v2754, %v2044
    %2795 = vrot.lane.b32.xlu0 %v2793, 64
    %v2796 = vpop.permute.xlu0 %2795
    %v2798 = vmul.f32 %v2792, %v2796
    %2800 = vrot.lane.b32.xlu0 %v2798, 64
    %v2801 = vpop.permute.xlu0 %2800
    %v2803 = vadd.f32 %v2225, %v2801
    %v2804 = vtanh.pop %v2803
    %v2805 = vsub.f32 %v2670, %v2804
    %2807 = vrot.lane.b32.xlu0 %v2805, 96
    %v2808 = vpop.permute.xlu0 %2807
    %v2810 = vmul.f32 %v2792, %v2808
    %2812 = vrot.lane.b32.xlu0 %v2810, 32
    %v2813 = vpop.permute.xlu0 %2812
    %v2815 = vadd.f32 %v2804, %v2813
    %v2816 = vsel %vm73, %v2785, %v2669
    %v2817 = vsel %vm70, %v2815, %v2670
    %vm2818 = vcmp.eq.s32.totalorder %v67, 3
    %v2819 = vsel %vm2818, %v2815, %v2672
    %2821 = vrot.lane.b32.xlu0 %v2816, 64
    %v2822 = vpop.permute.xlu0 %2821
    %2825 = vrot.lane.b32.xlu0 %v2817, 96
    %v2826 = vpop.permute.xlu0 %2825
    %v2828 = vsel %vm433, %v2822, %v2826
    %v2830 = vsel %vm276, %v2828, 0
    %2832 = vmatprep.subr.mxu0 %v1899
    %2833 = vmatpush1.msra.mxu0 %v1898
    %2834 = vmatprep.subr.mxu0 %v1901
    %2835 = vmatpush1.msra.mxu0 %v1900
    %2836 = vmatprep.subr.mxu0 %v1903
    %2837 = vmatpush1.msra.mxu0 %v1902
    %2838 = vmatprep.subr.mxu0 %v1905
    %2839 = vmatpush1.msra.mxu0 %v1904
    %2840 = vmatprep.subr.mxu0 %v1907
    %2841 = vmatpush1.msra.mxu0 %v1906
    %2842 = vmatprep.subr.mxu0 %v1909
    %2843 = vmatpush1.msra.mxu0 %v1908
    %2844 = vmatprep.subr.mxu0 %v1911
    %2845 = vmatpush1.msra.mxu0 %v1910
    %2846 = vmatprep.subr.mxu0 %v1913
    %2847 = vmatpush1.msra.mxu0 %v1912
    %2848 = vmatprep.subr.mxu0 0.0
    %2849 = vmatpush1.msra.mxu0 0.0
    %2850 = vmatprep.subr.mxu0 0.0
    %2851 = vmatpush1.msra.mxu0 0.0
    %2852 = vmatprep.subr.mxu0 0.0
    %2853 = vmatpush1.msra.mxu0 0.0
    %2854 = vmatprep.subr.mxu0 0.0
    %2855 = vmatpush1.msra.mxu0 0.0
    %2856 = vmatprep.subr.mxu0 0.0
    %2857 = vmatpush1.msra.mxu0 0.0
    %2858 = vmatprep.subr.mxu0 0.0
    %2859 = vmatpush1.msra.mxu0 0.0
    %2860 = vmatprep.subr.mxu0 0.0
    %2861 = vmatpush1.msra.mxu0 0.0
    %2862 = vmatprep.subr.mxu0 0.0
    %2863 = vmatpush1.msra.mxu0 0.0
    %2864 = vmatprep.subr.mxu0 0.0
    %2865 = vmatpush1.msra.mxu0 0.0
    %2866 = vmatprep.subr.mxu0 0.0
    %2867 = vmatpush1.msra.mxu0 0.0
    %2868 = vmatprep.subr.mxu0 0.0
    %2869 = vmatpush1.msra.mxu0 0.0
    %2870 = vmatprep.subr.mxu0 0.0
    %2871 = vmatpush1.msra.mxu0 0.0
    %2872 = vmatprep.subr.mxu0 0.0
    %2873 = vmatpush1.msra.mxu0 0.0
    %2874 = vmatprep.subr.mxu0 0.0
    %2875 = vmatpush1.msra.mxu0 0.0
    %2876 = vmatprep.subr.mxu0 0.0
    %2877 = vmatpush1.msra.mxu0 0.0
    %2878 = vmatprep.subr.mxu0 0.0
    %2879 = vmatpush1.msra.mxu0 0.0
    %2880 = vmatprep.subr.mxu0 0.0
    %2881 = vmatpush1.msra.mxu0 0.0
    %2882 = vmatprep.subr.mxu0 0.0
    %2883 = vmatpush1.msra.mxu0 0.0
    %2884 = vmatprep.subr.mxu0 0.0
    %2885 = vmatpush1.msra.mxu0 0.0
    %2886 = vmatprep.subr.mxu0 0.0
    %2887 = vmatpush1.msra.mxu0 0.0
    %2888 = vmatprep.subr.mxu0 0.0
    %2889 = vmatpush1.msra.mxu0 0.0
    %2890 = vmatprep.subr.mxu0 0.0
    %2891 = vmatpush1.msra.mxu0 0.0
    %2892 = vmatprep.subr.mxu0 0.0
    %2893 = vmatpush1.msra.mxu0 0.0
    %2894 = vmatprep.subr.mxu0 0.0
    %2895 = vmatpush1.msra.mxu0 0.0
    %2896 = vmatprep.mubr.f32.mxu0 0.0
    %2897 = vmatmul.mubr.f32.gmra.mrb[0].mxu0 %v2830
    %v2898 = vpop.f32.mrb[0].mxu0
    %v2899 = vadd.f32 0.0, %v2898
    %v2900 = vpop.f32.mrb[0].mxu0
    %v2901 = vadd.f32 0.0, %v2900
    %2902 = vdwg.mxu0
    %v2903 = vadd.f32 %v2075, %v2899
    %v2904 = vxor.u32 %v2903, 2147483648
    %v2905 = vmul.f32 %v2904, 1.442695
    %v2906 = vpow.pop %v2905
    %v2907 = vadd.f32 %v2906, 1.0
    %v2908 = vrcp.pop %v2907
    %v2909 = vmul.f32 1.0, %v2908
    %v2910 = vadd.f32 %v2899, %v2006
    %2912 = vrot.lane.b32.xlu0 %v2910, 64
    %v2913 = vpop.permute.xlu0 %2912
    %v2915 = vmul.f32 %v2909, %v2913
    %2917 = vrot.lane.b32.xlu0 %v2915, 64
    %v2918 = vpop.permute.xlu0 %2917
    %v2920 = vadd.f32 %v2075, %v2918
    %v2921 = vtanh.pop %v2920
    %v2922 = vsub.f32 %v2816, %v2921
    %2924 = vrot.lane.b32.xlu0 %v2922, 96
    %v2925 = vpop.permute.xlu0 %2924
    %v2927 = vmul.f32 %v2909, %v2925
    %2929 = vrot.lane.b32.xlu0 %v2927, 32
    %v2930 = vpop.permute.xlu0 %2929
    %v2932 = vadd.f32 %v2921, %v2930
    %v2933 = vadd.f32 %v2074, %v2901
    %v2934 = vxor.u32 %v2933, 2147483648
    %v2935 = vmul.f32 %v2934, 1.442695
    %v2936 = vpow.pop %v2935
    %v2937 = vadd.f32 %v2936, 1.0
    %v2938 = vrcp.pop %v2937
    %v2939 = vmul.f32 1.0, %v2938
    %v2940 = vadd.f32 %v2901, %v2044
    %2942 = vrot.lane.b32.xlu0 %v2940, 64
    %v2943 = vpop.permute.xlu0 %2942
    %v2945 = vmul.f32 %v2939, %v2943
    %2947 = vrot.lane.b32.xlu0 %v2945, 64
    %v2948 = vpop.permute.xlu0 %2947
    %v2950 = vadd.f32 %v2074, %v2948
    %v2951 = vtanh.pop %v2950
    %v2952 = vsub.f32 %v2817, %v2951
    %2954 = vrot.lane.b32.xlu0 %v2952, 96
    %v2955 = vpop.permute.xlu0 %2954
    %v2957 = vmul.f32 %v2939, %v2955
    %2959 = vrot.lane.b32.xlu0 %v2957, 32
    %v2960 = vpop.permute.xlu0 %2959
    %v2962 = vadd.f32 %v2951, %v2960
    %v2963 = vsel %vm74, %v2932, %v2816
    %v2964 = vsel %vm69, %v2962, %v2817
    %vm2965 = vcmp.eq.s32.totalorder %v67, 2
    %v2966 = vsel %vm2965, %v2962, %v2819
    %2968 = vrot.lane.b32.xlu0 %v2963, 64
    %v2969 = vpop.permute.xlu0 %2968
    %2972 = vrot.lane.b32.xlu0 %v2964, 96
    %v2973 = vpop.permute.xlu0 %2972
    %v2975 = vsel %vm433, %v2969, %v2973
    %v2977 = vsel %vm276, %v2975, 0
    %2979 = vmatprep.subr.mxu0 %v1899
    %2980 = vmatpush1.msra.mxu0 %v1898
    %2981 = vmatprep.subr.mxu0 %v1901
    %2982 = vmatpush1.msra.mxu0 %v1900
    %2983 = vmatprep.subr.mxu0 %v1903
    %2984 = vmatpush1.msra.mxu0 %v1902
    %2985 = vmatprep.subr.mxu0 %v1905
    %2986 = vmatpush1.msra.mxu0 %v1904
    %2987 = vmatprep.subr.mxu0 %v1907
    %2988 = vmatpush1.msra.mxu0 %v1906
    %2989 = vmatprep.subr.mxu0 %v1909
    %2990 = vmatpush1.msra.mxu0 %v1908
    %2991 = vmatprep.subr.mxu0 %v1911
    %2992 = vmatpush1.msra.mxu0 %v1910
    %2993 = vmatprep.subr.mxu0 %v1913
    %2994 = vmatpush1.msra.mxu0 %v1912
    %2995 = vmatprep.subr.mxu0 0.0
    %2996 = vmatpush1.msra.mxu0 0.0
    %2997 = vmatprep.subr.mxu0 0.0
    %2998 = vmatpush1.msra.mxu0 0.0
    %2999 = vmatprep.subr.mxu0 0.0
    %3000 = vmatpush1.msra.mxu0 0.0
    %3001 = vmatprep.subr.mxu0 0.0
    %3002 = vmatpush1.msra.mxu0 0.0
    %3003 = vmatprep.subr.mxu0 0.0
    %3004 = vmatpush1.msra.mxu0 0.0
    %3005 = vmatprep.subr.mxu0 0.0
    %3006 = vmatpush1.msra.mxu0 0.0
    %3007 = vmatprep.subr.mxu0 0.0
    %3008 = vmatpush1.msra.mxu0 0.0
    %3009 = vmatprep.subr.mxu0 0.0
    %3010 = vmatpush1.msra.mxu0 0.0
    %3011 = vmatprep.subr.mxu0 0.0
    %3012 = vmatpush1.msra.mxu0 0.0
    %3013 = vmatprep.subr.mxu0 0.0
    %3014 = vmatpush1.msra.mxu0 0.0
    %3015 = vmatprep.subr.mxu0 0.0
    %3016 = vmatpush1.msra.mxu0 0.0
    %3017 = vmatprep.subr.mxu0 0.0
    %3018 = vmatpush1.msra.mxu0 0.0
    %3019 = vmatprep.subr.mxu0 0.0
    %3020 = vmatpush1.msra.mxu0 0.0
    %3021 = vmatprep.subr.mxu0 0.0
    %3022 = vmatpush1.msra.mxu0 0.0
    %3023 = vmatprep.subr.mxu0 0.0
    %3024 = vmatpush1.msra.mxu0 0.0
    %3025 = vmatprep.subr.mxu0 0.0
    %3026 = vmatpush1.msra.mxu0 0.0
    %3027 = vmatprep.subr.mxu0 0.0
    %3028 = vmatpush1.msra.mxu0 0.0
    %3029 = vmatprep.subr.mxu0 0.0
    %3030 = vmatpush1.msra.mxu0 0.0
    %3031 = vmatprep.subr.mxu0 0.0
    %3032 = vmatpush1.msra.mxu0 0.0
    %3033 = vmatprep.subr.mxu0 0.0
    %3034 = vmatpush1.msra.mxu0 0.0
    %3035 = vmatprep.subr.mxu0 0.0
    %3036 = vmatpush1.msra.mxu0 0.0
    %3037 = vmatprep.subr.mxu0 0.0
    %3038 = vmatpush1.msra.mxu0 0.0
    %3039 = vmatprep.subr.mxu0 0.0
    %3040 = vmatpush1.msra.mxu0 0.0
    %3041 = vmatprep.subr.mxu0 0.0
    %3042 = vmatpush1.msra.mxu0 0.0
    %3043 = vmatprep.mubr.f32.mxu0 0.0
    %3044 = vmatmul.mubr.f32.gmra.mrb[0].mxu0 %v2977
    %v3045 = vpop.f32.mrb[0].mxu0
    %v3046 = vadd.f32 0.0, %v3045
    %v3047 = vpop.f32.mrb[0].mxu0
    %v3048 = vadd.f32 0.0, %v3047
    %3049 = vdwg.mxu0
    %v3050 = vadd.f32 %v1920, %v3046
    %v3051 = vxor.u32 %v3050, 2147483648
    %v3052 = vmul.f32 %v3051, 1.442695
    %v3053 = vpow.pop %v3052
    %v3054 = vadd.f32 %v3053, 1.0
    %v3055 = vrcp.pop %v3054
    %v3056 = vmul.f32 1.0, %v3055
    %v3057 = vadd.f32 %v3046, %v2006
    %3059 = vrot.lane.b32.xlu0 %v3057, 64
    %v3060 = vpop.permute.xlu0 %3059
    %v3062 = vmul.f32 %v3056, %v3060
    %3064 = vrot.lane.b32.xlu0 %v3062, 64
    %v3065 = vpop.permute.xlu0 %3064
    %v3067 = vadd.f32 %v1920, %v3065
    %v3068 = vtanh.pop %v3067
    %v3069 = vsub.f32 %v2963, %v3068
    %3071 = vrot.lane.b32.xlu0 %v3069, 96
    %v3072 = vpop.permute.xlu0 %3071
    %v3074 = vmul.f32 %v3056, %v3072
    %3076 = vrot.lane.b32.xlu0 %v3074, 32
    %v3077 = vpop.permute.xlu0 %3076
    %v3079 = vadd.f32 %v3068, %v3077
    %v3080 = vadd.f32 %v1919, %v3048
    %v3081 = vxor.u32 %v3080, 2147483648
    %v3082 = vmul.f32 %v3081, 1.442695
    %v3083 = vpow.pop %v3082
    %v3084 = vadd.f32 %v3083, 1.0
    %v3085 = vrcp.pop %v3084
    %v3086 = vmul.f32 1.0, %v3085
    %v3087 = vadd.f32 %v3048, %v2044
    %3089 = vrot.lane.b32.xlu0 %v3087, 64
    %v3090 = vpop.permute.xlu0 %3089
    %v3092 = vmul.f32 %v3086, %v3090
    %3094 = vrot.lane.b32.xlu0 %v3092, 64
    %v3095 = vpop.permute.xlu0 %3094
    %v3097 = vadd.f32 %v1919, %v3095
    %v3098 = vtanh.pop %v3097
    %v3099 = vsub.f32 %v2964, %v3098
    %3101 = vrot.lane.b32.xlu0 %v3099, 96
    %v3102 = vpop.permute.xlu0 %3101
    %v3104 = vmul.f32 %v3086, %v3102
    %3106 = vrot.lane.b32.xlu0 %v3104, 32
    %v3107 = vpop.permute.xlu0 %3106
    %v3109 = vadd.f32 %v3098, %v3107
    %v3110 = vsel %vm75, %v3079, %v2963
    %vm3111 = vcmp.eq.s32.totalorder %v67, 1
    %v3112 = vsel %vm3111, %v3109, %v2966
    %v3113 = vld [vmem:[%s8] sm:$0xff]
    %v3114 = vld [vmem:[%s8 + $0x8] sm:$0xff]
    %v3115 = vld [vmem:[%s8 + $0x10] sm:$0xff]
    %v3116 = vld [vmem:[%s8 + $0x18] sm:$0xff]
    %s3117 = scalar_lea.vmem %s8, 32
    %v3118 = vld [vmem:[%s3117] sm:$0xff]
    %v3119 = vld [vmem:[%s3117 + $0x8] sm:$0xff]
    %v3120 = vld [vmem:[%s3117 + $0x10] sm:$0xff]
    %v3121 = vld [vmem:[%s3117 + $0x18] sm:$0xff]
    %3123 = vrot.lane.b32.xlu0 %v3112, 64
    %v3124 = vpop.permute.xlu0 %3123
    %v3125 = vsel %vm433, %v3124, 0
    %3127 = vmatprep.subr.mxu0 0.0
    %3128 = vmatpush1.msra.mxu0 %v3118
    %3129 = vmatprep.subr.mxu0 0.0
    %3130 = vmatpush1.msra.mxu0 %v3119
    %3131 = vmatprep.subr.mxu0 0.0
    %3132 = vmatpush1.msra.mxu0 %v3120
    %3133 = vmatprep.subr.mxu0 0.0
    %3134 = vmatpush1.msra.mxu0 %v3121
    %3135 = vmatprep.subr.mxu0 0.0
    %3136 = vmatpush1.msra.mxu0 0.0
    %3137 = vmatprep.subr.mxu0 0.0
    %3138 = vmatpush1.msra.mxu0 0.0
    %3139 = vmatprep.subr.mxu0 0.0
    %3140 = vmatpush1.msra.mxu0 0.0
    %3141 = vmatprep.subr.mxu0 0.0
    %3142 = vmatpush1.msra.mxu0 0.0
    %3143 = vmatprep.subr.mxu0 0.0
    %3144 = vmatpush1.msra.mxu0 0.0
    %3145 = vmatprep.subr.mxu0 0.0
    %3146 = vmatpush1.msra.mxu0 0.0
    %3147 = vmatprep.subr.mxu0 0.0
    %3148 = vmatpush1.msra.mxu0 0.0
    %3149 = vmatprep.subr.mxu0 0.0
    %3150 = vmatpush1.msra.mxu0 0.0
    %3151 = vmatprep.subr.mxu0 0.0
    %3152 = vmatpush1.msra.mxu0 0.0
    %3153 = vmatprep.subr.mxu0 0.0
    %3154 = vmatpush1.msra.mxu0 0.0
    %3155 = vmatprep.subr.mxu0 0.0
    %3156 = vmatpush1.msra.mxu0 0.0
    %3157 = vmatprep.subr.mxu0 0.0
    %3158 = vmatpush1.msra.mxu0 0.0
    %3159 = vmatprep.subr.mxu0 0.0
    %3160 = vmatpush1.msra.mxu0 0.0
    %3161 = vmatprep.subr.mxu0 0.0
    %3162 = vmatpush1.msra.mxu0 0.0
    %3163 = vmatprep.subr.mxu0 0.0
    %3164 = vmatpush1.msra.mxu0 0.0
    %3165 = vmatprep.subr.mxu0 0.0
    %3166 = vmatpush1.msra.mxu0 0.0
    %3167 = vmatprep.subr.mxu0 0.0
    %3168 = vmatpush1.msra.mxu0 0.0
    %3169 = vmatprep.subr.mxu0 0.0
    %3170 = vmatpush1.msra.mxu0 0.0
    %3171 = vmatprep.subr.mxu0 0.0
    %3172 = vmatpush1.msra.mxu0 0.0
    %3173 = vmatprep.subr.mxu0 0.0
    %3174 = vmatpush1.msra.mxu0 0.0
    %3175 = vmatprep.subr.mxu0 0.0
    %3176 = vmatpush1.msra.mxu0 0.0
    %3177 = vmatprep.subr.mxu0 0.0
    %3178 = vmatpush1.msra.mxu0 0.0
    %3179 = vmatprep.subr.mxu0 0.0
    %3180 = vmatpush1.msra.mxu0 0.0
    %3181 = vmatprep.subr.mxu0 0.0
    %3182 = vmatpush1.msra.mxu0 0.0
    %3183 = vmatprep.subr.mxu0 0.0
    %3184 = vmatpush1.msra.mxu0 0.0
    %3185 = vmatprep.subr.mxu0 0.0
    %3186 = vmatpush1.msra.mxu0 0.0
    %3187 = vmatprep.subr.mxu0 0.0
    %3188 = vmatpush1.msra.mxu0 0.0
    %3189 = vmatprep.subr.mxu0 0.0
    %3190 = vmatpush1.msra.mxu0 0.0
    %3191 = vmatprep.mubr.f32.mxu0 0.0
    %3192 = vmatmul.mubr.f32.gmra.mrb[0].mxu0 %v3125
    %v3193 = vpop.f32.mrb[0].mxu0
    %v3194 = vadd.f32 0.0, %v3193
    %v3195 = vpop.f32.mrb[0].mxu0
    %3196 = vdwg.mxu0
    %3198 = vrot.lane.b32.xlu0 %v3110, 64
    %v3199 = vpop.permute.xlu0 %3198
    %v3200 = vsel %vm433, %v3199, 0
    %3202 = vmatprep.subr.mxu0 0.0
    %3203 = vmatpush1.msra.mxu0 %v3113
    %3204 = vmatprep.subr.mxu0 0.0
    %3205 = vmatpush1.msra.mxu0 %v3114
    %3206 = vmatprep.subr.mxu0 0.0
    %3207 = vmatpush1.msra.mxu0 %v3115
    %3208 = vmatprep.subr.mxu0 0.0
    %3209 = vmatpush1.msra.mxu0 %v3116
    %3210 = vmatprep.subr.mxu0 0.0
    %3211 = vmatpush1.msra.mxu0 0.0
    %3212 = vmatprep.subr.mxu0 0.0
    %3213 = vmatpush1.msra.mxu0 0.0
    %3214 = vmatprep.subr.mxu0 0.0
    %3215 = vmatpush1.msra.mxu0 0.0
    %3216 = vmatprep.subr.mxu0 0.0
    %3217 = vmatpush1.msra.mxu0 0.0
    %3218 = vmatprep.subr.mxu0 0.0
    %3219 = vmatpush1.msra.mxu0 0.0
    %3220 = vmatprep.subr.mxu0 0.0
    %3221 = vmatpush1.msra.mxu0 0.0
    %3222 = vmatprep.subr.mxu0 0.0
    %3223 = vmatpush1.msra.mxu0 0.0
    %3224 = vmatprep.subr.mxu0 0.0
    %3225 = vmatpush1.msra.mxu0 0.0
    %3226 = vmatprep.subr.mxu0 0.0
    %3227 = vmatpush1.msra.mxu0 0.0
    %3228 = vmatprep.subr.mxu0 0.0
    %3229 = vmatpush1.msra.mxu0 0.0
    %3230 = vmatprep.subr.mxu0 0.0
    %3231 = vmatpush1.msra.mxu0 0.0
    %3232 = vmatprep.subr.mxu0 0.0
    %3233 = vmatpush1.msra.mxu0 0.0
    %3234 = vmatprep.subr.mxu0 0.0
    %3235 = vmatpush1.msra.mxu0 0.0
    %3236 = vmatprep.subr.mxu0 0.0
    %3237 = vmatpush1.msra.mxu0 0.0
    %3238 = vmatprep.subr.mxu0 0.0
    %3239 = vmatpush1.msra.mxu0 0.0
    %3240 = vmatprep.subr.mxu0 0.0
    %3241 = vmatpush1.msra.mxu0 0.0
    %3242 = vmatprep.subr.mxu0 0.0
    %3243 = vmatpush1.msra.mxu0 0.0
    %3244 = vmatprep.subr.mxu0 0.0
    %3245 = vmatpush1.msra.mxu0 0.0
    %3246 = vmatprep.subr.mxu0 0.0
    %3247 = vmatpush1.msra.mxu0 0.0
    %3248 = vmatprep.subr.mxu0 0.0
    %3249 = vmatpush1.msra.mxu0 0.0
    %3250 = vmatprep.subr.mxu0 0.0
    %3251 = vmatpush1.msra.mxu0 0.0
    %3252 = vmatprep.subr.mxu0 0.0
    %3253 = vmatpush1.msra.mxu0 0.0
    %3254 = vmatprep.subr.mxu0 0.0
    %3255 = vmatpush1.msra.mxu0 0.0
    %3256 = vmatprep.subr.mxu0 0.0
    %3257 = vmatpush1.msra.mxu0 0.0
    %3258 = vmatprep.subr.mxu0 0.0
    %3259 = vmatpush1.msra.mxu0 0.0
    %3260 = vmatprep.subr.mxu0 0.0
    %3261 = vmatpush1.msra.mxu0 0.0
    %3262 = vmatprep.subr.mxu0 0.0
    %3263 = vmatpush1.msra.mxu0 0.0
    %3264 = vmatprep.subr.mxu0 0.0
    %3265 = vmatpush1.msra.mxu0 0.0
    %3266 = vmatprep.mubr.f32.mxu0 0.0
    %3267 = vmatmul.mubr.f32.gmra.mrb[0].mxu0 %v3200
    %v3268 = vpop.f32.mrb[0].mxu0
    %v3269 = vadd.f32 %v3194, %v3268
    %v3270 = vpop.f32.mrb[0].mxu0
    %3271 = vdwg.mxu0
    %v3272 = vld [vmem:[%s9] sm:$0x1]
    %v3274 = vlaneseq
    %v3275 = vshrl.u32 %v3274, 7
    %v3276 = vsub.s32 0, %v3275
    %v3277 = vrot.slane %v3272, %v3276
    %v3279 = vadd.f32 %v3269, %v3277
    %vm3280 = vcmask 254976
    %3281 = vst.msk [vmem:[#allocation10] sm:$0x3] %vm3280, %v3279
    // Predicated region
    $region50: #{tpu_custom_call.1} parent=1 // pred_check
      _
    $region51: #{tpu_custom_call.1} parent=1 // pred_check_branch
      %3283 = sbr.rel (0) target = $region53
    $region52: #{tpu_custom_call.1} parent=1 // pred_region
      %s3285 = ssub.s32 32, 32
      %3286 = vsyncadd [#allocation7], %s3285
      %s3288 = sshll.u32 [#allocation10], 4
      %s3289 = int_to_ptr.vmem [resolvable:$true] %s3288
      %3291 = dma.vmem_to_hbm [thread:$0]  %s3289, 32, %s10, [#allocation7]
    $region53: #{tpu_custom_call.1} parent=1 // pred_fallthru
      _
    // Predicated region
    $region54: #{tpu_custom_call.1} parent=1 // pred_check
      _
    $region55: #{tpu_custom_call.1} parent=1 // pred_check_branch
      %3293 = sbr.rel (0) target = $region57
    $region56: #{tpu_custom_call.1} parent=1 // pred_region
      %3294 = dma.done [#allocation7], 32
    $region57: #{tpu_custom_call.1} parent=1 // pred_fallthru
      _
    %3295 = vsyncpa [#allocation6], 1
    %3296 = vsyncpa [#allocation9], 1
    %3297 = vsyncpa [#allocation7], 1

</llo_original>
